<compile_context>
chip_gen: v5e
topology: v5e:2x2
jax: 0.10.0
libtpu: 0.0.40
codegen_flags: <defaults>
</compile_context>

<pallas_src>
import functools
import math

import jax
import jax.numpy as jnp
from jax import lax
from jax.experimental import pallas as pl
from jax.experimental.pallas import tpu as pltpu

EPS = 1e-6
MXU_DTYPE = jnp.bfloat16   # matmul-input dtype (f32 accumulation via preferred_element_type)


# ----------------------------- in-kernel helpers -----------------------------

def _layernorm(x, gain, bias):
    # Annotated-Transformer LayerNorm: unbiased std (divide by D-1), eps added to std.
    mean = jnp.mean(x, axis=-1, keepdims=True)
    var = jnp.sum((x - mean) ** 2, axis=-1, keepdims=True) / (x.shape[-1] - 1)
    inv = pl.reciprocal(jnp.sqrt(var) + EPS, approx=True)   # EUP, frees VALU slots
    return gain * (x - mean) * inv + bias


def _linear(x, w, b):
    # bf16 MXU inputs, f32 accumulation; bias add in f32.
    return jnp.dot(x.astype(MXU_DTYPE), w.astype(MXU_DTYPE),
                   preferred_element_type=jnp.float32) + b


def _mha(q_in, kv_in, mask, wq, bq, wk, bk, wv, bv, wo, bo, n_heads):
    """Multi-head attention on 2-D (T, D) operands; returns (Tq, D) in f32."""
    Tq, D = q_in.shape
    d_k = D // n_heads
    scale = 1.0 / math.sqrt(d_k)

    q = _linear(q_in, wq, bq)        # (Tq, D) f32
    k = _linear(kv_in, wk, bk)       # (Tk, D) f32
    v = _linear(kv_in, wv, bv)       # (Tk, D) f32

    masked = mask == 0.0             # hoisted: compare once, reused by every head
    wo16 = wo.astype(MXU_DTYPE)

    out = jnp.zeros((Tq, D), jnp.float32)
    for h in range(n_heads):         # static unroll; accumulate against Wo slices (no concat)
        sl = slice(h * d_k, (h + 1) * d_k)
        qh, kh, vh = q[:, sl], k[:, sl], v[:, sl]
        # scores = qh @ kh^T without an explicit transpose: contract last dims of both.
        s = lax.dot_general(qh.astype(MXU_DTYPE), kh.astype(MXU_DTYPE),
                            (((1,), (1,)), ((), ())),
                            preferred_element_type=jnp.float32) * scale
        s = jnp.where(masked, -1e9, s)                    # exact masked_fill semantics
        s = s - jnp.max(s, axis=-1, keepdims=True)
        p = jnp.exp(s)
        p = p * pl.reciprocal(jnp.sum(p, axis=-1, keepdims=True), approx=True)
        head = jnp.dot(p.astype(MXU_DTYPE), vh.astype(MXU_DTYPE),
                       preferred_element_type=jnp.float32)          # (Tq, d_k)
        out = out + jnp.dot(head.astype(MXU_DTYPE), wo16[sl, :],
                            preferred_element_type=jnp.float32)     # accumulate output proj
    return out + bo


# ------------------------------ fused decoder layer --------------------------

def _decoder_layer_kernel(
        x_ref, mem_ref, tgt_mask_ref, src_mask_ref,
        sa_wq_ref, sa_bq_ref, sa_wk_ref, sa_bk_ref,
        sa_wv_ref, sa_bv_ref, sa_wo_ref, sa_bo_ref,
        ca_wq_ref, ca_bq_ref, ca_wk_ref, ca_bk_ref,
        ca_wv_ref, ca_bv_ref, ca_wo_ref, ca_bo_ref,
        ff_w1_ref, ff_b1_ref, ff_w2_ref, ff_b2_ref,
        ln0_g_ref, ln0_b_ref, ln1_g_ref, ln1_b_ref, ln2_g_ref, ln2_b_ref,
        out_ref, *, n_heads):
    x = x_ref[0].astype(jnp.float32)       # (Tq, D) residual stream, stays on-chip
    mem = mem_ref[0].astype(jnp.float32)   # (Ts, D)

    # sublayer[0]: x + self_attn(norm(x), norm(x), norm(x), tgt_mask)
    xn = _layernorm(x, ln0_g_ref[0], ln0_b_ref[0])
    x = x + _mha(xn, xn, tgt_mask_ref[0],
                 sa_wq_ref[...], sa_bq_ref[0], sa_wk_ref[...], sa_bk_ref[0],
                 sa_wv_ref[...], sa_bv_ref[0], sa_wo_ref[...], sa_bo_ref[0],
                 n_heads=n_heads)

    # sublayer[1]: x + src_attn(norm(x), memory, memory, src_mask)
    xn = _layernorm(x, ln1_g_ref[0], ln1_b_ref[0])
    x = x + _mha(xn, mem, src_mask_ref[0],
                 ca_wq_ref[...], ca_bq_ref[0], ca_wk_ref[...], ca_bk_ref[0],
                 ca_wv_ref[...], ca_bv_ref[0], ca_wo_ref[...], ca_bo_ref[0],
                 n_heads=n_heads)

    # sublayer[2]: x + feed_forward(norm(x))
    xn = _layernorm(x, ln2_g_ref[0], ln2_b_ref[0])
    h = jnp.maximum(_linear(xn, ff_w1_ref[...], ff_b1_ref[0]), 0.0)   # ReLU in f32
    x = x + _linear(h, ff_w2_ref[...], ff_b2_ref[0])

    out_ref[0] = x.astype(out_ref.dtype)

    # TODO(synk): dropout layers are identity (eval-mode semantics); no RNG dropout in kernel.


def decoder_layer(x, memory, src_mask, tgt_mask, params, *, n_heads):
    """Full DecoderLayer forward in a single fused Pallas kernel, grid over batch."""
    B, Tq, D = x.shape
    Ts = memory.shape[1]
    p = params

    weight_args = [
        p["sa_wq"], p["sa_bq"], p["sa_wk"], p["sa_bk"],
        p["sa_wv"], p["sa_bv"], p["sa_wo"], p["sa_bo"],
        p["ca_wq"], p["ca_bq"], p["ca_wk"], p["ca_bk"],
        p["ca_wv"], p["ca_bv"], p["ca_wo"], p["ca_bo"],
        p["ff_w1"], p["ff_b1"], p["ff_w2"], p["ff_b2"],
        p["ln0_g"], p["ln0_b"], p["ln1_g"], p["ln1_b"], p["ln2_g"], p["ln2_b"],
    ]

    def replicated(shape):
        n = len(shape)
        return pl.BlockSpec(shape, lambda b, _n=n: (0,) * _n)

    weight_specs = [replicated(a.shape) for a in weight_args]

    kernel = functools.partial(_decoder_layer_kernel, n_heads=n_heads)
    return pl.pallas_call(
        kernel,
        out_shape=jax.ShapeDtypeStruct((B, Tq, D), x.dtype),
        grid=(B,),
        in_specs=[
            pl.BlockSpec((1, Tq, D), lambda b: (b, 0, 0)),     # x
            pl.BlockSpec((1, Ts, D), lambda b: (b, 0, 0)),     # memory
            pl.BlockSpec((1, Tq, Tq), lambda b: (b, 0, 0)),    # tgt_mask
            pl.BlockSpec((1, Tq, Ts), lambda b: (b, 0, 0)),    # src_mask
        ] + weight_specs,
        out_specs=pl.BlockSpec((1, Tq, D), lambda b: (b, 0, 0)),
        compiler_params=pltpu.CompilerParams(
            dimension_semantics=("parallel",),
            vmem_limit_bytes=32 * 1024 * 1024,
        ),
    )(x, memory, tgt_mask, src_mask, *weight_args)


# ------------------------------ pure-JAX reference ---------------------------

def _ref_layernorm(x, g, b):
    mean = jnp.mean(x, axis=-1, keepdims=True)
    var = jnp.sum((x - mean) ** 2, axis=-1, keepdims=True) / (x.shape[-1] - 1)
    return g * (x - mean) / (jnp.sqrt(var) + EPS) + b


def _ref_mha(q_in, kv_in, mask, wq, bq, wk, bk, wv, bv, wo, bo, n_heads):
    B, Tq, D = q_in.shape
    Tk = kv_in.shape[1]
    d_k = D // n_heads
    q = (q_in @ wq + bq[0]).reshape(B, Tq, n_heads, d_k).transpose(0, 2, 1, 3)
    k = (kv_in @ wk + bk[0]).reshape(B, Tk, n_heads, d_k).transpose(0, 2, 1, 3)
    v = (kv_in @ wv + bv[0]).reshape(B, Tk, n_heads, d_k).transpose(0, 2, 1, 3)
    s = jnp.einsum("bhqd,bhkd->bhqk", q, k) / math.sqrt(d_k)
    s = jnp.where(mask[:, None, :, :] == 0.0, -1e9, s)
    p = jax.nn.softmax(s, axis=-1)
    o = jnp.einsum("bhqk,bhkd->bhqd", p, v).transpose(0, 2, 1, 3).reshape(B, Tq, D)
    return o @ wo + bo[0]


def decoder_layer_ref(x, memory, src_mask, tgt_mask, p, n_heads):
    xn = _ref_layernorm(x, p["ln0_g"][0], p["ln0_b"][0])
    x = x + _ref_mha(xn, xn, tgt_mask, p["sa_wq"], p["sa_bq"], p["sa_wk"], p["sa_bk"],
                     p["sa_wv"], p["sa_bv"], p["sa_wo"], p["sa_bo"], n_heads)
    xn = _ref_layernorm(x, p["ln1_g"][0], p["ln1_b"][0])
    x = x + _ref_mha(xn, memory, src_mask, p["ca_wq"], p["ca_bq"], p["ca_wk"], p["ca_bk"],
                     p["ca_wv"], p["ca_bv"], p["ca_wo"], p["ca_bo"], n_heads)
    xn = _ref_layernorm(x, p["ln2_g"][0], p["ln2_b"][0])
    h = jnp.maximum(xn @ p["ff_w1"] + p["ff_b1"][0], 0.0)
    return x + h @ p["ff_w2"] + p["ff_b2"][0]


# ------------------------------------ main ------------------------------------

if __name__ == "__main__":
    B, T_TGT, T_SRC, D, H, DFF = 2, 8, 8, 32, 4, 64

    key = jax.random.PRNGKey(0)
    ks = iter(jax.random.split(key, 32))

    def w(shape, scale=0.05):
        return scale * jax.random.normal(next(ks), shape, dtype=jnp.float32)

    params = {
        # projections stored as (in, out); equivalent to nn.Linear weight^T
        "sa_wq": w((D, D)), "sa_bq": w((1, D)),
        "sa_wk": w((D, D)), "sa_bk": w((1, D)),
        "sa_wv": w((D, D)), "sa_bv": w((1, D)),
        "sa_wo": w((D, D)), "sa_bo": w((1, D)),
        "ca_wq": w((D, D)), "ca_bq": w((1, D)),
        "ca_wk": w((D, D)), "ca_bk": w((1, D)),
        "ca_wv": w((D, D)), "ca_bv": w((1, D)),
        "ca_wo": w((D, D)), "ca_bo": w((1, D)),
        "ff_w1": w((D, DFF)), "ff_b1": w((1, DFF)),
        "ff_w2": w((DFF, D)), "ff_b2": w((1, D)),
        "ln0_g": jnp.ones((1, D), jnp.float32), "ln0_b": jnp.zeros((1, D), jnp.float32),
        "ln1_g": jnp.ones((1, D), jnp.float32), "ln1_b": jnp.zeros((1, D), jnp.float32),
        "ln2_g": jnp.ones((1, D), jnp.float32), "ln2_b": jnp.zeros((1, D), jnp.float32),
    }

    x = jax.random.normal(next(ks), (B, T_TGT, D), dtype=jnp.float32)
    memory = jax.random.normal(next(ks), (B, T_SRC, D), dtype=jnp.float32)

    # tgt_mask: causal (subsequent) mask; src_mask: all positions visible.
    tgt_mask = jnp.broadcast_to(
        jnp.tril(jnp.ones((T_TGT, T_TGT), jnp.float32))[None], (B, T_TGT, T_TGT))
    src_mask = jnp.ones((B, T_TGT, T_SRC), jnp.float32)

    fwd = jax.jit(functools.partial(decoder_layer, n_heads=H))
    out = jax.block_until_ready(fwd(x, memory, src_mask, tgt_mask, params))

    ref = decoder_layer_ref(x, memory, src_mask, tgt_mask, params, H)
    assert out.shape == (B, T_TGT, D)
    # Tolerance covers bf16 MXU inputs (f32 accumulation) + approx EUP reciprocals.
    assert jnp.allclose(out, ref, rtol=2e-2, atol=2e-2), "mismatch vs pure-JAX reference"

    print("KERNEL_OK")
</pallas_src>

<mosaic_0001>
module attributes {stable_mosaic.version = 11 : i64} {
  func.func @_decoder_layer_kernel(%arg0: i32, %arg1: memref<1x8x32xf32, #tpu.memory_space<vmem>>, %arg2: memref<1x8x32xf32, #tpu.memory_space<vmem>>, %arg3: memref<1x8x8xf32, #tpu.memory_space<vmem>>, %arg4: memref<1x8x8xf32, #tpu.memory_space<vmem>>, %arg5: memref<32x32xf32, #tpu.memory_space<vmem>>, %arg6: memref<1x32xf32, #tpu.memory_space<vmem>>, %arg7: memref<32x32xf32, #tpu.memory_space<vmem>>, %arg8: memref<1x32xf32, #tpu.memory_space<vmem>>, %arg9: memref<32x32xf32, #tpu.memory_space<vmem>>, %arg10: memref<1x32xf32, #tpu.memory_space<vmem>>, %arg11: memref<32x32xf32, #tpu.memory_space<vmem>>, %arg12: memref<1x32xf32, #tpu.memory_space<vmem>>, %arg13: memref<32x32xf32, #tpu.memory_space<vmem>>, %arg14: memref<1x32xf32, #tpu.memory_space<vmem>>, %arg15: memref<32x32xf32, #tpu.memory_space<vmem>>, %arg16: memref<1x32xf32, #tpu.memory_space<vmem>>, %arg17: memref<32x32xf32, #tpu.memory_space<vmem>>, %arg18: memref<1x32xf32, #tpu.memory_space<vmem>>, %arg19: memref<32x32xf32, #tpu.memory_space<vmem>>, %arg20: memref<1x32xf32, #tpu.memory_space<vmem>>, %arg21: memref<32x64xf32, #tpu.memory_space<vmem>>, %arg22: memref<1x64xf32, #tpu.memory_space<vmem>>, %arg23: memref<64x32xf32, #tpu.memory_space<vmem>>, %arg24: memref<1x32xf32, #tpu.memory_space<vmem>>, %arg25: memref<1x32xf32, #tpu.memory_space<vmem>>, %arg26: memref<1x32xf32, #tpu.memory_space<vmem>>, %arg27: memref<1x32xf32, #tpu.memory_space<vmem>>, %arg28: memref<1x32xf32, #tpu.memory_space<vmem>>, %arg29: memref<1x32xf32, #tpu.memory_space<vmem>>, %arg30: memref<1x32xf32, #tpu.memory_space<vmem>>, %arg31: memref<1x8x32xf32, #tpu.memory_space<vmem>>) attributes {dimension_semantics = [#tpu.dimension_semantics<parallel>], iteration_bounds = array<i64: 2>, scalar_prefetch = 0 : i64, scratch_operands = 0 : i64, tpu.core_type = #tpu.core_type<tc>, window_params = [{transform_indices = @transform_0, window_bounds = array<i64: 1, 8, 32>}, {transform_indices = @transform_1, window_bounds = array<i64: 1, 8, 32>}, {transform_indices = @transform_2, window_bounds = array<i64: 1, 8, 8>}, {transform_indices = @transform_3, window_bounds = array<i64: 1, 8, 8>}, {pipeline_mode = #tpu.pipeline_mode<synchronous>, transform_indices = @transform_4, window_bounds = array<i64: 32, 32>}, {pipeline_mode = #tpu.pipeline_mode<synchronous>, transform_indices = @transform_5, window_bounds = array<i64: 1, 32>}, {pipeline_mode = #tpu.pipeline_mode<synchronous>, transform_indices = @transform_6, window_bounds = array<i64: 32, 32>}, {pipeline_mode = #tpu.pipeline_mode<synchronous>, transform_indices = @transform_7, window_bounds = array<i64: 1, 32>}, {pipeline_mode = #tpu.pipeline_mode<synchronous>, transform_indices = @transform_8, window_bounds = array<i64: 32, 32>}, {pipeline_mode = #tpu.pipeline_mode<synchronous>, transform_indices = @transform_9, window_bounds = array<i64: 1, 32>}, {pipeline_mode = #tpu.pipeline_mode<synchronous>, transform_indices = @transform_10, window_bounds = array<i64: 32, 32>}, {pipeline_mode = #tpu.pipeline_mode<synchronous>, transform_indices = @transform_11, window_bounds = array<i64: 1, 32>}, {pipeline_mode = #tpu.pipeline_mode<synchronous>, transform_indices = @transform_12, window_bounds = array<i64: 32, 32>}, {pipeline_mode = #tpu.pipeline_mode<synchronous>, transform_indices = @transform_13, window_bounds = array<i64: 1, 32>}, {pipeline_mode = #tpu.pipeline_mode<synchronous>, transform_indices = @transform_14, window_bounds = array<i64: 32, 32>}, {pipeline_mode = #tpu.pipeline_mode<synchronous>, transform_indices = @transform_15, window_bounds = array<i64: 1, 32>}, {pipeline_mode = #tpu.pipeline_mode<synchronous>, transform_indices = @transform_16, window_bounds = array<i64: 32, 32>}, {pipeline_mode = #tpu.pipeline_mode<synchronous>, transform_indices = @transform_17, window_bounds = array<i64: 1, 32>}, {pipeline_mode = #tpu.pipeline_mode<synchronous>, transform_indices = @transform_18, window_bounds = array<i64: 32, 32>}, {pipeline_mode = #tpu.pipeline_mode<synchronous>, transform_indices = @transform_19, window_bounds = array<i64: 1, 32>}, {pipeline_mode = #tpu.pipeline_mode<synchronous>, transform_indices = @transform_20, window_bounds = array<i64: 32, 64>}, {pipeline_mode = #tpu.pipeline_mode<synchronous>, transform_indices = @transform_21, window_bounds = array<i64: 1, 64>}, {pipeline_mode = #tpu.pipeline_mode<synchronous>, transform_indices = @transform_22, window_bounds = array<i64: 64, 32>}, {pipeline_mode = #tpu.pipeline_mode<synchronous>, transform_indices = @transform_23, window_bounds = array<i64: 1, 32>}, {pipeline_mode = #tpu.pipeline_mode<synchronous>, transform_indices = @transform_24, window_bounds = array<i64: 1, 32>}, {pipeline_mode = #tpu.pipeline_mode<synchronous>, transform_indices = @transform_25, window_bounds = array<i64: 1, 32>}, {pipeline_mode = #tpu.pipeline_mode<synchronous>, transform_indices = @transform_26, window_bounds = array<i64: 1, 32>}, {pipeline_mode = #tpu.pipeline_mode<synchronous>, transform_indices = @transform_27, window_bounds = array<i64: 1, 32>}, {pipeline_mode = #tpu.pipeline_mode<synchronous>, transform_indices = @transform_28, window_bounds = array<i64: 1, 32>}, {pipeline_mode = #tpu.pipeline_mode<synchronous>, transform_indices = @transform_29, window_bounds = array<i64: 1, 32>}, {transform_indices = @transform_30, window_bounds = array<i64: 1, 8, 32>}]} {
    %c0 = arith.constant 0 : index
    %c0_0 = arith.constant 0 : index
    %c0_1 = arith.constant 0 : index
    %0 = vector.load %arg1[%c0, %c0_0, %c0_1] : memref<1x8x32xf32, #tpu.memory_space<vmem>>, vector<1x8x32xf32>
    %1 = vector.shape_cast %0 : vector<1x8x32xf32> to vector<8x32xf32>
    %c0_2 = arith.constant 0 : index
    %c0_3 = arith.constant 0 : index
    %c0_4 = arith.constant 0 : index
    %2 = vector.load %arg2[%c0_2, %c0_3, %c0_4] : memref<1x8x32xf32, #tpu.memory_space<vmem>>, vector<1x8x32xf32>
    %3 = vector.shape_cast %2 : vector<1x8x32xf32> to vector<8x32xf32>
    %c0_5 = arith.constant 0 : index
    %c0_6 = arith.constant 0 : index
    %4 = vector.load %arg25[%c0_5, %c0_6] : memref<1x32xf32, #tpu.memory_space<vmem>>, vector<1x32xf32>
    %5 = vector.shape_cast %4 : vector<1x32xf32> to vector<32xf32>
    %c0_7 = arith.constant 0 : index
    %c0_8 = arith.constant 0 : index
    %6 = vector.load %arg26[%c0_7, %c0_8] : memref<1x32xf32, #tpu.memory_space<vmem>>, vector<1x32xf32>
    %7 = vector.shape_cast %6 : vector<1x32xf32> to vector<32xf32>
    %cst = arith.constant dense<0.000000e+00> : vector<8xf32>
    %8 = vector.multi_reduction <add>, %1, %cst [1] : vector<8x32xf32> to vector<8xf32>
    %9 = vector.shape_cast %8 : vector<8xf32> to vector<8x1xf32>
    %cst_9 = arith.constant 3.200000e+01 : f32
    %10 = vector.broadcast %cst_9 : f32 to vector<8x1xf32>
    %11 = arith.divf %9, %10 : vector<8x1xf32>
    %12 = vector.broadcast %11 : vector<8x1xf32> to vector<8x32xf32>
    %13 = arith.subf %1, %12 : vector<8x32xf32>
    %14 = arith.mulf %13, %13 : vector<8x32xf32>
    %cst_10 = arith.constant dense<0.000000e+00> : vector<8xf32>
    %15 = vector.multi_reduction <add>, %14, %cst_10 [1] : vector<8x32xf32> to vector<8xf32>
    %16 = vector.shape_cast %15 : vector<8xf32> to vector<8x1xf32>
    %cst_11 = arith.constant 3.100000e+01 : f32
    %17 = vector.broadcast %cst_11 : f32 to vector<8x1xf32>
    %18 = arith.divf %16, %17 : vector<8x1xf32>
    %19 = math.sqrt %18 : vector<8x1xf32>
    %cst_12 = arith.constant 9.99999997E-7 : f32
    %20 = vector.broadcast %cst_12 : f32 to vector<8x1xf32>
    %21 = arith.addf %19, %20 : vector<8x1xf32>
    %22 = tpu.reciprocal %21 {approx = true} : vector<8x1xf32> -> vector<8x1xf32>
    %23 = vector.broadcast %11 : vector<8x1xf32> to vector<8x32xf32>
    %24 = arith.subf %1, %23 : vector<8x32xf32>
    %25 = vector.shape_cast %5 : vector<32xf32> to vector<1x32xf32>
    %26 = vector.broadcast %25 : vector<1x32xf32> to vector<8x32xf32>
    %27 = arith.mulf %26, %24 : vector<8x32xf32>
    %28 = vector.broadcast %22 : vector<8x1xf32> to vector<8x32xf32>
    %29 = arith.mulf %27, %28 : vector<8x32xf32>
    %30 = vector.shape_cast %7 : vector<32xf32> to vector<1x32xf32>
    %31 = vector.broadcast %30 : vector<1x32xf32> to vector<8x32xf32>
    %32 = arith.addf %29, %31 : vector<8x32xf32>
    %c0_13 = arith.constant 0 : index
    %c0_14 = arith.constant 0 : index
    %c0_15 = arith.constant 0 : index
    %33 = vector.load %arg3[%c0_13, %c0_14, %c0_15] : memref<1x8x8xf32, #tpu.memory_space<vmem>>, vector<1x8x8xf32>
    %34 = vector.shape_cast %33 : vector<1x8x8xf32> to vector<8x8xf32>
    %c0_16 = arith.constant 0 : index
    %c0_17 = arith.constant 0 : index
    %35 = vector.load %arg5[%c0_16, %c0_17] : memref<32x32xf32, #tpu.memory_space<vmem>>, vector<32x32xf32>
    %c0_18 = arith.constant 0 : index
    %c0_19 = arith.constant 0 : index
    %36 = vector.load %arg6[%c0_18, %c0_19] : memref<1x32xf32, #tpu.memory_space<vmem>>, vector<1x32xf32>
    %37 = vector.shape_cast %36 : vector<1x32xf32> to vector<32xf32>
    %c0_20 = arith.constant 0 : index
    %c0_21 = arith.constant 0 : index
    %38 = vector.load %arg7[%c0_20, %c0_21] : memref<32x32xf32, #tpu.memory_space<vmem>>, vector<32x32xf32>
    %c0_22 = arith.constant 0 : index
    %c0_23 = arith.constant 0 : index
    %39 = vector.load %arg8[%c0_22, %c0_23] : memref<1x32xf32, #tpu.memory_space<vmem>>, vector<1x32xf32>
    %40 = vector.shape_cast %39 : vector<1x32xf32> to vector<32xf32>
    %c0_24 = arith.constant 0 : index
    %c0_25 = arith.constant 0 : index
    %41 = vector.load %arg9[%c0_24, %c0_25] : memref<32x32xf32, #tpu.memory_space<vmem>>, vector<32x32xf32>
    %c0_26 = arith.constant 0 : index
    %c0_27 = arith.constant 0 : index
    %42 = vector.load %arg10[%c0_26, %c0_27] : memref<1x32xf32, #tpu.memory_space<vmem>>, vector<1x32xf32>
    %43 = vector.shape_cast %42 : vector<1x32xf32> to vector<32xf32>
    %c0_28 = arith.constant 0 : index
    %c0_29 = arith.constant 0 : index
    %44 = vector.load %arg11[%c0_28, %c0_29] : memref<32x32xf32, #tpu.memory_space<vmem>>, vector<32x32xf32>
    %c0_30 = arith.constant 0 : index
    %c0_31 = arith.constant 0 : index
    %45 = vector.load %arg12[%c0_30, %c0_31] : memref<1x32xf32, #tpu.memory_space<vmem>>, vector<1x32xf32>
    %46 = vector.shape_cast %45 : vector<1x32xf32> to vector<32xf32>
    %47 = arith.truncf %32 : vector<8x32xf32> to vector<8x32xbf16>
    %48 = arith.truncf %35 : vector<32x32xf32> to vector<32x32xbf16>
    %cst_32 = arith.constant dense<0.000000e+00> : vector<8x32xf32>
    %49 = tpu.matmul %47, %48, %cst_32 {dimension_numbers = #tpu.dot_dimension_numbers<[1], [0], [0], [1], [0, 0, 1, 1], [], []>} : vector<8x32xbf16>, vector<32x32xbf16>, vector<8x32xf32> -> vector<8x32xf32>
    %50 = vector.shape_cast %37 : vector<32xf32> to vector<1x32xf32>
    %51 = vector.broadcast %50 : vector<1x32xf32> to vector<8x32xf32>
    %52 = arith.addf %49, %51 : vector<8x32xf32>
    %53 = arith.truncf %32 : vector<8x32xf32> to vector<8x32xbf16>
    %54 = arith.truncf %38 : vector<32x32xf32> to vector<32x32xbf16>
    %cst_33 = arith.constant dense<0.000000e+00> : vector<8x32xf32>
    %55 = tpu.matmul %53, %54, %cst_33 {dimension_numbers = #tpu.dot_dimension_numbers<[1], [0], [0], [1], [0, 0, 1, 1], [], []>} : vector<8x32xbf16>, vector<32x32xbf16>, vector<8x32xf32> -> vector<8x32xf32>
    %56 = vector.shape_cast %40 : vector<32xf32> to vector<1x32xf32>
    %57 = vector.broadcast %56 : vector<1x32xf32> to vector<8x32xf32>
    %58 = arith.addf %55, %57 : vector<8x32xf32>
    %59 = arith.truncf %32 : vector<8x32xf32> to vector<8x32xbf16>
    %60 = arith.truncf %41 : vector<32x32xf32> to vector<32x32xbf16>
    %cst_34 = arith.constant dense<0.000000e+00> : vector<8x32xf32>
    %61 = tpu.matmul %59, %60, %cst_34 {dimension_numbers = #tpu.dot_dimension_numbers<[1], [0], [0], [1], [0, 0, 1, 1], [], []>} : vector<8x32xbf16>, vector<32x32xbf16>, vector<8x32xf32> -> vector<8x32xf32>
    %62 = vector.shape_cast %43 : vector<32xf32> to vector<1x32xf32>
    %63 = vector.broadcast %62 : vector<1x32xf32> to vector<8x32xf32>
    %64 = arith.addf %61, %63 : vector<8x32xf32>
    %cst_35 = arith.constant 0.000000e+00 : f32
    %65 = vector.broadcast %cst_35 : f32 to vector<8x8xf32>
    %66 = arith.cmpf oeq, %34, %65 : vector<8x8xf32>
    %67 = arith.truncf %44 : vector<32x32xf32> to vector<32x32xbf16>
    %cst_36 = arith.constant 0.000000e+00 : f32
    %68 = vector.broadcast %cst_36 : f32 to vector<8x32xf32>
    %69 = vector.extract_strided_slice %52 {offsets = [0, 0], sizes = [8, 8], strides = [1, 1]} : vector<8x32xf32> to vector<8x8xf32>
    %70 = vector.extract_strided_slice %58 {offsets = [0, 0], sizes = [8, 8], strides = [1, 1]} : vector<8x32xf32> to vector<8x8xf32>
    %71 = vector.extract_strided_slice %64 {offsets = [0, 0], sizes = [8, 8], strides = [1, 1]} : vector<8x32xf32> to vector<8x8xf32>
    %72 = arith.truncf %69 : vector<8x8xf32> to vector<8x8xbf16>
    %73 = arith.truncf %70 : vector<8x8xf32> to vector<8x8xbf16>
    %cst_37 = arith.constant dense<0.000000e+00> : vector<8x8xf32>
    %74 = tpu.matmul %72, %73, %cst_37 {dimension_numbers = #tpu.dot_dimension_numbers<[1], [1], [0], [0], [0, 0, 1, 0], [], []>} : vector<8x8xbf16>, vector<8x8xbf16>, vector<8x8xf32> -> vector<8x8xf32>
    %cst_38 = arith.constant 0.353553385 : f32
    %75 = vector.broadcast %cst_38 : f32 to vector<8x8xf32>
    %76 = arith.mulf %74, %75 : vector<8x8xf32>
    %cst_39 = arith.constant -1.000000e+09 : f32
    %77 = vector.broadcast %cst_39 : f32 to vector<8x8xf32>
    %78 = arith.select %66, %77, %76 : vector<8x8xi1>, vector<8x8xf32>
    %cst_40 = arith.constant dense<0xFF800000> : vector<8xf32>
    %79 = vector.multi_reduction <maximumf>, %78, %cst_40 [1] : vector<8x8xf32> to vector<8xf32>
    %80 = vector.shape_cast %79 : vector<8xf32> to vector<8x1xf32>
    %81 = vector.broadcast %80 : vector<8x1xf32> to vector<8x8xf32>
    %82 = arith.subf %78, %81 : vector<8x8xf32>
    %83 = math.exp %82 : vector<8x8xf32>
    %cst_41 = arith.constant dense<0.000000e+00> : vector<8xf32>
    %84 = vector.multi_reduction <add>, %83, %cst_41 [1] : vector<8x8xf32> to vector<8xf32>
    %85 = vector.shape_cast %84 : vector<8xf32> to vector<8x1xf32>
    %86 = tpu.reciprocal %85 {approx = true} : vector<8x1xf32> -> vector<8x1xf32>
    %87 = vector.broadcast %86 : vector<8x1xf32> to vector<8x8xf32>
    %88 = arith.mulf %83, %87 : vector<8x8xf32>
    %89 = arith.truncf %88 : vector<8x8xf32> to vector<8x8xbf16>
    %90 = arith.truncf %71 : vector<8x8xf32> to vector<8x8xbf16>
    %cst_42 = arith.constant dense<0.000000e+00> : vector<8x8xf32>
    %91 = tpu.matmul %89, %90, %cst_42 {dimension_numbers = #tpu.dot_dimension_numbers<[1], [0], [0], [1], [0, 0, 1, 1], [], []>} : vector<8x8xbf16>, vector<8x8xbf16>, vector<8x8xf32> -> vector<8x8xf32>
    %92 = arith.truncf %91 : vector<8x8xf32> to vector<8x8xbf16>
    %93 = vector.extract_strided_slice %67 {offsets = [0, 0], sizes = [8, 32], strides = [1, 1]} : vector<32x32xbf16> to vector<8x32xbf16>
    %cst_43 = arith.constant dense<0.000000e+00> : vector<8x32xf32>
    %94 = tpu.matmul %92, %93, %cst_43 {dimension_numbers = #tpu.dot_dimension_numbers<[1], [0], [0], [1], [0, 0, 1, 1], [], []>} : vector<8x8xbf16>, vector<8x32xbf16>, vector<8x32xf32> -> vector<8x32xf32>
    %95 = arith.addf %68, %94 : vector<8x32xf32>
    %96 = vector.extract_strided_slice %52 {offsets = [0, 8], sizes = [8, 8], strides = [1, 1]} : vector<8x32xf32> to vector<8x8xf32>
    %97 = vector.extract_strided_slice %58 {offsets = [0, 8], sizes = [8, 8], strides = [1, 1]} : vector<8x32xf32> to vector<8x8xf32>
    %98 = vector.extract_strided_slice %64 {offsets = [0, 8], sizes = [8, 8], strides = [1, 1]} : vector<8x32xf32> to vector<8x8xf32>
    %99 = arith.truncf %96 : vector<8x8xf32> to vector<8x8xbf16>
    %100 = arith.truncf %97 : vector<8x8xf32> to vector<8x8xbf16>
    %cst_44 = arith.constant dense<0.000000e+00> : vector<8x8xf32>
    %101 = tpu.matmul %99, %100, %cst_44 {dimension_numbers = #tpu.dot_dimension_numbers<[1], [1], [0], [0], [0, 0, 1, 0], [], []>} : vector<8x8xbf16>, vector<8x8xbf16>, vector<8x8xf32> -> vector<8x8xf32>
    %cst_45 = arith.constant 0.353553385 : f32
    %102 = vector.broadcast %cst_45 : f32 to vector<8x8xf32>
    %103 = arith.mulf %101, %102 : vector<8x8xf32>
    %cst_46 = arith.constant -1.000000e+09 : f32
    %104 = vector.broadcast %cst_46 : f32 to vector<8x8xf32>
    %105 = arith.select %66, %104, %103 : vector<8x8xi1>, vector<8x8xf32>
    %cst_47 = arith.constant dense<0xFF800000> : vector<8xf32>
    %106 = vector.multi_reduction <maximumf>, %105, %cst_47 [1] : vector<8x8xf32> to vector<8xf32>
    %107 = vector.shape_cast %106 : vector<8xf32> to vector<8x1xf32>
    %108 = vector.broadcast %107 : vector<8x1xf32> to vector<8x8xf32>
    %109 = arith.subf %105, %108 : vector<8x8xf32>
    %110 = math.exp %109 : vector<8x8xf32>
    %cst_48 = arith.constant dense<0.000000e+00> : vector<8xf32>
    %111 = vector.multi_reduction <add>, %110, %cst_48 [1] : vector<8x8xf32> to vector<8xf32>
    %112 = vector.shape_cast %111 : vector<8xf32> to vector<8x1xf32>
    %113 = tpu.reciprocal %112 {approx = true} : vector<8x1xf32> -> vector<8x1xf32>
    %114 = vector.broadcast %113 : vector<8x1xf32> to vector<8x8xf32>
    %115 = arith.mulf %110, %114 : vector<8x8xf32>
    %116 = arith.truncf %115 : vector<8x8xf32> to vector<8x8xbf16>
    %117 = arith.truncf %98 : vector<8x8xf32> to vector<8x8xbf16>
    %cst_49 = arith.constant dense<0.000000e+00> : vector<8x8xf32>
    %118 = tpu.matmul %116, %117, %cst_49 {dimension_numbers = #tpu.dot_dimension_numbers<[1], [0], [0], [1], [0, 0, 1, 1], [], []>} : vector<8x8xbf16>, vector<8x8xbf16>, vector<8x8xf32> -> vector<8x8xf32>
    %119 = arith.truncf %118 : vector<8x8xf32> to vector<8x8xbf16>
    %120 = vector.extract_strided_slice %67 {offsets = [8, 0], sizes = [8, 32], strides = [1, 1]} : vector<32x32xbf16> to vector<8x32xbf16>
    %cst_50 = arith.constant dense<0.000000e+00> : vector<8x32xf32>
    %121 = tpu.matmul %119, %120, %cst_50 {dimension_numbers = #tpu.dot_dimension_numbers<[1], [0], [0], [1], [0, 0, 1, 1], [], []>} : vector<8x8xbf16>, vector<8x32xbf16>, vector<8x32xf32> -> vector<8x32xf32>
    %122 = arith.addf %95, %121 : vector<8x32xf32>
    %123 = vector.extract_strided_slice %52 {offsets = [0, 16], sizes = [8, 8], strides = [1, 1]} : vector<8x32xf32> to vector<8x8xf32>
    %124 = vector.extract_strided_slice %58 {offsets = [0, 16], sizes = [8, 8], strides = [1, 1]} : vector<8x32xf32> to vector<8x8xf32>
    %125 = vector.extract_strided_slice %64 {offsets = [0, 16], sizes = [8, 8], strides = [1, 1]} : vector<8x32xf32> to vector<8x8xf32>
    %126 = arith.truncf %123 : vector<8x8xf32> to vector<8x8xbf16>
    %127 = arith.truncf %124 : vector<8x8xf32> to vector<8x8xbf16>
    %cst_51 = arith.constant dense<0.000000e+00> : vector<8x8xf32>
    %128 = tpu.matmul %126, %127, %cst_51 {dimension_numbers = #tpu.dot_dimension_numbers<[1], [1], [0], [0], [0, 0, 1, 0], [], []>} : vector<8x8xbf16>, vector<8x8xbf16>, vector<8x8xf32> -> vector<8x8xf32>
    %cst_52 = arith.constant 0.353553385 : f32
    %129 = vector.broadcast %cst_52 : f32 to vector<8x8xf32>
    %130 = arith.mulf %128, %129 : vector<8x8xf32>
    %cst_53 = arith.constant -1.000000e+09 : f32
    %131 = vector.broadcast %cst_53 : f32 to vector<8x8xf32>
    %132 = arith.select %66, %131, %130 : vector<8x8xi1>, vector<8x8xf32>
    %cst_54 = arith.constant dense<0xFF800000> : vector<8xf32>
    %133 = vector.multi_reduction <maximumf>, %132, %cst_54 [1] : vector<8x8xf32> to vector<8xf32>
    %134 = vector.shape_cast %133 : vector<8xf32> to vector<8x1xf32>
    %135 = vector.broadcast %134 : vector<8x1xf32> to vector<8x8xf32>
    %136 = arith.subf %132, %135 : vector<8x8xf32>
    %137 = math.exp %136 : vector<8x8xf32>
    %cst_55 = arith.constant dense<0.000000e+00> : vector<8xf32>
    %138 = vector.multi_reduction <add>, %137, %cst_55 [1] : vector<8x8xf32> to vector<8xf32>
    %139 = vector.shape_cast %138 : vector<8xf32> to vector<8x1xf32>
    %140 = tpu.reciprocal %139 {approx = true} : vector<8x1xf32> -> vector<8x1xf32>
    %141 = vector.broadcast %140 : vector<8x1xf32> to vector<8x8xf32>
    %142 = arith.mulf %137, %141 : vector<8x8xf32>
    %143 = arith.truncf %142 : vector<8x8xf32> to vector<8x8xbf16>
    %144 = arith.truncf %125 : vector<8x8xf32> to vector<8x8xbf16>
    %cst_56 = arith.constant dense<0.000000e+00> : vector<8x8xf32>
    %145 = tpu.matmul %143, %144, %cst_56 {dimension_numbers = #tpu.dot_dimension_numbers<[1], [0], [0], [1], [0, 0, 1, 1], [], []>} : vector<8x8xbf16>, vector<8x8xbf16>, vector<8x8xf32> -> vector<8x8xf32>
    %146 = arith.truncf %145 : vector<8x8xf32> to vector<8x8xbf16>
    %147 = vector.extract_strided_slice %67 {offsets = [16, 0], sizes = [8, 32], strides = [1, 1]} : vector<32x32xbf16> to vector<8x32xbf16>
    %cst_57 = arith.constant dense<0.000000e+00> : vector<8x32xf32>
    %148 = tpu.matmul %146, %147, %cst_57 {dimension_numbers = #tpu.dot_dimension_numbers<[1], [0], [0], [1], [0, 0, 1, 1], [], []>} : vector<8x8xbf16>, vector<8x32xbf16>, vector<8x32xf32> -> vector<8x32xf32>
    %149 = arith.addf %122, %148 : vector<8x32xf32>
    %150 = vector.extract_strided_slice %52 {offsets = [0, 24], sizes = [8, 8], strides = [1, 1]} : vector<8x32xf32> to vector<8x8xf32>
    %151 = vector.extract_strided_slice %58 {offsets = [0, 24], sizes = [8, 8], strides = [1, 1]} : vector<8x32xf32> to vector<8x8xf32>
    %152 = vector.extract_strided_slice %64 {offsets = [0, 24], sizes = [8, 8], strides = [1, 1]} : vector<8x32xf32> to vector<8x8xf32>
    %153 = arith.truncf %150 : vector<8x8xf32> to vector<8x8xbf16>
    %154 = arith.truncf %151 : vector<8x8xf32> to vector<8x8xbf16>
    %cst_58 = arith.constant dense<0.000000e+00> : vector<8x8xf32>
    %155 = tpu.matmul %153, %154, %cst_58 {dimension_numbers = #tpu.dot_dimension_numbers<[1], [1], [0], [0], [0, 0, 1, 0], [], []>} : vector<8x8xbf16>, vector<8x8xbf16>, vector<8x8xf32> -> vector<8x8xf32>
    %cst_59 = arith.constant 0.353553385 : f32
    %156 = vector.broadcast %cst_59 : f32 to vector<8x8xf32>
    %157 = arith.mulf %155, %156 : vector<8x8xf32>
    %cst_60 = arith.constant -1.000000e+09 : f32
    %158 = vector.broadcast %cst_60 : f32 to vector<8x8xf32>
    %159 = arith.select %66, %158, %157 : vector<8x8xi1>, vector<8x8xf32>
    %cst_61 = arith.constant dense<0xFF800000> : vector<8xf32>
    %160 = vector.multi_reduction <maximumf>, %159, %cst_61 [1] : vector<8x8xf32> to vector<8xf32>
    %161 = vector.shape_cast %160 : vector<8xf32> to vector<8x1xf32>
    %162 = vector.broadcast %161 : vector<8x1xf32> to vector<8x8xf32>
    %163 = arith.subf %159, %162 : vector<8x8xf32>
    %164 = math.exp %163 : vector<8x8xf32>
    %cst_62 = arith.constant dense<0.000000e+00> : vector<8xf32>
    %165 = vector.multi_reduction <add>, %164, %cst_62 [1] : vector<8x8xf32> to vector<8xf32>
    %166 = vector.shape_cast %165 : vector<8xf32> to vector<8x1xf32>
    %167 = tpu.reciprocal %166 {approx = true} : vector<8x1xf32> -> vector<8x1xf32>
    %168 = vector.broadcast %167 : vector<8x1xf32> to vector<8x8xf32>
    %169 = arith.mulf %164, %168 : vector<8x8xf32>
    %170 = arith.truncf %169 : vector<8x8xf32> to vector<8x8xbf16>
    %171 = arith.truncf %152 : vector<8x8xf32> to vector<8x8xbf16>
    %cst_63 = arith.constant dense<0.000000e+00> : vector<8x8xf32>
    %172 = tpu.matmul %170, %171, %cst_63 {dimension_numbers = #tpu.dot_dimension_numbers<[1], [0], [0], [1], [0, 0, 1, 1], [], []>} : vector<8x8xbf16>, vector<8x8xbf16>, vector<8x8xf32> -> vector<8x8xf32>
    %173 = arith.truncf %172 : vector<8x8xf32> to vector<8x8xbf16>
    %174 = vector.extract_strided_slice %67 {offsets = [24, 0], sizes = [8, 32], strides = [1, 1]} : vector<32x32xbf16> to vector<8x32xbf16>
    %cst_64 = arith.constant dense<0.000000e+00> : vector<8x32xf32>
    %175 = tpu.matmul %173, %174, %cst_64 {dimension_numbers = #tpu.dot_dimension_numbers<[1], [0], [0], [1], [0, 0, 1, 1], [], []>} : vector<8x8xbf16>, vector<8x32xbf16>, vector<8x32xf32> -> vector<8x32xf32>
    %176 = arith.addf %149, %175 : vector<8x32xf32>
    %177 = vector.shape_cast %46 : vector<32xf32> to vector<1x32xf32>
    %178 = vector.broadcast %177 : vector<1x32xf32> to vector<8x32xf32>
    %179 = arith.addf %176, %178 : vector<8x32xf32>
    %180 = arith.addf %1, %179 : vector<8x32xf32>
    %c0_65 = arith.constant 0 : index
    %c0_66 = arith.constant 0 : index
    %181 = vector.load %arg27[%c0_65, %c0_66] : memref<1x32xf32, #tpu.memory_space<vmem>>, vector<1x32xf32>
    %182 = vector.shape_cast %181 : vector<1x32xf32> to vector<32xf32>
    %c0_67 = arith.constant 0 : index
    %c0_68 = arith.constant 0 : index
    %183 = vector.load %arg28[%c0_67, %c0_68] : memref<1x32xf32, #tpu.memory_space<vmem>>, vector<1x32xf32>
    %184 = vector.shape_cast %183 : vector<1x32xf32> to vector<32xf32>
    %cst_69 = arith.constant dense<0.000000e+00> : vector<8xf32>
    %185 = vector.multi_reduction <add>, %180, %cst_69 [1] : vector<8x32xf32> to vector<8xf32>
    %186 = vector.shape_cast %185 : vector<8xf32> to vector<8x1xf32>
    %cst_70 = arith.constant 3.200000e+01 : f32
    %187 = vector.broadcast %cst_70 : f32 to vector<8x1xf32>
    %188 = arith.divf %186, %187 : vector<8x1xf32>
    %189 = vector.broadcast %188 : vector<8x1xf32> to vector<8x32xf32>
    %190 = arith.subf %180, %189 : vector<8x32xf32>
    %191 = arith.mulf %190, %190 : vector<8x32xf32>
    %cst_71 = arith.constant dense<0.000000e+00> : vector<8xf32>
    %192 = vector.multi_reduction <add>, %191, %cst_71 [1] : vector<8x32xf32> to vector<8xf32>
    %193 = vector.shape_cast %192 : vector<8xf32> to vector<8x1xf32>
    %cst_72 = arith.constant 3.100000e+01 : f32
    %194 = vector.broadcast %cst_72 : f32 to vector<8x1xf32>
    %195 = arith.divf %193, %194 : vector<8x1xf32>
    %196 = math.sqrt %195 : vector<8x1xf32>
    %cst_73 = arith.constant 9.99999997E-7 : f32
    %197 = vector.broadcast %cst_73 : f32 to vector<8x1xf32>
    %198 = arith.addf %196, %197 : vector<8x1xf32>
    %199 = tpu.reciprocal %198 {approx = true} : vector<8x1xf32> -> vector<8x1xf32>
    %200 = vector.broadcast %188 : vector<8x1xf32> to vector<8x32xf32>
    %201 = arith.subf %180, %200 : vector<8x32xf32>
    %202 = vector.shape_cast %182 : vector<32xf32> to vector<1x32xf32>
    %203 = vector.broadcast %202 : vector<1x32xf32> to vector<8x32xf32>
    %204 = arith.mulf %203, %201 : vector<8x32xf32>
    %205 = vector.broadcast %199 : vector<8x1xf32> to vector<8x32xf32>
    %206 = arith.mulf %204, %205 : vector<8x32xf32>
    %207 = vector.shape_cast %184 : vector<32xf32> to vector<1x32xf32>
    %208 = vector.broadcast %207 : vector<1x32xf32> to vector<8x32xf32>
    %209 = arith.addf %206, %208 : vector<8x32xf32>
    %c0_74 = arith.constant 0 : index
    %c0_75 = arith.constant 0 : index
    %c0_76 = arith.constant 0 : index
    %210 = vector.load %arg4[%c0_74, %c0_75, %c0_76] : memref<1x8x8xf32, #tpu.memory_space<vmem>>, vector<1x8x8xf32>
    %211 = vector.shape_cast %210 : vector<1x8x8xf32> to vector<8x8xf32>
    %c0_77 = arith.constant 0 : index
    %c0_78 = arith.constant 0 : index
    %212 = vector.load %arg13[%c0_77, %c0_78] : memref<32x32xf32, #tpu.memory_space<vmem>>, vector<32x32xf32>
    %c0_79 = arith.constant 0 : index
    %c0_80 = arith.constant 0 : index
    %213 = vector.load %arg14[%c0_79, %c0_80] : memref<1x32xf32, #tpu.memory_space<vmem>>, vector<1x32xf32>
    %214 = vector.shape_cast %213 : vector<1x32xf32> to vector<32xf32>
    %c0_81 = arith.constant 0 : index
    %c0_82 = arith.constant 0 : index
    %215 = vector.load %arg15[%c0_81, %c0_82] : memref<32x32xf32, #tpu.memory_space<vmem>>, vector<32x32xf32>
    %c0_83 = arith.constant 0 : index
    %c0_84 = arith.constant 0 : index
    %216 = vector.load %arg16[%c0_83, %c0_84] : memref<1x32xf32, #tpu.memory_space<vmem>>, vector<1x32xf32>
    %217 = vector.shape_cast %216 : vector<1x32xf32> to vector<32xf32>
    %c0_85 = arith.constant 0 : index
    %c0_86 = arith.constant 0 : index
    %218 = vector.load %arg17[%c0_85, %c0_86] : memref<32x32xf32, #tpu.memory_space<vmem>>, vector<32x32xf32>
    %c0_87 = arith.constant 0 : index
    %c0_88 = arith.constant 0 : index
    %219 = vector.load %arg18[%c0_87, %c0_88] : memref<1x32xf32, #tpu.memory_space<vmem>>, vector<1x32xf32>
    %220 = vector.shape_cast %219 : vector<1x32xf32> to vector<32xf32>
    %c0_89 = arith.constant 0 : index
    %c0_90 = arith.constant 0 : index
    %221 = vector.load %arg19[%c0_89, %c0_90] : memref<32x32xf32, #tpu.memory_space<vmem>>, vector<32x32xf32>
    %c0_91 = arith.constant 0 : index
    %c0_92 = arith.constant 0 : index
    %222 = vector.load %arg20[%c0_91, %c0_92] : memref<1x32xf32, #tpu.memory_space<vmem>>, vector<1x32xf32>
    %223 = vector.shape_cast %222 : vector<1x32xf32> to vector<32xf32>
    %224 = arith.truncf %209 : vector<8x32xf32> to vector<8x32xbf16>
    %225 = arith.truncf %212 : vector<32x32xf32> to vector<32x32xbf16>
    %cst_93 = arith.constant dense<0.000000e+00> : vector<8x32xf32>
    %226 = tpu.matmul %224, %225, %cst_93 {dimension_numbers = #tpu.dot_dimension_numbers<[1], [0], [0], [1], [0, 0, 1, 1], [], []>} : vector<8x32xbf16>, vector<32x32xbf16>, vector<8x32xf32> -> vector<8x32xf32>
    %227 = vector.shape_cast %214 : vector<32xf32> to vector<1x32xf32>
    %228 = vector.broadcast %227 : vector<1x32xf32> to vector<8x32xf32>
    %229 = arith.addf %226, %228 : vector<8x32xf32>
    %230 = arith.truncf %3 : vector<8x32xf32> to vector<8x32xbf16>
    %231 = arith.truncf %215 : vector<32x32xf32> to vector<32x32xbf16>
    %cst_94 = arith.constant dense<0.000000e+00> : vector<8x32xf32>
    %232 = tpu.matmul %230, %231, %cst_94 {dimension_numbers = #tpu.dot_dimension_numbers<[1], [0], [0], [1], [0, 0, 1, 1], [], []>} : vector<8x32xbf16>, vector<32x32xbf16>, vector<8x32xf32> -> vector<8x32xf32>
    %233 = vector.shape_cast %217 : vector<32xf32> to vector<1x32xf32>
    %234 = vector.broadcast %233 : vector<1x32xf32> to vector<8x32xf32>
    %235 = arith.addf %232, %234 : vector<8x32xf32>
    %236 = arith.truncf %3 : vector<8x32xf32> to vector<8x32xbf16>
    %237 = arith.truncf %218 : vector<32x32xf32> to vector<32x32xbf16>
    %cst_95 = arith.constant dense<0.000000e+00> : vector<8x32xf32>
    %238 = tpu.matmul %236, %237, %cst_95 {dimension_numbers = #tpu.dot_dimension_numbers<[1], [0], [0], [1], [0, 0, 1, 1], [], []>} : vector<8x32xbf16>, vector<32x32xbf16>, vector<8x32xf32> -> vector<8x32xf32>
    %239 = vector.shape_cast %220 : vector<32xf32> to vector<1x32xf32>
    %240 = vector.broadcast %239 : vector<1x32xf32> to vector<8x32xf32>
    %241 = arith.addf %238, %240 : vector<8x32xf32>
    %cst_96 = arith.constant 0.000000e+00 : f32
    %242 = vector.broadcast %cst_96 : f32 to vector<8x8xf32>
    %243 = arith.cmpf oeq, %211, %242 : vector<8x8xf32>
    %244 = arith.truncf %221 : vector<32x32xf32> to vector<32x32xbf16>
    %cst_97 = arith.constant 0.000000e+00 : f32
    %245 = vector.broadcast %cst_97 : f32 to vector<8x32xf32>
    %246 = vector.extract_strided_slice %229 {offsets = [0, 0], sizes = [8, 8], strides = [1, 1]} : vector<8x32xf32> to vector<8x8xf32>
    %247 = vector.extract_strided_slice %235 {offsets = [0, 0], sizes = [8, 8], strides = [1, 1]} : vector<8x32xf32> to vector<8x8xf32>
    %248 = vector.extract_strided_slice %241 {offsets = [0, 0], sizes = [8, 8], strides = [1, 1]} : vector<8x32xf32> to vector<8x8xf32>
    %249 = arith.truncf %246 : vector<8x8xf32> to vector<8x8xbf16>
    %250 = arith.truncf %247 : vector<8x8xf32> to vector<8x8xbf16>
    %cst_98 = arith.constant dense<0.000000e+00> : vector<8x8xf32>
    %251 = tpu.matmul %249, %250, %cst_98 {dimension_numbers = #tpu.dot_dimension_numbers<[1], [1], [0], [0], [0, 0, 1, 0], [], []>} : vector<8x8xbf16>, vector<8x8xbf16>, vector<8x8xf32> -> vector<8x8xf32>
    %cst_99 = arith.constant 0.353553385 : f32
    %252 = vector.broadcast %cst_99 : f32 to vector<8x8xf32>
    %253 = arith.mulf %251, %252 : vector<8x8xf32>
    %cst_100 = arith.constant -1.000000e+09 : f32
    %254 = vector.broadcast %cst_100 : f32 to vector<8x8xf32>
    %255 = arith.select %243, %254, %253 : vector<8x8xi1>, vector<8x8xf32>
    %cst_101 = arith.constant dense<0xFF800000> : vector<8xf32>
    %256 = vector.multi_reduction <maximumf>, %255, %cst_101 [1] : vector<8x8xf32> to vector<8xf32>
    %257 = vector.shape_cast %256 : vector<8xf32> to vector<8x1xf32>
    %258 = vector.broadcast %257 : vector<8x1xf32> to vector<8x8xf32>
    %259 = arith.subf %255, %258 : vector<8x8xf32>
    %260 = math.exp %259 : vector<8x8xf32>
    %cst_102 = arith.constant dense<0.000000e+00> : vector<8xf32>
    %261 = vector.multi_reduction <add>, %260, %cst_102 [1] : vector<8x8xf32> to vector<8xf32>
    %262 = vector.shape_cast %261 : vector<8xf32> to vector<8x1xf32>
    %263 = tpu.reciprocal %262 {approx = true} : vector<8x1xf32> -> vector<8x1xf32>
    %264 = vector.broadcast %263 : vector<8x1xf32> to vector<8x8xf32>
    %265 = arith.mulf %260, %264 : vector<8x8xf32>
    %266 = arith.truncf %265 : vector<8x8xf32> to vector<8x8xbf16>
    %267 = arith.truncf %248 : vector<8x8xf32> to vector<8x8xbf16>
    %cst_103 = arith.constant dense<0.000000e+00> : vector<8x8xf32>
    %268 = tpu.matmul %266, %267, %cst_103 {dimension_numbers = #tpu.dot_dimension_numbers<[1], [0], [0], [1], [0, 0, 1, 1], [], []>} : vector<8x8xbf16>, vector<8x8xbf16>, vector<8x8xf32> -> vector<8x8xf32>
    %269 = arith.truncf %268 : vector<8x8xf32> to vector<8x8xbf16>
    %270 = vector.extract_strided_slice %244 {offsets = [0, 0], sizes = [8, 32], strides = [1, 1]} : vector<32x32xbf16> to vector<8x32xbf16>
    %cst_104 = arith.constant dense<0.000000e+00> : vector<8x32xf32>
    %271 = tpu.matmul %269, %270, %cst_104 {dimension_numbers = #tpu.dot_dimension_numbers<[1], [0], [0], [1], [0, 0, 1, 1], [], []>} : vector<8x8xbf16>, vector<8x32xbf16>, vector<8x32xf32> -> vector<8x32xf32>
    %272 = arith.addf %245, %271 : vector<8x32xf32>
    %273 = vector.extract_strided_slice %229 {offsets = [0, 8], sizes = [8, 8], strides = [1, 1]} : vector<8x32xf32> to vector<8x8xf32>
    %274 = vector.extract_strided_slice %235 {offsets = [0, 8], sizes = [8, 8], strides = [1, 1]} : vector<8x32xf32> to vector<8x8xf32>
    %275 = vector.extract_strided_slice %241 {offsets = [0, 8], sizes = [8, 8], strides = [1, 1]} : vector<8x32xf32> to vector<8x8xf32>
    %276 = arith.truncf %273 : vector<8x8xf32> to vector<8x8xbf16>
    %277 = arith.truncf %274 : vector<8x8xf32> to vector<8x8xbf16>
    %cst_105 = arith.constant dense<0.000000e+00> : vector<8x8xf32>
    %278 = tpu.matmul %276, %277, %cst_105 {dimension_numbers = #tpu.dot_dimension_numbers<[1], [1], [0], [0], [0, 0, 1, 0], [], []>} : vector<8x8xbf16>, vector<8x8xbf16>, vector<8x8xf32> -> vector<8x8xf32>
    %cst_106 = arith.constant 0.353553385 : f32
    %279 = vector.broadcast %cst_106 : f32 to vector<8x8xf32>
    %280 = arith.mulf %278, %279 : vector<8x8xf32>
    %cst_107 = arith.constant -1.000000e+09 : f32
    %281 = vector.broadcast %cst_107 : f32 to vector<8x8xf32>
    %282 = arith.select %243, %281, %280 : vector<8x8xi1>, vector<8x8xf32>
    %cst_108 = arith.constant dense<0xFF800000> : vector<8xf32>
    %283 = vector.multi_reduction <maximumf>, %282, %cst_108 [1] : vector<8x8xf32> to vector<8xf32>
    %284 = vector.shape_cast %283 : vector<8xf32> to vector<8x1xf32>
    %285 = vector.broadcast %284 : vector<8x1xf32> to vector<8x8xf32>
    %286 = arith.subf %282, %285 : vector<8x8xf32>
    %287 = math.exp %286 : vector<8x8xf32>
    %cst_109 = arith.constant dense<0.000000e+00> : vector<8xf32>
    %288 = vector.multi_reduction <add>, %287, %cst_109 [1] : vector<8x8xf32> to vector<8xf32>
    %289 = vector.shape_cast %288 : vector<8xf32> to vector<8x1xf32>
    %290 = tpu.reciprocal %289 {approx = true} : vector<8x1xf32> -> vector<8x1xf32>
    %291 = vector.broadcast %290 : vector<8x1xf32> to vector<8x8xf32>
    %292 = arith.mulf %287, %291 : vector<8x8xf32>
    %293 = arith.truncf %292 : vector<8x8xf32> to vector<8x8xbf16>
    %294 = arith.truncf %275 : vector<8x8xf32> to vector<8x8xbf16>
    %cst_110 = arith.constant dense<0.000000e+00> : vector<8x8xf32>
    %295 = tpu.matmul %293, %294, %cst_110 {dimension_numbers = #tpu.dot_dimension_numbers<[1], [0], [0], [1], [0, 0, 1, 1], [], []>} : vector<8x8xbf16>, vector<8x8xbf16>, vector<8x8xf32> -> vector<8x8xf32>
    %296 = arith.truncf %295 : vector<8x8xf32> to vector<8x8xbf16>
    %297 = vector.extract_strided_slice %244 {offsets = [8, 0], sizes = [8, 32], strides = [1, 1]} : vector<32x32xbf16> to vector<8x32xbf16>
    %cst_111 = arith.constant dense<0.000000e+00> : vector<8x32xf32>
    %298 = tpu.matmul %296, %297, %cst_111 {dimension_numbers = #tpu.dot_dimension_numbers<[1], [0], [0], [1], [0, 0, 1, 1], [], []>} : vector<8x8xbf16>, vector<8x32xbf16>, vector<8x32xf32> -> vector<8x32xf32>
    %299 = arith.addf %272, %298 : vector<8x32xf32>
    %300 = vector.extract_strided_slice %229 {offsets = [0, 16], sizes = [8, 8], strides = [1, 1]} : vector<8x32xf32> to vector<8x8xf32>
    %301 = vector.extract_strided_slice %235 {offsets = [0, 16], sizes = [8, 8], strides = [1, 1]} : vector<8x32xf32> to vector<8x8xf32>
    %302 = vector.extract_strided_slice %241 {offsets = [0, 16], sizes = [8, 8], strides = [1, 1]} : vector<8x32xf32> to vector<8x8xf32>
    %303 = arith.truncf %300 : vector<8x8xf32> to vector<8x8xbf16>
    %304 = arith.truncf %301 : vector<8x8xf32> to vector<8x8xbf16>
    %cst_112 = arith.constant dense<0.000000e+00> : vector<8x8xf32>
    %305 = tpu.matmul %303, %304, %cst_112 {dimension_numbers = #tpu.dot_dimension_numbers<[1], [1], [0], [0], [0, 0, 1, 0], [], []>} : vector<8x8xbf16>, vector<8x8xbf16>, vector<8x8xf32> -> vector<8x8xf32>
    %cst_113 = arith.constant 0.353553385 : f32
    %306 = vector.broadcast %cst_113 : f32 to vector<8x8xf32>
    %307 = arith.mulf %305, %306 : vector<8x8xf32>
    %cst_114 = arith.constant -1.000000e+09 : f32
    %308 = vector.broadcast %cst_114 : f32 to vector<8x8xf32>
    %309 = arith.select %243, %308, %307 : vector<8x8xi1>, vector<8x8xf32>
    %cst_115 = arith.constant dense<0xFF800000> : vector<8xf32>
    %310 = vector.multi_reduction <maximumf>, %309, %cst_115 [1] : vector<8x8xf32> to vector<8xf32>
    %311 = vector.shape_cast %310 : vector<8xf32> to vector<8x1xf32>
    %312 = vector.broadcast %311 : vector<8x1xf32> to vector<8x8xf32>
    %313 = arith.subf %309, %312 : vector<8x8xf32>
    %314 = math.exp %313 : vector<8x8xf32>
    %cst_116 = arith.constant dense<0.000000e+00> : vector<8xf32>
    %315 = vector.multi_reduction <add>, %314, %cst_116 [1] : vector<8x8xf32> to vector<8xf32>
    %316 = vector.shape_cast %315 : vector<8xf32> to vector<8x1xf32>
    %317 = tpu.reciprocal %316 {approx = true} : vector<8x1xf32> -> vector<8x1xf32>
    %318 = vector.broadcast %317 : vector<8x1xf32> to vector<8x8xf32>
    %319 = arith.mulf %314, %318 : vector<8x8xf32>
    %320 = arith.truncf %319 : vector<8x8xf32> to vector<8x8xbf16>
    %321 = arith.truncf %302 : vector<8x8xf32> to vector<8x8xbf16>
    %cst_117 = arith.constant dense<0.000000e+00> : vector<8x8xf32>
    %322 = tpu.matmul %320, %321, %cst_117 {dimension_numbers = #tpu.dot_dimension_numbers<[1], [0], [0], [1], [0, 0, 1, 1], [], []>} : vector<8x8xbf16>, vector<8x8xbf16>, vector<8x8xf32> -> vector<8x8xf32>
    %323 = arith.truncf %322 : vector<8x8xf32> to vector<8x8xbf16>
    %324 = vector.extract_strided_slice %244 {offsets = [16, 0], sizes = [8, 32], strides = [1, 1]} : vector<32x32xbf16> to vector<8x32xbf16>
    %cst_118 = arith.constant dense<0.000000e+00> : vector<8x32xf32>
    %325 = tpu.matmul %323, %324, %cst_118 {dimension_numbers = #tpu.dot_dimension_numbers<[1], [0], [0], [1], [0, 0, 1, 1], [], []>} : vector<8x8xbf16>, vector<8x32xbf16>, vector<8x32xf32> -> vector<8x32xf32>
    %326 = arith.addf %299, %325 : vector<8x32xf32>
    %327 = vector.extract_strided_slice %229 {offsets = [0, 24], sizes = [8, 8], strides = [1, 1]} : vector<8x32xf32> to vector<8x8xf32>
    %328 = vector.extract_strided_slice %235 {offsets = [0, 24], sizes = [8, 8], strides = [1, 1]} : vector<8x32xf32> to vector<8x8xf32>
    %329 = vector.extract_strided_slice %241 {offsets = [0, 24], sizes = [8, 8], strides = [1, 1]} : vector<8x32xf32> to vector<8x8xf32>
    %330 = arith.truncf %327 : vector<8x8xf32> to vector<8x8xbf16>
    %331 = arith.truncf %328 : vector<8x8xf32> to vector<8x8xbf16>
    %cst_119 = arith.constant dense<0.000000e+00> : vector<8x8xf32>
    %332 = tpu.matmul %330, %331, %cst_119 {dimension_numbers = #tpu.dot_dimension_numbers<[1], [1], [0], [0], [0, 0, 1, 0], [], []>} : vector<8x8xbf16>, vector<8x8xbf16>, vector<8x8xf32> -> vector<8x8xf32>
    %cst_120 = arith.constant 0.353553385 : f32
    %333 = vector.broadcast %cst_120 : f32 to vector<8x8xf32>
    %334 = arith.mulf %332, %333 : vector<8x8xf32>
    %cst_121 = arith.constant -1.000000e+09 : f32
    %335 = vector.broadcast %cst_121 : f32 to vector<8x8xf32>
    %336 = arith.select %243, %335, %334 : vector<8x8xi1>, vector<8x8xf32>
    %cst_122 = arith.constant dense<0xFF800000> : vector<8xf32>
    %337 = vector.multi_reduction <maximumf>, %336, %cst_122 [1] : vector<8x8xf32> to vector<8xf32>
    %338 = vector.shape_cast %337 : vector<8xf32> to vector<8x1xf32>
    %339 = vector.broadcast %338 : vector<8x1xf32> to vector<8x8xf32>
    %340 = arith.subf %336, %339 : vector<8x8xf32>
    %341 = math.exp %340 : vector<8x8xf32>
    %cst_123 = arith.constant dense<0.000000e+00> : vector<8xf32>
    %342 = vector.multi_reduction <add>, %341, %cst_123 [1] : vector<8x8xf32> to vector<8xf32>
    %343 = vector.shape_cast %342 : vector<8xf32> to vector<8x1xf32>
    %344 = tpu.reciprocal %343 {approx = true} : vector<8x1xf32> -> vector<8x1xf32>
    %345 = vector.broadcast %344 : vector<8x1xf32> to vector<8x8xf32>
    %346 = arith.mulf %341, %345 : vector<8x8xf32>
    %347 = arith.truncf %346 : vector<8x8xf32> to vector<8x8xbf16>
    %348 = arith.truncf %329 : vector<8x8xf32> to vector<8x8xbf16>
    %cst_124 = arith.constant dense<0.000000e+00> : vector<8x8xf32>
    %349 = tpu.matmul %347, %348, %cst_124 {dimension_numbers = #tpu.dot_dimension_numbers<[1], [0], [0], [1], [0, 0, 1, 1], [], []>} : vector<8x8xbf16>, vector<8x8xbf16>, vector<8x8xf32> -> vector<8x8xf32>
    %350 = arith.truncf %349 : vector<8x8xf32> to vector<8x8xbf16>
    %351 = vector.extract_strided_slice %244 {offsets = [24, 0], sizes = [8, 32], strides = [1, 1]} : vector<32x32xbf16> to vector<8x32xbf16>
    %cst_125 = arith.constant dense<0.000000e+00> : vector<8x32xf32>
    %352 = tpu.matmul %350, %351, %cst_125 {dimension_numbers = #tpu.dot_dimension_numbers<[1], [0], [0], [1], [0, 0, 1, 1], [], []>} : vector<8x8xbf16>, vector<8x32xbf16>, vector<8x32xf32> -> vector<8x32xf32>
    %353 = arith.addf %326, %352 : vector<8x32xf32>
    %354 = vector.shape_cast %223 : vector<32xf32> to vector<1x32xf32>
    %355 = vector.broadcast %354 : vector<1x32xf32> to vector<8x32xf32>
    %356 = arith.addf %353, %355 : vector<8x32xf32>
    %357 = arith.addf %180, %356 : vector<8x32xf32>
    %c0_126 = arith.constant 0 : index
    %c0_127 = arith.constant 0 : index
    %358 = vector.load %arg29[%c0_126, %c0_127] : memref<1x32xf32, #tpu.memory_space<vmem>>, vector<1x32xf32>
    %359 = vector.shape_cast %358 : vector<1x32xf32> to vector<32xf32>
    %c0_128 = arith.constant 0 : index
    %c0_129 = arith.constant 0 : index
    %360 = vector.load %arg30[%c0_128, %c0_129] : memref<1x32xf32, #tpu.memory_space<vmem>>, vector<1x32xf32>
    %361 = vector.shape_cast %360 : vector<1x32xf32> to vector<32xf32>
    %cst_130 = arith.constant dense<0.000000e+00> : vector<8xf32>
    %362 = vector.multi_reduction <add>, %357, %cst_130 [1] : vector<8x32xf32> to vector<8xf32>
    %363 = vector.shape_cast %362 : vector<8xf32> to vector<8x1xf32>
    %cst_131 = arith.constant 3.200000e+01 : f32
    %364 = vector.broadcast %cst_131 : f32 to vector<8x1xf32>
    %365 = arith.divf %363, %364 : vector<8x1xf32>
    %366 = vector.broadcast %365 : vector<8x1xf32> to vector<8x32xf32>
    %367 = arith.subf %357, %366 : vector<8x32xf32>
    %368 = arith.mulf %367, %367 : vector<8x32xf32>
    %cst_132 = arith.constant dense<0.000000e+00> : vector<8xf32>
    %369 = vector.multi_reduction <add>, %368, %cst_132 [1] : vector<8x32xf32> to vector<8xf32>
    %370 = vector.shape_cast %369 : vector<8xf32> to vector<8x1xf32>
    %cst_133 = arith.constant 3.100000e+01 : f32
    %371 = vector.broadcast %cst_133 : f32 to vector<8x1xf32>
    %372 = arith.divf %370, %371 : vector<8x1xf32>
    %373 = math.sqrt %372 : vector<8x1xf32>
    %cst_134 = arith.constant 9.99999997E-7 : f32
    %374 = vector.broadcast %cst_134 : f32 to vector<8x1xf32>
    %375 = arith.addf %373, %374 : vector<8x1xf32>
    %376 = tpu.reciprocal %375 {approx = true} : vector<8x1xf32> -> vector<8x1xf32>
    %377 = vector.broadcast %365 : vector<8x1xf32> to vector<8x32xf32>
    %378 = arith.subf %357, %377 : vector<8x32xf32>
    %379 = vector.shape_cast %359 : vector<32xf32> to vector<1x32xf32>
    %380 = vector.broadcast %379 : vector<1x32xf32> to vector<8x32xf32>
    %381 = arith.mulf %380, %378 : vector<8x32xf32>
    %382 = vector.broadcast %376 : vector<8x1xf32> to vector<8x32xf32>
    %383 = arith.mulf %381, %382 : vector<8x32xf32>
    %384 = vector.shape_cast %361 : vector<32xf32> to vector<1x32xf32>
    %385 = vector.broadcast %384 : vector<1x32xf32> to vector<8x32xf32>
    %386 = arith.addf %383, %385 : vector<8x32xf32>
    %c0_135 = arith.constant 0 : index
    %c0_136 = arith.constant 0 : index
    %387 = vector.load %arg21[%c0_135, %c0_136] : memref<32x64xf32, #tpu.memory_space<vmem>>, vector<32x64xf32>
    %c0_137 = arith.constant 0 : index
    %c0_138 = arith.constant 0 : index
    %388 = vector.load %arg22[%c0_137, %c0_138] : memref<1x64xf32, #tpu.memory_space<vmem>>, vector<1x64xf32>
    %389 = vector.shape_cast %388 : vector<1x64xf32> to vector<64xf32>
    %390 = arith.truncf %386 : vector<8x32xf32> to vector<8x32xbf16>
    %391 = arith.truncf %387 : vector<32x64xf32> to vector<32x64xbf16>
    %cst_139 = arith.constant dense<0.000000e+00> : vector<8x64xf32>
    %392 = tpu.matmul %390, %391, %cst_139 {dimension_numbers = #tpu.dot_dimension_numbers<[1], [0], [0], [1], [0, 0, 1, 1], [], []>} : vector<8x32xbf16>, vector<32x64xbf16>, vector<8x64xf32> -> vector<8x64xf32>
    %393 = vector.shape_cast %389 : vector<64xf32> to vector<1x64xf32>
    %394 = vector.broadcast %393 : vector<1x64xf32> to vector<8x64xf32>
    %395 = arith.addf %392, %394 : vector<8x64xf32>
    %cst_140 = arith.constant 0.000000e+00 : f32
    %396 = vector.broadcast %cst_140 : f32 to vector<8x64xf32>
    %397 = arith.maximumf %395, %396 : vector<8x64xf32>
    %c0_141 = arith.constant 0 : index
    %c0_142 = arith.constant 0 : index
    %398 = vector.load %arg23[%c0_141, %c0_142] : memref<64x32xf32, #tpu.memory_space<vmem>>, vector<64x32xf32>
    %c0_143 = arith.constant 0 : index
    %c0_144 = arith.constant 0 : index
    %399 = vector.load %arg24[%c0_143, %c0_144] : memref<1x32xf32, #tpu.memory_space<vmem>>, vector<1x32xf32>
    %400 = vector.shape_cast %399 : vector<1x32xf32> to vector<32xf32>
    %401 = arith.truncf %397 : vector<8x64xf32> to vector<8x64xbf16>
    %402 = arith.truncf %398 : vector<64x32xf32> to vector<64x32xbf16>
    %cst_145 = arith.constant dense<0.000000e+00> : vector<8x32xf32>
    %403 = tpu.matmul %401, %402, %cst_145 {dimension_numbers = #tpu.dot_dimension_numbers<[1], [0], [0], [1], [0, 0, 1, 1], [], []>} : vector<8x64xbf16>, vector<64x32xbf16>, vector<8x32xf32> -> vector<8x32xf32>
    %404 = vector.shape_cast %400 : vector<32xf32> to vector<1x32xf32>
    %405 = vector.broadcast %404 : vector<1x32xf32> to vector<8x32xf32>
    %406 = arith.addf %403, %405 : vector<8x32xf32>
    %407 = arith.addf %357, %406 : vector<8x32xf32>
    %c0_146 = arith.constant 0 : index
    %c0_147 = arith.constant 0 : index
    %c0_148 = arith.constant 0 : index
    %408 = vector.load %arg31[%c0_146, %c0_147, %c0_148] : memref<1x8x32xf32, #tpu.memory_space<vmem>>, vector<1x8x32xf32>
    %409 = vector.shape_cast %408 : vector<1x8x32xf32> to vector<8x32xf32>
    %410 = vector.shape_cast %407 : vector<8x32xf32> to vector<1x8x32xf32>
    tpu.vector_store %arg31[%c0_146, %c0_147, %c0_148], %410 {strides = array<i32>} : memref<1x8x32xf32, #tpu.memory_space<vmem>>, vector<1x8x32xf32>,
    return
  }
  func.func @transform_0(%arg0: i32) -> (i32, i32, i32) {
    %c0_i32 = arith.constant 0 : i32
    %c0_i32_0 = arith.constant 0 : i32
    %c0_i32_1 = arith.constant 0 : i32
    return %arg0, %c0_i32, %c0_i32_0 : i32, i32, i32
  }
  func.func @transform_1(%arg0: i32) -> (i32, i32, i32) {
    %c0_i32 = arith.constant 0 : i32
    %c0_i32_0 = arith.constant 0 : i32
    %c0_i32_1 = arith.constant 0 : i32
    return %arg0, %c0_i32, %c0_i32_0 : i32, i32, i32
  }
  func.func @transform_2(%arg0: i32) -> (i32, i32, i32) {
    %c0_i32 = arith.constant 0 : i32
    %c0_i32_0 = arith.constant 0 : i32
    %c0_i32_1 = arith.constant 0 : i32
    return %arg0, %c0_i32, %c0_i32_0 : i32, i32, i32
  }
  func.func @transform_3(%arg0: i32) -> (i32, i32, i32) {
    %c0_i32 = arith.constant 0 : i32
    %c0_i32_0 = arith.constant 0 : i32
    %c0_i32_1 = arith.constant 0 : i32
    return %arg0, %c0_i32, %c0_i32_0 : i32, i32, i32
  }
  func.func @transform_4(%arg0: i32) -> (i32, i32) {
    %c0_i32 = arith.constant 0 : i32
    %c0_i32_0 = arith.constant 0 : i32
    %c0_i32_1 = arith.constant 0 : i32
    return %c0_i32, %c0_i32_0 : i32, i32
  }
  func.func @transform_5(%arg0: i32) -> (i32, i32) {
    %c0_i32 = arith.constant 0 : i32
    %c0_i32_0 = arith.constant 0 : i32
    %c0_i32_1 = arith.constant 0 : i32
    return %c0_i32, %c0_i32_0 : i32, i32
  }
  func.func @transform_6(%arg0: i32) -> (i32, i32) {
    %c0_i32 = arith.constant 0 : i32
    %c0_i32_0 = arith.constant 0 : i32
    %c0_i32_1 = arith.constant 0 : i32
    return %c0_i32, %c0_i32_0 : i32, i32
  }
  func.func @transform_7(%arg0: i32) -> (i32, i32) {
    %c0_i32 = arith.constant 0 : i32
    %c0_i32_0 = arith.constant 0 : i32
    %c0_i32_1 = arith.constant 0 : i32
    return %c0_i32, %c0_i32_0 : i32, i32
  }
  func.func @transform_8(%arg0: i32) -> (i32, i32) {
    %c0_i32 = arith.constant 0 : i32
    %c0_i32_0 = arith.constant 0 : i32
    %c0_i32_1 = arith.constant 0 : i32
    return %c0_i32, %c0_i32_0 : i32, i32
  }
  func.func @transform_9(%arg0: i32) -> (i32, i32) {
    %c0_i32 = arith.constant 0 : i32
    %c0_i32_0 = arith.constant 0 : i32
    %c0_i32_1 = arith.constant 0 : i32
    return %c0_i32, %c0_i32_0 : i32, i32
  }
  func.func @transform_10(%arg0: i32) -> (i32, i32) {
    %c0_i32 = arith.constant 0 : i32
    %c0_i32_0 = arith.constant 0 : i32
    %c0_i32_1 = arith.constant 0 : i32
    return %c0_i32, %c0_i32_0 : i32, i32
  }
  func.func @transform_11(%arg0: i32) -> (i32, i32) {
    %c0_i32 = arith.constant 0 : i32
    %c0_i32_0 = arith.constant 0 : i32
    %c0_i32_1 = arith.constant 0 : i32
    return %c0_i32, %c0_i32_0 : i32, i32
  }
  func.func @transform_12(%arg0: i32) -> (i32, i32) {
    %c0_i32 = arith.constant 0 : i32
    %c0_i32_0 = arith.constant 0 : i32
    %c0_i32_1 = arith.constant 0 : i32
    return %c0_i32, %c0_i32_0 : i32, i32
  }
  func.func @transform_13(%arg0: i32) -> (i32, i32) {
    %c0_i32 = arith.constant 0 : i32
    %c0_i32_0 = arith.constant 0 : i32
    %c0_i32_1 = arith.constant 0 : i32
    return %c0_i32, %c0_i32_0 : i32, i32
  }
  func.func @transform_14(%arg0: i32) -> (i32, i32) {
    %c0_i32 = arith.constant 0 : i32
    %c0_i32_0 = arith.constant 0 : i32
    %c0_i32_1 = arith.constant 0 : i32
    return %c0_i32, %c0_i32_0 : i32, i32
  }
  func.func @transform_15(%arg0: i32) -> (i32, i32) {
    %c0_i32 = arith.constant 0 : i32
    %c0_i32_0 = arith.constant 0 : i32
    %c0_i32_1 = arith.constant 0 : i32
    return %c0_i32, %c0_i32_0 : i32, i32
  }
  func.func @transform_16(%arg0: i32) -> (i32, i32) {
    %c0_i32 = arith.constant 0 : i32
    %c0_i32_0 = arith.constant 0 : i32
    %c0_i32_1 = arith.constant 0 : i32
    return %c0_i32, %c0_i32_0 : i32, i32
  }
  func.func @transform_17(%arg0: i32) -> (i32, i32) {
    %c0_i32 = arith.constant 0 : i32
    %c0_i32_0 = arith.constant 0 : i32
    %c0_i32_1 = arith.constant 0 : i32
    return %c0_i32, %c0_i32_0 : i32, i32
  }
  func.func @transform_18(%arg0: i32) -> (i32, i32) {
    %c0_i32 = arith.constant 0 : i32
    %c0_i32_0 = arith.constant 0 : i32
    %c0_i32_1 = arith.constant 0 : i32
    return %c0_i32, %c0_i32_0 : i32, i32
  }
  func.func @transform_19(%arg0: i32) -> (i32, i32) {
    %c0_i32 = arith.constant 0 : i32
    %c0_i32_0 = arith.constant 0 : i32
    %c0_i32_1 = arith.constant 0 : i32
    return %c0_i32, %c0_i32_0 : i32, i32
  }
  func.func @transform_20(%arg0: i32) -> (i32, i32) {
    %c0_i32 = arith.constant 0 : i32
    %c0_i32_0 = arith.constant 0 : i32
    %c0_i32_1 = arith.constant 0 : i32
    return %c0_i32, %c0_i32_0 : i32, i32
  }
  func.func @transform_21(%arg0: i32) -> (i32, i32) {
    %c0_i32 = arith.constant 0 : i32
    %c0_i32_0 = arith.constant 0 : i32
    %c0_i32_1 = arith.constant 0 : i32
    return %c0_i32, %c0_i32_0 : i32, i32
  }
  func.func @transform_22(%arg0: i32) -> (i32, i32) {
    %c0_i32 = arith.constant 0 : i32
    %c0_i32_0 = arith.constant 0 : i32
    %c0_i32_1 = arith.constant 0 : i32
    return %c0_i32, %c0_i32_0 : i32, i32
  }
  func.func @transform_23(%arg0: i32) -> (i32, i32) {
    %c0_i32 = arith.constant 0 : i32
    %c0_i32_0 = arith.constant 0 : i32
    %c0_i32_1 = arith.constant 0 : i32
    return %c0_i32, %c0_i32_0 : i32, i32
  }
  func.func @transform_24(%arg0: i32) -> (i32, i32) {
    %c0_i32 = arith.constant 0 : i32
    %c0_i32_0 = arith.constant 0 : i32
    %c0_i32_1 = arith.constant 0 : i32
    return %c0_i32, %c0_i32_0 : i32, i32
  }
  func.func @transform_25(%arg0: i32) -> (i32, i32) {
    %c0_i32 = arith.constant 0 : i32
    %c0_i32_0 = arith.constant 0 : i32
    %c0_i32_1 = arith.constant 0 : i32
    return %c0_i32, %c0_i32_0 : i32, i32
  }
  func.func @transform_26(%arg0: i32) -> (i32, i32) {
    %c0_i32 = arith.constant 0 : i32
    %c0_i32_0 = arith.constant 0 : i32
    %c0_i32_1 = arith.constant 0 : i32
    return %c0_i32, %c0_i32_0 : i32, i32
  }
  func.func @transform_27(%arg0: i32) -> (i32, i32) {
    %c0_i32 = arith.constant 0 : i32
    %c0_i32_0 = arith.constant 0 : i32
    %c0_i32_1 = arith.constant 0 : i32
    return %c0_i32, %c0_i32_0 : i32, i32
  }
  func.func @transform_28(%arg0: i32) -> (i32, i32) {
    %c0_i32 = arith.constant 0 : i32
    %c0_i32_0 = arith.constant 0 : i32
    %c0_i32_1 = arith.constant 0 : i32
    return %c0_i32, %c0_i32_0 : i32, i32
  }
  func.func @transform_29(%arg0: i32) -> (i32, i32) {
    %c0_i32 = arith.constant 0 : i32
    %c0_i32_0 = arith.constant 0 : i32
    %c0_i32_1 = arith.constant 0 : i32
    return %c0_i32, %c0_i32_0 : i32, i32
  }
  func.func @transform_30(%arg0: i32) -> (i32, i32, i32) {
    %c0_i32 = arith.constant 0 : i32
    %c0_i32_0 = arith.constant 0 : i32
    %c0_i32_1 = arith.constant 0 : i32
    return %arg0, %c0_i32, %c0_i32_0 : i32, i32, i32
  }
}

</mosaic_0001>

<llo_original>
// kernel: decoder_layer.1
$region0: #{decoder_layer.1}
  #allocation0 [shape = 'u32[]', space=smem, size = 0x4, offset = 0x4, fixed_abs, tag = 'smem constant byte address 0x4 - core index']
  #allocation1 [shape = 'u32[72,128]{1,0:T(1,128)}', space=vmem, size = 0x9000, scoped, tag = 'internal scratch']
  %s0 = inlined_call_operand.smem [shape: u32[31], index: -1, kind: input, shape index: {}]
  %s1 = sld [smem:[%s0]]
  %s2 = scalar_lea.smem %s0, 1
  %s3 = sld [smem:[%s2]]
  %s4 = scalar_lea.smem %s0, 2
  %s5 = sld [smem:[%s4]]
  %s6 = scalar_lea.smem %s0, 3
  %s7 = sld [smem:[%s6]]
  %s8 = scalar_lea.smem %s0, 4
  %s9 = sld [smem:[%s8]]
  %s10 = scalar_lea.smem %s0, 5
  %s11 = sld [smem:[%s10]]
  %s12 = scalar_lea.smem %s0, 6
  %s13 = sld [smem:[%s12]]
  %s14 = scalar_lea.smem %s0, 7
  %s15 = sld [smem:[%s14]]
  %s16 = scalar_lea.smem %s0, 8
  %s17 = sld [smem:[%s16]]
  %s18 = scalar_lea.smem %s0, 9
  %s19 = sld [smem:[%s18]]
  %s20 = scalar_lea.smem %s0, 10
  %s21 = sld [smem:[%s20]]
  %s22 = scalar_lea.smem %s0, 11
  %s23 = sld [smem:[%s22]]
  %s24 = scalar_lea.smem %s0, 12
  %s25 = sld [smem:[%s24]]
  %s26 = scalar_lea.smem %s0, 13
  %s27 = sld [smem:[%s26]]
  %s28 = scalar_lea.smem %s0, 14
  %s29 = sld [smem:[%s28]]
  %s30 = scalar_lea.smem %s0, 15
  %s31 = sld [smem:[%s30]]
  %s32 = scalar_lea.smem %s0, 16
  %s33 = sld [smem:[%s32]]
  %s34 = scalar_lea.smem %s0, 17
  %s35 = sld [smem:[%s34]]
  %s36 = scalar_lea.smem %s0, 18
  %s37 = sld [smem:[%s36]]
  %s38 = scalar_lea.smem %s0, 19
  %s39 = sld [smem:[%s38]]
  %s40 = scalar_lea.smem %s0, 20
  %s41 = sld [smem:[%s40]]
  %s42 = scalar_lea.smem %s0, 21
  %s43 = sld [smem:[%s42]]
  %s44 = scalar_lea.smem %s0, 22
  %s45 = sld [smem:[%s44]]
  %s46 = scalar_lea.smem %s0, 23
  %s47 = sld [smem:[%s46]]
  %s48 = scalar_lea.smem %s0, 24
  %s49 = sld [smem:[%s48]]
  %s50 = scalar_lea.smem %s0, 25
  %s51 = sld [smem:[%s50]]
  %s52 = scalar_lea.smem %s0, 26
  %s53 = sld [smem:[%s52]]
  %s54 = scalar_lea.smem %s0, 27
  %s55 = sld [smem:[%s54]]
  %s56 = scalar_lea.smem %s0, 28
  %s57 = sld [smem:[%s56]]
  %s58 = scalar_lea.smem %s0, 29
  %s59 = sld [smem:[%s58]]
  %s60 = scalar_lea.smem %s0, 30
  %s61 = sld [smem:[%s60]]
  %s62 = sld [smem:[#allocation0]]
  $region205: #{decoder_layer.1} parent=0
    _
  %s64 = ssub.s32 1, %s62
  %s65 = scalar_select 0, %s64, %s62
  $region1: #{decoder_layer.1} parent=0
    #allocation2 [shape = 'u8[8192]{0}', space=vmem, size = 0x2000, scoped, tag = 'input window, operand 0']
    #allocation3 [shape = 's32[2]{0}', space=sflag, size = 0x8, scoped, tag = 'scoped memory for decoder_layer.1']
    #allocation4 [shape = 's32[2]{0}', space=sflag, size = 0x8, scoped, tag = 'scoped memory for decoder_layer.1']
    #allocation5 [shape = 'u8[8192]{0}', space=vmem, size = 0x2000, scoped, tag = 'input window, operand 1']
    #allocation6 [shape = 's32[2]{0}', space=sflag, size = 0x8, scoped, tag = 'scoped memory for decoder_layer.1']
    #allocation7 [shape = 'u8[8192]{0}', space=vmem, size = 0x2000, scoped, tag = 'input window, operand 2']
    #allocation8 [shape = 'u8[8192]{0}', space=vmem, size = 0x2000, scoped, tag = 'input window, operand 3']
    #allocation9 [shape = 's32[2]{0}', space=sflag, size = 0x8, scoped, tag = 'scoped memory for decoder_layer.1']
    #allocation10 [shape = 'u8[16384]{0}', space=vmem, size = 0x4000, scoped, tag = 'input window, operand 10, single buffered']
    #allocation11 [shape = 'u8[16384]{0}', space=vmem, size = 0x4000, scoped, tag = 'input window, operand 12, single buffered']
    #allocation12 [shape = 's32[1]{0}', space=sflag, size = 0x4, scoped, tag = 'scoped memory for decoder_layer.1']
    #allocation13 [shape = 'u8[16384]{0}', space=vmem, size = 0x4000, scoped, tag = 'input window, operand 14, single buffered']
    #allocation14 [shape = 'u8[512]{0}', space=vmem, size = 0x400, scoped, tag = 'input window, operand 15, single buffered']
    #allocation15 [shape = 's32[1]{0}', space=sflag, size = 0x4, scoped, tag = 'scoped memory for decoder_layer.1']
    #allocation16 [shape = 'u8[16384]{0}', space=vmem, size = 0x4000, scoped, tag = 'input window, operand 16, single buffered']
    #allocation17 [shape = 'u8[512]{0}', space=vmem, size = 0x400, scoped, tag = 'input window, operand 17, single buffered']
    #allocation18 [shape = 's32[1]{0}', space=sflag, size = 0x4, scoped, tag = 'scoped memory for decoder_layer.1']
    #allocation19 [shape = 'u8[16384]{0}', space=vmem, size = 0x4000, scoped, tag = 'input window, operand 18, single buffered']
    #allocation20 [shape = 'u8[512]{0}', space=vmem, size = 0x400, scoped, tag = 'input window, operand 19, single buffered']
    #allocation21 [shape = 's32[1]{0}', space=sflag, size = 0x4, scoped, tag = 'scoped memory for decoder_layer.1']
    #allocation22 [shape = 'u8[16384]{0}', space=vmem, size = 0x4000, scoped, tag = 'input window, operand 20, single buffered']
    #allocation23 [shape = 'u8[8192]{0}', space=vmem, size = 0x2000, scoped, tag = 'output window, operand 0']
    %66 = vsyncpa [#allocation3], 0
    %s67 = scalar_lea.sflag [#allocation3], 1
    %68 = vsyncpa %s67, 0
    %69 = vsyncpa [#allocation6], 0
    %s70 = scalar_lea.sflag [#allocation6], 1
    %71 = vsyncpa %s70, 0
    %72 = vsyncpa [#allocation9], 0
    %s73 = scalar_lea.sflag [#allocation9], 1
    %74 = vsyncpa %s73, 0
    %75 = vsyncpa [#allocation12], 0
    %76 = vsyncpa [#allocation15], 0
    %77 = vsyncpa [#allocation18], 0
    %78 = vsyncpa [#allocation21], 0
    %79 = vsyncpa [#allocation4], 0
    %s80 = scalar_lea.sflag [#allocation4], 1
    %81 = vsyncpa %s80, 0
    loop: start=0, step=1, limit=4
    $region2: #{decoder_layer.1} parent=1 // loop_pre_header
      _
    $region3: #{decoder_layer.1} parent=1 // loop_header
      %s83 = sphi 0, %s87
      %p84 = scmp.ge.s32.totalorder %s83, 4
      %s93 = sphi 0, %s95
      %s96 = sphi 0, %s93
      %s97 = sphi 0, %s96
      %s113 = sphi 0, %s97
      %s119 = sphi 0, %s121
      %s122 = sphi 0, %s119
      %s123 = sphi 0, %s122
      %s139 = sphi 0, %s123
      %s145 = sphi 0, %s147
      %s148 = sphi 0, %s145
      %s149 = sphi 0, %s148
      %s165 = sphi 0, %s149
      %s171 = sphi 0, %s173
      %s174 = sphi 0, %s171
      %s175 = sphi 0, %s174
      %s191 = sphi 0, %s175
      %s195 = sphi 0, %s195
      %s197 = sphi 0, %s195
      %s198 = sphi 0, %s197
      %s212 = sphi 0, %s198
      %s216 = sphi 0, %s216
      %s218 = sphi 0, %s216
      %s219 = sphi 0, %s218
      %s233 = sphi 0, %s219
      %s237 = sphi 0, %s237
      %s239 = sphi 0, %s237
      %s240 = sphi 0, %s239
      %s254 = sphi 0, %s240
      %s258 = sphi 0, %s258
      %s260 = sphi 0, %s258
      %s261 = sphi 0, %s260
      %s275 = sphi 0, %s261
      %s279 = sphi 0, %s279
      %s281 = sphi 0, %s279
      %s282 = sphi 0, %s281
      %s296 = sphi 0, %s282
      %s300 = sphi 0, %s300
      %s302 = sphi 0, %s300
      %s303 = sphi 0, %s302
      %s317 = sphi 0, %s303
      %s321 = sphi 0, %s321
      %s323 = sphi 0, %s321
      %s324 = sphi 0, %s323
      %s338 = sphi 0, %s324
      %s342 = sphi 0, %s342
      %s344 = sphi 0, %s342
      %s345 = sphi 0, %s344
      %s359 = sphi 0, %s345
      %s363 = sphi 0, %s363
      %s365 = sphi 0, %s363
      %s366 = sphi 0, %s365
      %s380 = sphi 0, %s366
      %s384 = sphi 0, %s384
      %s386 = sphi 0, %s384
      %s387 = sphi 0, %s386
      %s401 = sphi 0, %s387
      %s405 = sphi 0, %s405
      %s407 = sphi 0, %s405
      %s408 = sphi 0, %s407
      %s422 = sphi 0, %s408
      %s426 = sphi 0, %s426
      %s428 = sphi 0, %s426
      %s429 = sphi 0, %s428
      %s443 = sphi 0, %s429
      %s447 = sphi 0, %s447
      %s449 = sphi 0, %s447
      %s450 = sphi 0, %s449
      %s464 = sphi 0, %s450
      %s468 = sphi 0, %s468
      %s470 = sphi 0, %s468
      %s471 = sphi 0, %s470
      %s485 = sphi 0, %s471
      %s489 = sphi 0, %s489
      %s491 = sphi 0, %s489
      %s492 = sphi 0, %s491
      %s506 = sphi 0, %s492
      %s510 = sphi 0, %s510
      %s512 = sphi 0, %s510
      %s513 = sphi 0, %s512
      %s527 = sphi 0, %s513
      %s531 = sphi 0, %s531
      %s533 = sphi 0, %s531
      %s534 = sphi 0, %s533
      %s548 = sphi 0, %s534
      %s552 = sphi 0, %s552
      %s554 = sphi 0, %s552
      %s555 = sphi 0, %s554
      %s569 = sphi 0, %s555
      %s573 = sphi 0, %s573
      %s575 = sphi 0, %s573
      %s576 = sphi 0, %s575
      %s590 = sphi 0, %s576
      %s594 = sphi 0, %s594
      %s596 = sphi 0, %s594
      %s597 = sphi 0, %s596
      %s611 = sphi 0, %s597
      %s615 = sphi 0, %s615
      %s617 = sphi 0, %s615
      %s618 = sphi 0, %s617
      %s632 = sphi 0, %s618
      %s636 = sphi 0, %s636
      %s638 = sphi 0, %s636
      %s639 = sphi 0, %s638
      %s653 = sphi 0, %s639
      %s657 = sphi 0, %s657
      %s659 = sphi 0, %s657
      %s660 = sphi 0, %s659
      %s674 = sphi 0, %s660
      %s678 = sphi 0, %s678
      %s680 = sphi 0, %s678
      %s681 = sphi 0, %s680
      %s695 = sphi 0, %s681
      %s699 = sphi 0, %s699
      %s701 = sphi 0, %s699
      %s702 = sphi 0, %s701
      %s716 = sphi 0, %s702
      %s720 = sphi 0, %s720
      %s722 = sphi 0, %s720
      %s723 = sphi 0, %s722
      %s737 = sphi 0, %s723
      %s743 = sphi 0, %s745
      %s746 = sphi 0, %s743
      %s747 = sphi 0, %s746
      %s763 = sphi 0, %s747
    $region4: #{decoder_layer.1} parent=1 // loop_header_branch
      %86 = sbr.rel (%p84) target = $region8
    $region5: #{decoder_layer.1} parent=1 // loop_body
      %s88 = ssub.s32 %s83, 1
      %s89 = ssub.s32 %s83, 2
      %s90 = sadd.s32 %s83, 1
      %s91 = ssub.s32 %s83, %s90
      %p92 = scmp.eq.s32.totalorder %s91, 0
      %s94 = sadd.s32 %s93, 1
      %s95 = scalar_select %p92, %s93, %s94
      %p98 = pneg %p92
      %p99 = scmp.eq.s32.totalorder %s83, 1
      %p100 = por %p98, %p99
      %p101 = scmp.ne.s32.totalorder %s93, %s96
      %p102 = scmp.eq.s32.totalorder %s83, 0
      %p103 = por %p101, %p102
      %p104 = scmp.ne.s32.totalorder %s93, %s96
      %p105 = scmp.eq.s32.totalorder %s88, 1
      %p106 = por %p104, %p105
      %p107 = scmp.ne.s32.totalorder %s96, %s97
      %p108 = scmp.eq.s32.totalorder %s88, 0
      %p109 = por %p107, %p108
      %p110 = scmp.ne.s32.totalorder %s96, %s97
      %p111 = scmp.eq.s32.totalorder %s89, 1
      %p112 = por %p110, %p111
      %p114 = scmp.ne.s32.totalorder %s97, %s113
      %p115 = scmp.eq.s32.totalorder %s89, 0
      %p116 = por %p114, %p115
      %s117 = ssub.s32 %s83, %s90
      %p118 = scmp.eq.s32.totalorder %s117, 0
      %s120 = sadd.s32 %s119, 1
      %s121 = scalar_select %p118, %s119, %s120
      %p124 = pneg %p118
      %p125 = scmp.eq.s32.totalorder %s83, 1
      %p126 = por %p124, %p125
      %p127 = scmp.ne.s32.totalorder %s119, %s122
      %p128 = scmp.eq.s32.totalorder %s83, 0
      %p129 = por %p127, %p128
      %p130 = scmp.ne.s32.totalorder %s119, %s122
      %p131 = scmp.eq.s32.totalorder %s88, 1
      %p132 = por %p130, %p131
      %p133 = scmp.ne.s32.totalorder %s122, %s123
      %p134 = scmp.eq.s32.totalorder %s88, 0
      %p135 = por %p133, %p134
      %p136 = scmp.ne.s32.totalorder %s122, %s123
      %p137 = scmp.eq.s32.totalorder %s89, 1
      %p138 = por %p136, %p137
      %p140 = scmp.ne.s32.totalorder %s123, %s139
      %p141 = scmp.eq.s32.totalorder %s89, 0
      %p142 = por %p140, %p141
      %s143 = ssub.s32 %s83, %s90
      %p144 = scmp.eq.s32.totalorder %s143, 0
      %s146 = sadd.s32 %s145, 1
      %s147 = scalar_select %p144, %s145, %s146
      %p150 = pneg %p144
      %p151 = scmp.eq.s32.totalorder %s83, 1
      %p152 = por %p150, %p151
      %p153 = scmp.ne.s32.totalorder %s145, %s148
      %p154 = scmp.eq.s32.totalorder %s83, 0
      %p155 = por %p153, %p154
      %p156 = scmp.ne.s32.totalorder %s145, %s148
      %p157 = scmp.eq.s32.totalorder %s88, 1
      %p158 = por %p156, %p157
      %p159 = scmp.ne.s32.totalorder %s148, %s149
      %p160 = scmp.eq.s32.totalorder %s88, 0
      %p161 = por %p159, %p160
      %p162 = scmp.ne.s32.totalorder %s148, %s149
      %p163 = scmp.eq.s32.totalorder %s89, 1
      %p164 = por %p162, %p163
      %p166 = scmp.ne.s32.totalorder %s149, %s165
      %p167 = scmp.eq.s32.totalorder %s89, 0
      %p168 = por %p166, %p167
      %s169 = ssub.s32 %s83, %s90
      %p170 = scmp.eq.s32.totalorder %s169, 0
      %s172 = sadd.s32 %s171, 1
      %s173 = scalar_select %p170, %s171, %s172
      %p176 = pneg %p170
      %p177 = scmp.eq.s32.totalorder %s83, 1
      %p178 = por %p176, %p177
      %p179 = scmp.ne.s32.totalorder %s171, %s174
      %p180 = scmp.eq.s32.totalorder %s83, 0
      %p181 = por %p179, %p180
      %p182 = scmp.ne.s32.totalorder %s171, %s174
      %p183 = scmp.eq.s32.totalorder %s88, 1
      %p184 = por %p182, %p183
      %p185 = scmp.ne.s32.totalorder %s174, %s175
      %p186 = scmp.eq.s32.totalorder %s88, 0
      %p187 = por %p185, %p186
      %p188 = scmp.ne.s32.totalorder %s174, %s175
      %p189 = scmp.eq.s32.totalorder %s89, 1
      %p190 = por %p188, %p189
      %p192 = scmp.ne.s32.totalorder %s175, %s191
      %p193 = scmp.eq.s32.totalorder %s89, 0
      %p194 = por %p192, %p193
      %s196 = sadd.s32 %s195, 1
      %p199 = scmp.eq.s32.totalorder %s83, 1
      %p200 = scmp.ne.s32.totalorder %s195, %s197
      %p201 = scmp.eq.s32.totalorder %s83, 0
      %p202 = por %p200, %p201
      %p203 = scmp.ne.s32.totalorder %s195, %s197
      %p204 = scmp.eq.s32.totalorder %s88, 1
      %p205 = por %p203, %p204
      %p206 = scmp.ne.s32.totalorder %s197, %s198
      %p207 = scmp.eq.s32.totalorder %s88, 0
      %p208 = por %p206, %p207
      %p209 = scmp.ne.s32.totalorder %s197, %s198
      %p210 = scmp.eq.s32.totalorder %s89, 1
      %p211 = por %p209, %p210
      %p213 = scmp.ne.s32.totalorder %s198, %s212
      %p214 = scmp.eq.s32.totalorder %s89, 0
      %p215 = por %p213, %p214
      %s217 = sadd.s32 %s216, 1
      %p220 = scmp.eq.s32.totalorder %s83, 1
      %p221 = scmp.ne.s32.totalorder %s216, %s218
      %p222 = scmp.eq.s32.totalorder %s83, 0
      %p223 = por %p221, %p222
      %p224 = scmp.ne.s32.totalorder %s216, %s218
      %p225 = scmp.eq.s32.totalorder %s88, 1
      %p226 = por %p224, %p225
      %p227 = scmp.ne.s32.totalorder %s218, %s219
      %p228 = scmp.eq.s32.totalorder %s88, 0
      %p229 = por %p227, %p228
      %p230 = scmp.ne.s32.totalorder %s218, %s219
      %p231 = scmp.eq.s32.totalorder %s89, 1
      %p232 = por %p230, %p231
      %p234 = scmp.ne.s32.totalorder %s219, %s233
      %p235 = scmp.eq.s32.totalorder %s89, 0
      %p236 = por %p234, %p235
      %s238 = sadd.s32 %s237, 1
      %p241 = scmp.eq.s32.totalorder %s83, 1
      %p242 = scmp.ne.s32.totalorder %s237, %s239
      %p243 = scmp.eq.s32.totalorder %s83, 0
      %p244 = por %p242, %p243
      %p245 = scmp.ne.s32.totalorder %s237, %s239
      %p246 = scmp.eq.s32.totalorder %s88, 1
      %p247 = por %p245, %p246
      %p248 = scmp.ne.s32.totalorder %s239, %s240
      %p249 = scmp.eq.s32.totalorder %s88, 0
      %p250 = por %p248, %p249
      %p251 = scmp.ne.s32.totalorder %s239, %s240
      %p252 = scmp.eq.s32.totalorder %s89, 1
      %p253 = por %p251, %p252
      %p255 = scmp.ne.s32.totalorder %s240, %s254
      %p256 = scmp.eq.s32.totalorder %s89, 0
      %p257 = por %p255, %p256
      %s259 = sadd.s32 %s258, 1
      %p262 = scmp.eq.s32.totalorder %s83, 1
      %p263 = scmp.ne.s32.totalorder %s258, %s260
      %p264 = scmp.eq.s32.totalorder %s83, 0
      %p265 = por %p263, %p264
      %p266 = scmp.ne.s32.totalorder %s258, %s260
      %p267 = scmp.eq.s32.totalorder %s88, 1
      %p268 = por %p266, %p267
      %p269 = scmp.ne.s32.totalorder %s260, %s261
      %p270 = scmp.eq.s32.totalorder %s88, 0
      %p271 = por %p269, %p270
      %p272 = scmp.ne.s32.totalorder %s260, %s261
      %p273 = scmp.eq.s32.totalorder %s89, 1
      %p274 = por %p272, %p273
      %p276 = scmp.ne.s32.totalorder %s261, %s275
      %p277 = scmp.eq.s32.totalorder %s89, 0
      %p278 = por %p276, %p277
      %s280 = sadd.s32 %s279, 1
      %p283 = scmp.eq.s32.totalorder %s83, 1
      %p284 = scmp.ne.s32.totalorder %s279, %s281
      %p285 = scmp.eq.s32.totalorder %s83, 0
      %p286 = por %p284, %p285
      %p287 = scmp.ne.s32.totalorder %s279, %s281
      %p288 = scmp.eq.s32.totalorder %s88, 1
      %p289 = por %p287, %p288
      %p290 = scmp.ne.s32.totalorder %s281, %s282
      %p291 = scmp.eq.s32.totalorder %s88, 0
      %p292 = por %p290, %p291
      %p293 = scmp.ne.s32.totalorder %s281, %s282
      %p294 = scmp.eq.s32.totalorder %s89, 1
      %p295 = por %p293, %p294
      %p297 = scmp.ne.s32.totalorder %s282, %s296
      %p298 = scmp.eq.s32.totalorder %s89, 0
      %p299 = por %p297, %p298
      %s301 = sadd.s32 %s300, 1
      %p304 = scmp.eq.s32.totalorder %s83, 1
      %p305 = scmp.ne.s32.totalorder %s300, %s302
      %p306 = scmp.eq.s32.totalorder %s83, 0
      %p307 = por %p305, %p306
      %p308 = scmp.ne.s32.totalorder %s300, %s302
      %p309 = scmp.eq.s32.totalorder %s88, 1
      %p310 = por %p308, %p309
      %p311 = scmp.ne.s32.totalorder %s302, %s303
      %p312 = scmp.eq.s32.totalorder %s88, 0
      %p313 = por %p311, %p312
      %p314 = scmp.ne.s32.totalorder %s302, %s303
      %p315 = scmp.eq.s32.totalorder %s89, 1
      %p316 = por %p314, %p315
      %p318 = scmp.ne.s32.totalorder %s303, %s317
      %p319 = scmp.eq.s32.totalorder %s89, 0
      %p320 = por %p318, %p319
      %s322 = sadd.s32 %s321, 1
      %p325 = scmp.eq.s32.totalorder %s83, 1
      %p326 = scmp.ne.s32.totalorder %s321, %s323
      %p327 = scmp.eq.s32.totalorder %s83, 0
      %p328 = por %p326, %p327
      %p329 = scmp.ne.s32.totalorder %s321, %s323
      %p330 = scmp.eq.s32.totalorder %s88, 1
      %p331 = por %p329, %p330
      %p332 = scmp.ne.s32.totalorder %s323, %s324
      %p333 = scmp.eq.s32.totalorder %s88, 0
      %p334 = por %p332, %p333
      %p335 = scmp.ne.s32.totalorder %s323, %s324
      %p336 = scmp.eq.s32.totalorder %s89, 1
      %p337 = por %p335, %p336
      %p339 = scmp.ne.s32.totalorder %s324, %s338
      %p340 = scmp.eq.s32.totalorder %s89, 0
      %p341 = por %p339, %p340
      %s343 = sadd.s32 %s342, 1
      %p346 = scmp.eq.s32.totalorder %s83, 1
      %p347 = scmp.ne.s32.totalorder %s342, %s344
      %p348 = scmp.eq.s32.totalorder %s83, 0
      %p349 = por %p347, %p348
      %p350 = scmp.ne.s32.totalorder %s342, %s344
      %p351 = scmp.eq.s32.totalorder %s88, 1
      %p352 = por %p350, %p351
      %p353 = scmp.ne.s32.totalorder %s344, %s345
      %p354 = scmp.eq.s32.totalorder %s88, 0
      %p355 = por %p353, %p354
      %p356 = scmp.ne.s32.totalorder %s344, %s345
      %p357 = scmp.eq.s32.totalorder %s89, 1
      %p358 = por %p356, %p357
      %p360 = scmp.ne.s32.totalorder %s345, %s359
      %p361 = scmp.eq.s32.totalorder %s89, 0
      %p362 = por %p360, %p361
      %s364 = sadd.s32 %s363, 1
      %p367 = scmp.eq.s32.totalorder %s83, 1
      %p368 = scmp.ne.s32.totalorder %s363, %s365
      %p369 = scmp.eq.s32.totalorder %s83, 0
      %p370 = por %p368, %p369
      %p371 = scmp.ne.s32.totalorder %s363, %s365
      %p372 = scmp.eq.s32.totalorder %s88, 1
      %p373 = por %p371, %p372
      %p374 = scmp.ne.s32.totalorder %s365, %s366
      %p375 = scmp.eq.s32.totalorder %s88, 0
      %p376 = por %p374, %p375
      %p377 = scmp.ne.s32.totalorder %s365, %s366
      %p378 = scmp.eq.s32.totalorder %s89, 1
      %p379 = por %p377, %p378
      %p381 = scmp.ne.s32.totalorder %s366, %s380
      %p382 = scmp.eq.s32.totalorder %s89, 0
      %p383 = por %p381, %p382
      %s385 = sadd.s32 %s384, 1
      %p388 = scmp.eq.s32.totalorder %s83, 1
      %p389 = scmp.ne.s32.totalorder %s384, %s386
      %p390 = scmp.eq.s32.totalorder %s83, 0
      %p391 = por %p389, %p390
      %p392 = scmp.ne.s32.totalorder %s384, %s386
      %p393 = scmp.eq.s32.totalorder %s88, 1
      %p394 = por %p392, %p393
      %p395 = scmp.ne.s32.totalorder %s386, %s387
      %p396 = scmp.eq.s32.totalorder %s88, 0
      %p397 = por %p395, %p396
      %p398 = scmp.ne.s32.totalorder %s386, %s387
      %p399 = scmp.eq.s32.totalorder %s89, 1
      %p400 = por %p398, %p399
      %p402 = scmp.ne.s32.totalorder %s387, %s401
      %p403 = scmp.eq.s32.totalorder %s89, 0
      %p404 = por %p402, %p403
      %s406 = sadd.s32 %s405, 1
      %p409 = scmp.eq.s32.totalorder %s83, 1
      %p410 = scmp.ne.s32.totalorder %s405, %s407
      %p411 = scmp.eq.s32.totalorder %s83, 0
      %p412 = por %p410, %p411
      %p413 = scmp.ne.s32.totalorder %s405, %s407
      %p414 = scmp.eq.s32.totalorder %s88, 1
      %p415 = por %p413, %p414
      %p416 = scmp.ne.s32.totalorder %s407, %s408
      %p417 = scmp.eq.s32.totalorder %s88, 0
      %p418 = por %p416, %p417
      %p419 = scmp.ne.s32.totalorder %s407, %s408
      %p420 = scmp.eq.s32.totalorder %s89, 1
      %p421 = por %p419, %p420
      %p423 = scmp.ne.s32.totalorder %s408, %s422
      %p424 = scmp.eq.s32.totalorder %s89, 0
      %p425 = por %p423, %p424
      %s427 = sadd.s32 %s426, 1
      %p430 = scmp.eq.s32.totalorder %s83, 1
      %p431 = scmp.ne.s32.totalorder %s426, %s428
      %p432 = scmp.eq.s32.totalorder %s83, 0
      %p433 = por %p431, %p432
      %p434 = scmp.ne.s32.totalorder %s426, %s428
      %p435 = scmp.eq.s32.totalorder %s88, 1
      %p436 = por %p434, %p435
      %p437 = scmp.ne.s32.totalorder %s428, %s429
      %p438 = scmp.eq.s32.totalorder %s88, 0
      %p439 = por %p437, %p438
      %p440 = scmp.ne.s32.totalorder %s428, %s429
      %p441 = scmp.eq.s32.totalorder %s89, 1
      %p442 = por %p440, %p441
      %p444 = scmp.ne.s32.totalorder %s429, %s443
      %p445 = scmp.eq.s32.totalorder %s89, 0
      %p446 = por %p444, %p445
      %s448 = sadd.s32 %s447, 1
      %p451 = scmp.eq.s32.totalorder %s83, 1
      %p452 = scmp.ne.s32.totalorder %s447, %s449
      %p453 = scmp.eq.s32.totalorder %s83, 0
      %p454 = por %p452, %p453
      %p455 = scmp.ne.s32.totalorder %s447, %s449
      %p456 = scmp.eq.s32.totalorder %s88, 1
      %p457 = por %p455, %p456
      %p458 = scmp.ne.s32.totalorder %s449, %s450
      %p459 = scmp.eq.s32.totalorder %s88, 0
      %p460 = por %p458, %p459
      %p461 = scmp.ne.s32.totalorder %s449, %s450
      %p462 = scmp.eq.s32.totalorder %s89, 1
      %p463 = por %p461, %p462
      %p465 = scmp.ne.s32.totalorder %s450, %s464
      %p466 = scmp.eq.s32.totalorder %s89, 0
      %p467 = por %p465, %p466
      %s469 = sadd.s32 %s468, 1
      %p472 = scmp.eq.s32.totalorder %s83, 1
      %p473 = scmp.ne.s32.totalorder %s468, %s470
      %p474 = scmp.eq.s32.totalorder %s83, 0
      %p475 = por %p473, %p474
      %p476 = scmp.ne.s32.totalorder %s468, %s470
      %p477 = scmp.eq.s32.totalorder %s88, 1
      %p478 = por %p476, %p477
      %p479 = scmp.ne.s32.totalorder %s470, %s471
      %p480 = scmp.eq.s32.totalorder %s88, 0
      %p481 = por %p479, %p480
      %p482 = scmp.ne.s32.totalorder %s470, %s471
      %p483 = scmp.eq.s32.totalorder %s89, 1
      %p484 = por %p482, %p483
      %p486 = scmp.ne.s32.totalorder %s471, %s485
      %p487 = scmp.eq.s32.totalorder %s89, 0
      %p488 = por %p486, %p487
      %s490 = sadd.s32 %s489, 1
      %p493 = scmp.eq.s32.totalorder %s83, 1
      %p494 = scmp.ne.s32.totalorder %s489, %s491
      %p495 = scmp.eq.s32.totalorder %s83, 0
      %p496 = por %p494, %p495
      %p497 = scmp.ne.s32.totalorder %s489, %s491
      %p498 = scmp.eq.s32.totalorder %s88, 1
      %p499 = por %p497, %p498
      %p500 = scmp.ne.s32.totalorder %s491, %s492
      %p501 = scmp.eq.s32.totalorder %s88, 0
      %p502 = por %p500, %p501
      %p503 = scmp.ne.s32.totalorder %s491, %s492
      %p504 = scmp.eq.s32.totalorder %s89, 1
      %p505 = por %p503, %p504
      %p507 = scmp.ne.s32.totalorder %s492, %s506
      %p508 = scmp.eq.s32.totalorder %s89, 0
      %p509 = por %p507, %p508
      %s511 = sadd.s32 %s510, 1
      %p514 = scmp.eq.s32.totalorder %s83, 1
      %p515 = scmp.ne.s32.totalorder %s510, %s512
      %p516 = scmp.eq.s32.totalorder %s83, 0
      %p517 = por %p515, %p516
      %p518 = scmp.ne.s32.totalorder %s510, %s512
      %p519 = scmp.eq.s32.totalorder %s88, 1
      %p520 = por %p518, %p519
      %p521 = scmp.ne.s32.totalorder %s512, %s513
      %p522 = scmp.eq.s32.totalorder %s88, 0
      %p523 = por %p521, %p522
      %p524 = scmp.ne.s32.totalorder %s512, %s513
      %p525 = scmp.eq.s32.totalorder %s89, 1
      %p526 = por %p524, %p525
      %p528 = scmp.ne.s32.totalorder %s513, %s527
      %p529 = scmp.eq.s32.totalorder %s89, 0
      %p530 = por %p528, %p529
      %s532 = sadd.s32 %s531, 1
      %p535 = scmp.eq.s32.totalorder %s83, 1
      %p536 = scmp.ne.s32.totalorder %s531, %s533
      %p537 = scmp.eq.s32.totalorder %s83, 0
      %p538 = por %p536, %p537
      %p539 = scmp.ne.s32.totalorder %s531, %s533
      %p540 = scmp.eq.s32.totalorder %s88, 1
      %p541 = por %p539, %p540
      %p542 = scmp.ne.s32.totalorder %s533, %s534
      %p543 = scmp.eq.s32.totalorder %s88, 0
      %p544 = por %p542, %p543
      %p545 = scmp.ne.s32.totalorder %s533, %s534
      %p546 = scmp.eq.s32.totalorder %s89, 1
      %p547 = por %p545, %p546
      %p549 = scmp.ne.s32.totalorder %s534, %s548
      %p550 = scmp.eq.s32.totalorder %s89, 0
      %p551 = por %p549, %p550
      %s553 = sadd.s32 %s552, 1
      %p556 = scmp.eq.s32.totalorder %s83, 1
      %p557 = scmp.ne.s32.totalorder %s552, %s554
      %p558 = scmp.eq.s32.totalorder %s83, 0
      %p559 = por %p557, %p558
      %p560 = scmp.ne.s32.totalorder %s552, %s554
      %p561 = scmp.eq.s32.totalorder %s88, 1
      %p562 = por %p560, %p561
      %p563 = scmp.ne.s32.totalorder %s554, %s555
      %p564 = scmp.eq.s32.totalorder %s88, 0
      %p565 = por %p563, %p564
      %p566 = scmp.ne.s32.totalorder %s554, %s555
      %p567 = scmp.eq.s32.totalorder %s89, 1
      %p568 = por %p566, %p567
      %p570 = scmp.ne.s32.totalorder %s555, %s569
      %p571 = scmp.eq.s32.totalorder %s89, 0
      %p572 = por %p570, %p571
      %s574 = sadd.s32 %s573, 1
      %p577 = scmp.eq.s32.totalorder %s83, 1
      %p578 = scmp.ne.s32.totalorder %s573, %s575
      %p579 = scmp.eq.s32.totalorder %s83, 0
      %p580 = por %p578, %p579
      %p581 = scmp.ne.s32.totalorder %s573, %s575
      %p582 = scmp.eq.s32.totalorder %s88, 1
      %p583 = por %p581, %p582
      %p584 = scmp.ne.s32.totalorder %s575, %s576
      %p585 = scmp.eq.s32.totalorder %s88, 0
      %p586 = por %p584, %p585
      %p587 = scmp.ne.s32.totalorder %s575, %s576
      %p588 = scmp.eq.s32.totalorder %s89, 1
      %p589 = por %p587, %p588
      %p591 = scmp.ne.s32.totalorder %s576, %s590
      %p592 = scmp.eq.s32.totalorder %s89, 0
      %p593 = por %p591, %p592
      %s595 = sadd.s32 %s594, 1
      %p598 = scmp.eq.s32.totalorder %s83, 1
      %p599 = scmp.ne.s32.totalorder %s594, %s596
      %p600 = scmp.eq.s32.totalorder %s83, 0
      %p601 = por %p599, %p600
      %p602 = scmp.ne.s32.totalorder %s594, %s596
      %p603 = scmp.eq.s32.totalorder %s88, 1
      %p604 = por %p602, %p603
      %p605 = scmp.ne.s32.totalorder %s596, %s597
      %p606 = scmp.eq.s32.totalorder %s88, 0
      %p607 = por %p605, %p606
      %p608 = scmp.ne.s32.totalorder %s596, %s597
      %p609 = scmp.eq.s32.totalorder %s89, 1
      %p610 = por %p608, %p609
      %p612 = scmp.ne.s32.totalorder %s597, %s611
      %p613 = scmp.eq.s32.totalorder %s89, 0
      %p614 = por %p612, %p613
      %s616 = sadd.s32 %s615, 1
      %p619 = scmp.eq.s32.totalorder %s83, 1
      %p620 = scmp.ne.s32.totalorder %s615, %s617
      %p621 = scmp.eq.s32.totalorder %s83, 0
      %p622 = por %p620, %p621
      %p623 = scmp.ne.s32.totalorder %s615, %s617
      %p624 = scmp.eq.s32.totalorder %s88, 1
      %p625 = por %p623, %p624
      %p626 = scmp.ne.s32.totalorder %s617, %s618
      %p627 = scmp.eq.s32.totalorder %s88, 0
      %p628 = por %p626, %p627
      %p629 = scmp.ne.s32.totalorder %s617, %s618
      %p630 = scmp.eq.s32.totalorder %s89, 1
      %p631 = por %p629, %p630
      %p633 = scmp.ne.s32.totalorder %s618, %s632
      %p634 = scmp.eq.s32.totalorder %s89, 0
      %p635 = por %p633, %p634
      %s637 = sadd.s32 %s636, 1
      %p640 = scmp.eq.s32.totalorder %s83, 1
      %p641 = scmp.ne.s32.totalorder %s636, %s638
      %p642 = scmp.eq.s32.totalorder %s83, 0
      %p643 = por %p641, %p642
      %p644 = scmp.ne.s32.totalorder %s636, %s638
      %p645 = scmp.eq.s32.totalorder %s88, 1
      %p646 = por %p644, %p645
      %p647 = scmp.ne.s32.totalorder %s638, %s639
      %p648 = scmp.eq.s32.totalorder %s88, 0
      %p649 = por %p647, %p648
      %p650 = scmp.ne.s32.totalorder %s638, %s639
      %p651 = scmp.eq.s32.totalorder %s89, 1
      %p652 = por %p650, %p651
      %p654 = scmp.ne.s32.totalorder %s639, %s653
      %p655 = scmp.eq.s32.totalorder %s89, 0
      %p656 = por %p654, %p655
      %s658 = sadd.s32 %s657, 1
      %p661 = scmp.eq.s32.totalorder %s83, 1
      %p662 = scmp.ne.s32.totalorder %s657, %s659
      %p663 = scmp.eq.s32.totalorder %s83, 0
      %p664 = por %p662, %p663
      %p665 = scmp.ne.s32.totalorder %s657, %s659
      %p666 = scmp.eq.s32.totalorder %s88, 1
      %p667 = por %p665, %p666
      %p668 = scmp.ne.s32.totalorder %s659, %s660
      %p669 = scmp.eq.s32.totalorder %s88, 0
      %p670 = por %p668, %p669
      %p671 = scmp.ne.s32.totalorder %s659, %s660
      %p672 = scmp.eq.s32.totalorder %s89, 1
      %p673 = por %p671, %p672
      %p675 = scmp.ne.s32.totalorder %s660, %s674
      %p676 = scmp.eq.s32.totalorder %s89, 0
      %p677 = por %p675, %p676
      %s679 = sadd.s32 %s678, 1
      %p682 = scmp.eq.s32.totalorder %s83, 1
      %p683 = scmp.ne.s32.totalorder %s678, %s680
      %p684 = scmp.eq.s32.totalorder %s83, 0
      %p685 = por %p683, %p684
      %p686 = scmp.ne.s32.totalorder %s678, %s680
      %p687 = scmp.eq.s32.totalorder %s88, 1
      %p688 = por %p686, %p687
      %p689 = scmp.ne.s32.totalorder %s680, %s681
      %p690 = scmp.eq.s32.totalorder %s88, 0
      %p691 = por %p689, %p690
      %p692 = scmp.ne.s32.totalorder %s680, %s681
      %p693 = scmp.eq.s32.totalorder %s89, 1
      %p694 = por %p692, %p693
      %p696 = scmp.ne.s32.totalorder %s681, %s695
      %p697 = scmp.eq.s32.totalorder %s89, 0
      %p698 = por %p696, %p697
      %s700 = sadd.s32 %s699, 1
      %p703 = scmp.eq.s32.totalorder %s83, 1
      %p704 = scmp.ne.s32.totalorder %s699, %s701
      %p705 = scmp.eq.s32.totalorder %s83, 0
      %p706 = por %p704, %p705
      %p707 = scmp.ne.s32.totalorder %s699, %s701
      %p708 = scmp.eq.s32.totalorder %s88, 1
      %p709 = por %p707, %p708
      %p710 = scmp.ne.s32.totalorder %s701, %s702
      %p711 = scmp.eq.s32.totalorder %s88, 0
      %p712 = por %p710, %p711
      %p713 = scmp.ne.s32.totalorder %s701, %s702
      %p714 = scmp.eq.s32.totalorder %s89, 1
      %p715 = por %p713, %p714
      %p717 = scmp.ne.s32.totalorder %s702, %s716
      %p718 = scmp.eq.s32.totalorder %s89, 0
      %p719 = por %p717, %p718
      %s721 = sadd.s32 %s720, 1
      %p724 = scmp.eq.s32.totalorder %s83, 1
      %p725 = scmp.ne.s32.totalorder %s720, %s722
      %p726 = scmp.eq.s32.totalorder %s83, 0
      %p727 = por %p725, %p726
      %p728 = scmp.ne.s32.totalorder %s720, %s722
      %p729 = scmp.eq.s32.totalorder %s88, 1
      %p730 = por %p728, %p729
      %p731 = scmp.ne.s32.totalorder %s722, %s723
      %p732 = scmp.eq.s32.totalorder %s88, 0
      %p733 = por %p731, %p732
      %p734 = scmp.ne.s32.totalorder %s722, %s723
      %p735 = scmp.eq.s32.totalorder %s89, 1
      %p736 = por %p734, %p735
      %p738 = scmp.ne.s32.totalorder %s723, %s737
      %p739 = scmp.eq.s32.totalorder %s89, 0
      %p740 = por %p738, %p739
      %s741 = ssub.s32 %s83, %s90
      %p742 = scmp.eq.s32.totalorder %s741, 0
      %s744 = sadd.s32 %s743, 1
      %s745 = scalar_select %p742, %s743, %s744
      %p748 = pneg %p742
      %p749 = scmp.eq.s32.totalorder %s83, 1
      %p750 = por %p748, %p749
      %p751 = scmp.ne.s32.totalorder %s743, %s746
      %p752 = scmp.eq.s32.totalorder %s83, 0
      %p753 = por %p751, %p752
      %p754 = scmp.ne.s32.totalorder %s743, %s746
      %p755 = scmp.eq.s32.totalorder %s88, 1
      %p756 = por %p754, %p755
      %p757 = scmp.ne.s32.totalorder %s746, %s747
      %p758 = scmp.eq.s32.totalorder %s88, 0
      %p759 = por %p757, %p758
      %p760 = scmp.ne.s32.totalorder %s746, %s747
      %p761 = scmp.eq.s32.totalorder %s89, 1
      %p762 = por %p760, %p761
      %p764 = scmp.ne.s32.totalorder %s747, %s763
      %p765 = scmp.eq.s32.totalorder %s89, 0
      %p766 = por %p764, %p765
      %p767 = scmp.le.s32.totalorder 1, %s83
      %p768 = scmp.lt.s32.totalorder %s83, 3
      %p769 = pnand %p767, %p768
      %p770 = pneg %p769
      // Predicated region
      $region9: #{decoder_layer.1} parent=5 // pred_check
        _
      $region10: #{decoder_layer.1} parent=5 // pred_check_branch
        %772 = sbr.rel (%p769) target = $region12
      $region11: #{decoder_layer.1} parent=5 // pred_region
        %s773 = ssub.s32 %s83, 1
        // Predicated region
        $region13: #{decoder_layer.1} parent=11 // pred_check
          %p774 = pneg %p208
        $region14: #{decoder_layer.1} parent=11 // pred_check_branch
          %776 = sbr.rel (%p774) target = $region16
        $region15: #{decoder_layer.1} parent=11 // pred_region
          _
        $region16: #{decoder_layer.1} parent=11 // pred_fallthru
          _
        // Predicated region
        $region17: #{decoder_layer.1} parent=11 // pred_check
          %p777 = pneg %p229
        $region18: #{decoder_layer.1} parent=11 // pred_check_branch
          %779 = sbr.rel (%p777) target = $region20
        $region19: #{decoder_layer.1} parent=11 // pred_region
          _
        $region20: #{decoder_layer.1} parent=11 // pred_fallthru
          _
        // Predicated region
        $region21: #{decoder_layer.1} parent=11 // pred_check
          %p780 = pneg %p250
        $region22: #{decoder_layer.1} parent=11 // pred_check_branch
          %782 = sbr.rel (%p780) target = $region24
        $region23: #{decoder_layer.1} parent=11 // pred_region
          _
        $region24: #{decoder_layer.1} parent=11 // pred_fallthru
          _
        // Predicated region
        $region25: #{decoder_layer.1} parent=11 // pred_check
          %p783 = pneg %p271
        $region26: #{decoder_layer.1} parent=11 // pred_check_branch
          %785 = sbr.rel (%p783) target = $region28
        $region27: #{decoder_layer.1} parent=11 // pred_region
          _
        $region28: #{decoder_layer.1} parent=11 // pred_fallthru
          _
        // Predicated region
        $region29: #{decoder_layer.1} parent=11 // pred_check
          %p786 = pneg %p292
        $region30: #{decoder_layer.1} parent=11 // pred_check_branch
          %788 = sbr.rel (%p786) target = $region32
        $region31: #{decoder_layer.1} parent=11 // pred_region
          _
        $region32: #{decoder_layer.1} parent=11 // pred_fallthru
          _
        // Predicated region
        $region33: #{decoder_layer.1} parent=11 // pred_check
          %p789 = pneg %p313
        $region34: #{decoder_layer.1} parent=11 // pred_check_branch
          %791 = sbr.rel (%p789) target = $region36
        $region35: #{decoder_layer.1} parent=11 // pred_region
          _
        $region36: #{decoder_layer.1} parent=11 // pred_fallthru
          _
        // Predicated region
        $region37: #{decoder_layer.1} parent=11 // pred_check
          %p792 = pneg %p334
        $region38: #{decoder_layer.1} parent=11 // pred_check_branch
          %794 = sbr.rel (%p792) target = $region40
        $region39: #{decoder_layer.1} parent=11 // pred_region
          %796 = vsyncadd [#allocation9], 0
          %s797 = sshll.u32 %s21, 4
          %s798 = int_to_ptr.hbm [resolvable:$true] %s797
          %s799 = sshll.u32 [#allocation10], 4
          %s800 = int_to_ptr.vmem [resolvable:$true] %s799
          %805 = dma.hbm_to_vmem [thread:$0]  %s798, 512, %s800, [#allocation9], 128, 128, 8
        $region40: #{decoder_layer.1} parent=11 // pred_fallthru
          _
        // Predicated region
        $region41: #{decoder_layer.1} parent=11 // pred_check
          %p806 = pneg %p355
        $region42: #{decoder_layer.1} parent=11 // pred_check_branch
          %808 = sbr.rel (%p806) target = $region44
        $region43: #{decoder_layer.1} parent=11 // pred_region
          _
        $region44: #{decoder_layer.1} parent=11 // pred_fallthru
          _
        // Predicated region
        $region45: #{decoder_layer.1} parent=11 // pred_check
          %p809 = pneg %p376
        $region46: #{decoder_layer.1} parent=11 // pred_check_branch
          %811 = sbr.rel (%p809) target = $region48
        $region47: #{decoder_layer.1} parent=11 // pred_region
          %813 = vsyncadd [#allocation12], 0
          %s814 = sshll.u32 %s25, 4
          %s815 = int_to_ptr.hbm [resolvable:$true] %s814
          %s816 = sshll.u32 [#allocation11], 4
          %s817 = int_to_ptr.vmem [resolvable:$true] %s816
          %822 = dma.hbm_to_vmem [thread:$0]  %s815, 512, %s817, [#allocation12], 128, 128, 8
        $region48: #{decoder_layer.1} parent=11 // pred_fallthru
          _
        // Predicated region
        $region49: #{decoder_layer.1} parent=11 // pred_check
          %p823 = pneg %p397
        $region50: #{decoder_layer.1} parent=11 // pred_check_branch
          %825 = sbr.rel (%p823) target = $region52
        $region51: #{decoder_layer.1} parent=11 // pred_region
          _
        $region52: #{decoder_layer.1} parent=11 // pred_fallthru
          _
        // Predicated region
        $region53: #{decoder_layer.1} parent=11 // pred_check
          %p826 = pneg %p418
        $region54: #{decoder_layer.1} parent=11 // pred_check_branch
          %828 = sbr.rel (%p826) target = $region56
        $region55: #{decoder_layer.1} parent=11 // pred_region
          %830 = vsyncadd [#allocation12], 0
          %s831 = sshll.u32 %s29, 4
          %s832 = int_to_ptr.hbm [resolvable:$true] %s831
          %s833 = sshll.u32 [#allocation13], 4
          %s834 = int_to_ptr.vmem [resolvable:$true] %s833
          %839 = dma.hbm_to_vmem [thread:$0]  %s832, 512, %s834, [#allocation12], 128, 128, 8
        $region56: #{decoder_layer.1} parent=11 // pred_fallthru
          _
        // Predicated region
        $region57: #{decoder_layer.1} parent=11 // pred_check
          %p840 = pneg %p439
        $region58: #{decoder_layer.1} parent=11 // pred_check_branch
          %842 = sbr.rel (%p840) target = $region60
        $region59: #{decoder_layer.1} parent=11 // pred_region
          %844 = vsyncadd [#allocation15], 0
          %s846 = sshll.u32 %s31, 4
          %s847 = int_to_ptr.hbm [resolvable:$true] %s846
          %s848 = sshll.u32 [#allocation14], 4
          %s849 = int_to_ptr.vmem [resolvable:$true] %s848
          %851 = dma.hbm_to_vmem [thread:$0]  %s847, 16, %s849, [#allocation15]
        $region60: #{decoder_layer.1} parent=11 // pred_fallthru
          _
        // Predicated region
        $region61: #{decoder_layer.1} parent=11 // pred_check
          %p852 = pneg %p460
        $region62: #{decoder_layer.1} parent=11 // pred_check_branch
          %854 = sbr.rel (%p852) target = $region64
        $region63: #{decoder_layer.1} parent=11 // pred_region
          %856 = vsyncadd [#allocation15], 0
          %s857 = sshll.u32 %s33, 4
          %s858 = int_to_ptr.hbm [resolvable:$true] %s857
          %s859 = sshll.u32 [#allocation16], 4
          %s860 = int_to_ptr.vmem [resolvable:$true] %s859
          %865 = dma.hbm_to_vmem [thread:$0]  %s858, 512, %s860, [#allocation15], 128, 128, 8
        $region64: #{decoder_layer.1} parent=11 // pred_fallthru
          _
        // Predicated region
        $region65: #{decoder_layer.1} parent=11 // pred_check
          %p866 = pneg %p481
        $region66: #{decoder_layer.1} parent=11 // pred_check_branch
          %868 = sbr.rel (%p866) target = $region68
        $region67: #{decoder_layer.1} parent=11 // pred_region
          %870 = vsyncadd [#allocation18], 0
          %s872 = sshll.u32 %s35, 4
          %s873 = int_to_ptr.hbm [resolvable:$true] %s872
          %s874 = sshll.u32 [#allocation17], 4
          %s875 = int_to_ptr.vmem [resolvable:$true] %s874
          %877 = dma.hbm_to_vmem [thread:$0]  %s873, 16, %s875, [#allocation18]
        $region68: #{decoder_layer.1} parent=11 // pred_fallthru
          _
        // Predicated region
        $region69: #{decoder_layer.1} parent=11 // pred_check
          %p878 = pneg %p502
        $region70: #{decoder_layer.1} parent=11 // pred_check_branch
          %880 = sbr.rel (%p878) target = $region72
        $region71: #{decoder_layer.1} parent=11 // pred_region
          %882 = vsyncadd [#allocation18], 0
          %s883 = sshll.u32 %s37, 4
          %s884 = int_to_ptr.hbm [resolvable:$true] %s883
          %s885 = sshll.u32 [#allocation19], 4
          %s886 = int_to_ptr.vmem [resolvable:$true] %s885
          %891 = dma.hbm_to_vmem [thread:$0]  %s884, 512, %s886, [#allocation18], 128, 128, 8
        $region72: #{decoder_layer.1} parent=11 // pred_fallthru
          _
        // Predicated region
        $region73: #{decoder_layer.1} parent=11 // pred_check
          %p892 = pneg %p523
        $region74: #{decoder_layer.1} parent=11 // pred_check_branch
          %894 = sbr.rel (%p892) target = $region76
        $region75: #{decoder_layer.1} parent=11 // pred_region
          %896 = vsyncadd [#allocation21], 0
          %s898 = sshll.u32 %s39, 4
          %s899 = int_to_ptr.hbm [resolvable:$true] %s898
          %s900 = sshll.u32 [#allocation20], 4
          %s901 = int_to_ptr.vmem [resolvable:$true] %s900
          %903 = dma.hbm_to_vmem [thread:$0]  %s899, 16, %s901, [#allocation21]
        $region76: #{decoder_layer.1} parent=11 // pred_fallthru
          _
        // Predicated region
        $region77: #{decoder_layer.1} parent=11 // pred_check
          %p904 = pneg %p544
        $region78: #{decoder_layer.1} parent=11 // pred_check_branch
          %906 = sbr.rel (%p904) target = $region80
        $region79: #{decoder_layer.1} parent=11 // pred_region
          %908 = vsyncadd [#allocation21], 0
          %s909 = sshll.u32 %s41, 4
          %s910 = int_to_ptr.hbm [resolvable:$true] %s909
          %s911 = sshll.u32 [#allocation22], 4
          %s912 = int_to_ptr.vmem [resolvable:$true] %s911
          %917 = dma.hbm_to_vmem [thread:$0]  %s910, 512, %s912, [#allocation21], 128, 128, 8
        $region80: #{decoder_layer.1} parent=11 // pred_fallthru
          _
        // Predicated region
        $region81: #{decoder_layer.1} parent=11 // pred_check
          %p918 = pneg %p565
        $region82: #{decoder_layer.1} parent=11 // pred_check_branch
          %920 = sbr.rel (%p918) target = $region84
        $region83: #{decoder_layer.1} parent=11 // pred_region
          _
        $region84: #{decoder_layer.1} parent=11 // pred_fallthru
          _
        // Predicated region
        $region85: #{decoder_layer.1} parent=11 // pred_check
          %p921 = pneg %p586
        $region86: #{decoder_layer.1} parent=11 // pred_check_branch
          %923 = sbr.rel (%p921) target = $region88
        $region87: #{decoder_layer.1} parent=11 // pred_region
          _
        $region88: #{decoder_layer.1} parent=11 // pred_fallthru
          _
        // Predicated region
        $region89: #{decoder_layer.1} parent=11 // pred_check
          %p924 = pneg %p607
        $region90: #{decoder_layer.1} parent=11 // pred_check_branch
          %926 = sbr.rel (%p924) target = $region92
        $region91: #{decoder_layer.1} parent=11 // pred_region
          _
        $region92: #{decoder_layer.1} parent=11 // pred_fallthru
          _
        // Predicated region
        $region93: #{decoder_layer.1} parent=11 // pred_check
          %p927 = pneg %p628
        $region94: #{decoder_layer.1} parent=11 // pred_check_branch
          %929 = sbr.rel (%p927) target = $region96
        $region95: #{decoder_layer.1} parent=11 // pred_region
          _
        $region96: #{decoder_layer.1} parent=11 // pred_fallthru
          _
        // Predicated region
        $region97: #{decoder_layer.1} parent=11 // pred_check
          %p930 = pneg %p649
        $region98: #{decoder_layer.1} parent=11 // pred_check_branch
          %932 = sbr.rel (%p930) target = $region100
        $region99: #{decoder_layer.1} parent=11 // pred_region
          _
        $region100: #{decoder_layer.1} parent=11 // pred_fallthru
          _
        // Predicated region
        $region101: #{decoder_layer.1} parent=11 // pred_check
          %p933 = pneg %p670
        $region102: #{decoder_layer.1} parent=11 // pred_check_branch
          %935 = sbr.rel (%p933) target = $region104
        $region103: #{decoder_layer.1} parent=11 // pred_region
          _
        $region104: #{decoder_layer.1} parent=11 // pred_fallthru
          _
        // Predicated region
        $region105: #{decoder_layer.1} parent=11 // pred_check
          %p936 = pneg %p691
        $region106: #{decoder_layer.1} parent=11 // pred_check_branch
          %938 = sbr.rel (%p936) target = $region108
        $region107: #{decoder_layer.1} parent=11 // pred_region
          _
        $region108: #{decoder_layer.1} parent=11 // pred_fallthru
          _
        // Predicated region
        $region109: #{decoder_layer.1} parent=11 // pred_check
          %p939 = pneg %p712
        $region110: #{decoder_layer.1} parent=11 // pred_check_branch
          %941 = sbr.rel (%p939) target = $region112
        $region111: #{decoder_layer.1} parent=11 // pred_region
          _
        $region112: #{decoder_layer.1} parent=11 // pred_fallthru
          _
        // Predicated region
        $region113: #{decoder_layer.1} parent=11 // pred_check
          %p942 = pneg %p733
        $region114: #{decoder_layer.1} parent=11 // pred_check_branch
          %944 = sbr.rel (%p942) target = $region116
        $region115: #{decoder_layer.1} parent=11 // pred_region
          _
        $region116: #{decoder_layer.1} parent=11 // pred_fallthru
          _
      $region12: #{decoder_layer.1} parent=5 // pred_fallthru
        _
      %p945 = scmp.lt.s32.totalorder %s83, 2
      // Predicated region
      $region117: #{decoder_layer.1} parent=5 // pred_check
        %p946 = pneg %p945
      $region118: #{decoder_layer.1} parent=5 // pred_check_branch
        %948 = sbr.rel (%p946) target = $region120
      $region119: #{decoder_layer.1} parent=5 // pred_region
        // Predicated region
        $region121: #{decoder_layer.1} parent=119 // pred_check
          %p949 = pneg %p103
        $region122: #{decoder_layer.1} parent=119 // pred_check_branch
          %951 = sbr.rel (%p949) target = $region124
        $region123: #{decoder_layer.1} parent=119 // pred_region
          %s952 = sand.u32 %s93, 1
          %s953 = scalar_lea.sflag [#allocation3], %s952
          %s954 = sand.u32 %s93, 1
          %s955 = smul.addr %s954, 8
          %s956 = scalar_lea.vmem [#allocation2], %s955
          %958 = vsyncadd %s953, 0
          %s959 = smul.addr %s83, 8
          %s960 = scalar_lea.hbm %s1, %s959
          %s962 = sshll.u32 %s960, 4
          %s963 = int_to_ptr.hbm [resolvable:$true] %s962
          %s964 = sshll.u32 %s956, 4
          %s965 = int_to_ptr.vmem [resolvable:$true] %s964
          %967 = dma.hbm_to_vmem [thread:$0]  %s963, 128, %s965, %s953
        $region124: #{decoder_layer.1} parent=119 // pred_fallthru
          _
        // Predicated region
        $region125: #{decoder_layer.1} parent=119 // pred_check
          %p968 = pneg %p129
        $region126: #{decoder_layer.1} parent=119 // pred_check_branch
          %970 = sbr.rel (%p968) target = $region128
        $region127: #{decoder_layer.1} parent=119 // pred_region
          %s971 = sand.u32 %s83, 1
          %s972 = scalar_lea.sflag [#allocation6], %s971
          %s973 = sand.u32 %s119, 1
          %s974 = smul.addr %s973, 8
          %s975 = scalar_lea.vmem [#allocation5], %s974
          %977 = vsyncadd %s972, 0
          %s978 = smul.addr %s83, 8
          %s979 = scalar_lea.hbm %s3, %s978
          %s981 = sshll.u32 %s979, 4
          %s982 = int_to_ptr.hbm [resolvable:$true] %s981
          %s983 = sshll.u32 %s975, 4
          %s984 = int_to_ptr.vmem [resolvable:$true] %s983
          %986 = dma.hbm_to_vmem [thread:$0]  %s982, 128, %s984, %s972
        $region128: #{decoder_layer.1} parent=119 // pred_fallthru
          _
        // Predicated region
        $region129: #{decoder_layer.1} parent=119 // pred_check
          %p987 = pneg %p155
        $region130: #{decoder_layer.1} parent=119 // pred_check_branch
          %989 = sbr.rel (%p987) target = $region132
        $region131: #{decoder_layer.1} parent=119 // pred_region
          %s990 = sand.u32 %s83, 1
          %s991 = scalar_lea.sflag [#allocation6], %s990
          %s992 = sand.u32 %s145, 1
          %s993 = smul.addr %s992, 8
          %s994 = scalar_lea.vmem [#allocation7], %s993
          %996 = vsyncadd %s991, 0
          %s997 = smul.addr %s83, 8
          %s998 = scalar_lea.hbm %s5, %s997
          %s1000 = sshll.u32 %s998, 4
          %s1001 = int_to_ptr.hbm [resolvable:$true] %s1000
          %s1002 = sshll.u32 %s994, 4
          %s1003 = int_to_ptr.vmem [resolvable:$true] %s1002
          %1005 = dma.hbm_to_vmem [thread:$0]  %s1001, 128, %s1003, %s991
        $region132: #{decoder_layer.1} parent=119 // pred_fallthru
          _
        // Predicated region
        $region133: #{decoder_layer.1} parent=119 // pred_check
          %p1006 = pneg %p181
        $region134: #{decoder_layer.1} parent=119 // pred_check_branch
          %1008 = sbr.rel (%p1006) target = $region136
        $region135: #{decoder_layer.1} parent=119 // pred_region
          %s1009 = sand.u32 %s83, 1
          %s1010 = scalar_lea.sflag [#allocation9], %s1009
          %s1011 = sand.u32 %s171, 1
          %s1012 = smul.addr %s1011, 8
          %s1013 = scalar_lea.vmem [#allocation8], %s1012
          %1015 = vsyncadd %s1010, 0
          %s1016 = smul.addr %s83, 8
          %s1017 = scalar_lea.hbm %s7, %s1016
          %s1019 = sshll.u32 %s1017, 4
          %s1020 = int_to_ptr.hbm [resolvable:$true] %s1019
          %s1021 = sshll.u32 %s1013, 4
          %s1022 = int_to_ptr.vmem [resolvable:$true] %s1021
          %1024 = dma.hbm_to_vmem [thread:$0]  %s1020, 128, %s1022, %s1010
        $region136: #{decoder_layer.1} parent=119 // pred_fallthru
          _
      $region120: #{decoder_layer.1} parent=5 // pred_fallthru
        _
      %p1025 = scmp.le.s32.totalorder 1, %s83
      %p1026 = scmp.lt.s32.totalorder %s83, 3
      %p1027 = pnand %p1025, %p1026
      %p1028 = pneg %p1027
      // Predicated region
      $region137: #{decoder_layer.1} parent=5 // pred_check
        _
      $region138: #{decoder_layer.1} parent=5 // pred_check_branch
        %1030 = sbr.rel (%p1027) target = $region140
      $region139: #{decoder_layer.1} parent=5 // pred_region
        %s1031 = ssub.s32 %s83, 1
        %s1032 = sand.u32 %s96, 1
        %s1033 = scalar_lea.sflag [#allocation3], %s1032
        %s1034 = sand.u32 %s96, 1
        %s1035 = smul.addr %s1034, 8
        %s1036 = scalar_lea.vmem [#allocation2], %s1035
        // Predicated region
        $region141: #{decoder_layer.1} parent=139 // pred_check
          %p1037 = pneg %p109
        $region142: #{decoder_layer.1} parent=139 // pred_check_branch
          %1039 = sbr.rel (%p1037) target = $region144
        $region143: #{decoder_layer.1} parent=139 // pred_region
          %1041 = dma.done %s1033, 128
        $region144: #{decoder_layer.1} parent=139 // pred_fallthru
          _
        %s1042 = sand.u32 %s88, 1
        %s1043 = scalar_lea.sflag [#allocation6], %s1042
        %s1044 = sand.u32 %s122, 1
        %s1045 = smul.addr %s1044, 8
        %s1046 = scalar_lea.vmem [#allocation5], %s1045
        // Predicated region
        $region145: #{decoder_layer.1} parent=139 // pred_check
          %p1047 = pneg %p135
        $region146: #{decoder_layer.1} parent=139 // pred_check_branch
          %1049 = sbr.rel (%p1047) target = $region148
        $region147: #{decoder_layer.1} parent=139 // pred_region
          %1051 = dma.done %s1043, 128
        $region148: #{decoder_layer.1} parent=139 // pred_fallthru
          _
        %s1052 = sand.u32 %s88, 1
        %s1053 = scalar_lea.sflag [#allocation6], %s1052
        %s1054 = sand.u32 %s148, 1
        %s1055 = smul.addr %s1054, 8
        %s1056 = scalar_lea.vmem [#allocation7], %s1055
        // Predicated region
        $region149: #{decoder_layer.1} parent=139 // pred_check
          %p1057 = pneg %p161
        $region150: #{decoder_layer.1} parent=139 // pred_check_branch
          %1059 = sbr.rel (%p1057) target = $region152
        $region151: #{decoder_layer.1} parent=139 // pred_region
          %1061 = dma.done %s1053, 128
        $region152: #{decoder_layer.1} parent=139 // pred_fallthru
          _
        %s1062 = sand.u32 %s88, 1
        %s1063 = scalar_lea.sflag [#allocation9], %s1062
        %s1064 = sand.u32 %s174, 1
        %s1065 = smul.addr %s1064, 8
        %s1066 = scalar_lea.vmem [#allocation8], %s1065
        // Predicated region
        $region153: #{decoder_layer.1} parent=139 // pred_check
          %p1067 = pneg %p187
        $region154: #{decoder_layer.1} parent=139 // pred_check_branch
          %1069 = sbr.rel (%p1067) target = $region156
        $region155: #{decoder_layer.1} parent=139 // pred_region
          %1071 = dma.done %s1063, 128
        $region156: #{decoder_layer.1} parent=139 // pred_fallthru
          _
        // Predicated region
        $region157: #{decoder_layer.1} parent=139 // pred_check
          %p1072 = pneg %p334
        $region158: #{decoder_layer.1} parent=139 // pred_check_branch
          %1074 = sbr.rel (%p1072) target = $region160
        $region159: #{decoder_layer.1} parent=139 // pred_region
          %1076 = dma.done [#allocation9], 512
        $region160: #{decoder_layer.1} parent=139 // pred_fallthru
          _
        // Predicated region
        $region161: #{decoder_layer.1} parent=139 // pred_check
          %p1077 = pneg %p376
        $region162: #{decoder_layer.1} parent=139 // pred_check_branch
          %1079 = sbr.rel (%p1077) target = $region164
        $region163: #{decoder_layer.1} parent=139 // pred_region
          %1081 = dma.done [#allocation12], 512
        $region164: #{decoder_layer.1} parent=139 // pred_fallthru
          _
        // Predicated region
        $region165: #{decoder_layer.1} parent=139 // pred_check
          %p1082 = pneg %p418
        $region166: #{decoder_layer.1} parent=139 // pred_check_branch
          %1084 = sbr.rel (%p1082) target = $region168
        $region167: #{decoder_layer.1} parent=139 // pred_region
          %1086 = dma.done [#allocation12], 512
        $region168: #{decoder_layer.1} parent=139 // pred_fallthru
          _
        // Predicated region
        $region169: #{decoder_layer.1} parent=139 // pred_check
          %p1087 = pneg %p439
        $region170: #{decoder_layer.1} parent=139 // pred_check_branch
          %1089 = sbr.rel (%p1087) target = $region172
        $region171: #{decoder_layer.1} parent=139 // pred_region
          %1091 = dma.done [#allocation15], 16
        $region172: #{decoder_layer.1} parent=139 // pred_fallthru
          _
        // Predicated region
        $region173: #{decoder_layer.1} parent=139 // pred_check
          %p1092 = pneg %p460
        $region174: #{decoder_layer.1} parent=139 // pred_check_branch
          %1094 = sbr.rel (%p1092) target = $region176
        $region175: #{decoder_layer.1} parent=139 // pred_region
          %1096 = dma.done [#allocation15], 512
        $region176: #{decoder_layer.1} parent=139 // pred_fallthru
          _
        // Predicated region
        $region177: #{decoder_layer.1} parent=139 // pred_check
          %p1097 = pneg %p481
        $region178: #{decoder_layer.1} parent=139 // pred_check_branch
          %1099 = sbr.rel (%p1097) target = $region180
        $region179: #{decoder_layer.1} parent=139 // pred_region
          %1101 = dma.done [#allocation18], 16
        $region180: #{decoder_layer.1} parent=139 // pred_fallthru
          _
        // Predicated region
        $region181: #{decoder_layer.1} parent=139 // pred_check
          %p1102 = pneg %p502
        $region182: #{decoder_layer.1} parent=139 // pred_check_branch
          %1104 = sbr.rel (%p1102) target = $region184
        $region183: #{decoder_layer.1} parent=139 // pred_region
          %1106 = dma.done [#allocation18], 512
        $region184: #{decoder_layer.1} parent=139 // pred_fallthru
          _
        // Predicated region
        $region185: #{decoder_layer.1} parent=139 // pred_check
          %p1107 = pneg %p523
        $region186: #{decoder_layer.1} parent=139 // pred_check_branch
          %1109 = sbr.rel (%p1107) target = $region188
        $region187: #{decoder_layer.1} parent=139 // pred_region
          %1111 = dma.done [#allocation21], 16
        $region188: #{decoder_layer.1} parent=139 // pred_fallthru
          _
        // Predicated region
        $region189: #{decoder_layer.1} parent=139 // pred_check
          %p1112 = pneg %p544
        $region190: #{decoder_layer.1} parent=139 // pred_check_branch
          %1114 = sbr.rel (%p1112) target = $region192
        $region191: #{decoder_layer.1} parent=139 // pred_region
          %1116 = dma.done [#allocation21], 512
        $region192: #{decoder_layer.1} parent=139 // pred_fallthru
          _
        %s1117 = sand.u32 %s96, 1
        %s1118 = scalar_lea.sflag [#allocation3], %s1117
        %s1119 = sand.u32 %s96, 1
        %s1120 = smul.addr %s1119, 8
        %s1121 = scalar_lea.vmem [#allocation2], %s1120
        %p1122 = pneg %p109
        %p1123 = pneg %p106
        %s1124 = sand.u32 %s88, 1
        %s1125 = scalar_lea.sflag [#allocation6], %s1124
        %s1126 = sand.u32 %s122, 1
        %s1127 = smul.addr %s1126, 8
        %s1128 = scalar_lea.vmem [#allocation5], %s1127
        %p1129 = pneg %p135
        %p1130 = pneg %p132
        %s1131 = sand.u32 %s88, 1
        %s1132 = scalar_lea.sflag [#allocation6], %s1131
        %s1133 = sand.u32 %s148, 1
        %s1134 = smul.addr %s1133, 8
        %s1135 = scalar_lea.vmem [#allocation7], %s1134
        %p1136 = pneg %p161
        %p1137 = pneg %p158
        %s1138 = sand.u32 %s88, 1
        %s1139 = scalar_lea.sflag [#allocation9], %s1138
        %s1140 = sand.u32 %s174, 1
        %s1141 = smul.addr %s1140, 8
        %s1142 = scalar_lea.vmem [#allocation8], %s1141
        %p1143 = pneg %p187
        %p1144 = pneg %p184
        %p1145 = pneg %p208
        %p1146 = pneg %p205
        %p1147 = pneg %p229
        %p1148 = pneg %p226
        %p1149 = pneg %p250
        %p1150 = pneg %p247
        %p1151 = pneg %p271
        %p1152 = pneg %p268
        %p1153 = pneg %p292
        %p1154 = pneg %p289
        %p1155 = pneg %p313
        %p1156 = pneg %p310
        %p1157 = pneg %p334
        %p1158 = pneg %p331
        %p1159 = pneg %p355
        %p1160 = pneg %p352
        %p1161 = pneg %p376
        %p1162 = pneg %p373
        %p1163 = pneg %p397
        %p1164 = pneg %p394
        %p1165 = pneg %p418
        %p1166 = pneg %p415
        %p1167 = pneg %p439
        %p1168 = pneg %p436
        %p1169 = pneg %p460
        %p1170 = pneg %p457
        %p1171 = pneg %p481
        %p1172 = pneg %p478
        %p1173 = pneg %p502
        %p1174 = pneg %p499
        %p1175 = pneg %p523
        %p1176 = pneg %p520
        %p1177 = pneg %p544
        %p1178 = pneg %p541
        %p1179 = pneg %p565
        %p1180 = pneg %p562
        %p1181 = pneg %p586
        %p1182 = pneg %p583
        %p1183 = pneg %p607
        %p1184 = pneg %p604
        %p1185 = pneg %p628
        %p1186 = pneg %p625
        %p1187 = pneg %p649
        %p1188 = pneg %p646
        %p1189 = pneg %p670
        %p1190 = pneg %p667
        %p1191 = pneg %p691
        %p1192 = pneg %p688
        %p1193 = pneg %p712
        %p1194 = pneg %p709
        %p1195 = pneg %p733
        %p1196 = pneg %p730
        %p1197 = pneg %p759
        %p1198 = pneg %p756
        %s1199 = sand.u32 %s746, 1
        %s1200 = scalar_lea.sflag [#allocation4], %s1199
        %s1201 = sand.u32 %s746, 1
        %s1202 = smul.addr %s1201, 8
        %s1203 = scalar_lea.vmem [#allocation23], %s1202
        %v1205 = vld [vmem:[%s1036] sm:$0xff]
        %v1206 = vld [vmem:[%s1046] sm:$0xff]
        %v1207 = vld [vmem:[%s49] sm:$0x1]
        %v1208 = vld [vmem:[%s51] sm:$0x1]
        %vm1209 = vcmask 261120
        %v1210 = vsel %vm1209, %v1205, 0.0
        %1211 = vadd.xlane.f32.xlu0 %v1210
        %v1212 = vpop.xlane.xlu0 %1211
        %v1213 = vrcp.pop 32.0
        %v1214 = vmul.f32 32.0, %v1213
        %v1215 = vsub.f32 1.0, %v1214
        %v1216 = vmul.f32 %v1213, %v1215
        %v1217 = vadd.f32 %v1213, %v1216
        %vm1218 = vweird.f32 %v1213
        %v1219 = vsel %vm1218, %v1213, %v1217
        %v1220 = vmul.f32 %v1212, %v1219
        %v1221 = vsub.f32 %v1205, %v1220
        %v1222 = vmul.f32 %v1221, %v1221
        %v1223 = vsel %vm1209, %v1222, 0.0
        %1224 = vadd.xlane.f32.xlu0 %v1223
        %v1225 = vpop.xlane.xlu0 %1224
        %v1226 = vrcp.pop 31.0
        %v1227 = vmul.f32 31.0, %v1226
        %v1228 = vsub.f32 1.0, %v1227
        %v1229 = vmul.f32 %v1226, %v1228
        %v1230 = vadd.f32 %v1226, %v1229
        %vm1231 = vweird.f32 %v1226
        %v1232 = vsel %vm1231, %v1226, %v1230
        %v1233 = vmul.f32 %v1225, %v1232
        %v1234 = vrsqrt.pop %v1233
        %v1235 = vmul.f32 %v1234, %v1233
        %v1236 = vmul.f32 %v1235, %v1234
        %v1237 = vmul.f32 0.5, %v1236
        %v1238 = vsub.f32 1.5, %v1237
        %v1239 = vmul.f32 %v1234, %v1238
        %v1240 = vmul.f32 %v1233, %v1239
        %vm1241 = vcmp.eq.f32.partialorder %v1233, inf
        %v1242 = vsel %vm1241, %v1233, %v1240
        %vm1243 = vcmp.eq.f32.partialorder %v1233, 0.0
        %v1244 = vand.u32 %v1233, 2147483648
        %v1245 = vsel %vm1243, %v1244, %v1242
        %v1246 = vadd.f32 %v1245, 1e-06
        %v1247 = vrcp.pop %v1246
        %v1249 = vperm.slane %v1207, 0
        %v1251 = vmul.f32 %v1249, %v1221
        %v1252 = vmul.f32 %v1251, %v1247
        %v1254 = vperm.slane %v1208, 0
        %v1256 = vadd.f32 %v1252, %v1254
        %v1257 = vld [vmem:[%s1056] sm:$0xff]
        %v1258 = vld [vmem:[%s9] sm:$0xff]
        %v1259 = vld [vmem:[%s9 + $0x8] sm:$0xff]
        %v1260 = vld [vmem:[%s9 + $0x10] sm:$0xff]
        %v1261 = vld [vmem:[%s9 + $0x18] sm:$0xff]
        %v1262 = vld [vmem:[%s11] sm:$0x1]
        %v1263 = vld [vmem:[%s13] sm:$0xff]
        %v1264 = vld [vmem:[%s13 + $0x8] sm:$0xff]
        %v1265 = vld [vmem:[%s13 + $0x10] sm:$0xff]
        %v1266 = vld [vmem:[%s13 + $0x18] sm:$0xff]
        %v1267 = vld [vmem:[%s15] sm:$0x1]
        %v1268 = vld [vmem:[%s17] sm:$0xff]
        %v1269 = vld [vmem:[%s17 + $0x8] sm:$0xff]
        %v1270 = vld [vmem:[%s17 + $0x10] sm:$0xff]
        %v1271 = vld [vmem:[%s17 + $0x18] sm:$0xff]
        %v1272 = vld [vmem:[%s19] sm:$0x1]
        %v1273 = vld [vmem:[#allocation10] sm:$0xff]
        %v1274 = vld [vmem:[#allocation10 + $0x8] sm:$0xff]
        %v1275 = vld [vmem:[#allocation10 + $0x10] sm:$0xff]
        %v1276 = vld [vmem:[#allocation10 + $0x18] sm:$0xff]
        %v1277 = vld [vmem:[%s23] sm:$0x1]
        %v1278 = vpack.c.bf16 %v1256, %v1256
        %v1279 = vpack.c.bf16 %v1259, %v1258
        %v1280 = vpack.c.bf16 %v1261, %v1260
        %v1282 = vperm.slane %v1262, 0
        %v1285 = vsel %vm1209, %v1278, 0
        %1287 = vmatpush.bf16.msra.mxu0 0
        %1288 = vmatpush.bf16.msra.mxu0 0
        %1289 = vmatpush.bf16.msra.mxu0 0
        %1290 = vmatpush.bf16.msra.mxu0 0
        %1291 = vmatpush.bf16.msra.mxu0 0
        %1292 = vmatpush.bf16.msra.mxu0 0
        %1293 = vmatpush.bf16.msra.mxu0 %v1280
        %1294 = vmatpush.bf16.msra.mxu0 %v1279
        %1295 = vmatmul.bf16.gmra.mxu0 %v1285
        %v1296 = vpop.f32.mrf.mxu0
        %v1297 = vadd.f32 %v1282, %v1296
        %v1298 = vpop.f32.mrf.mxu0
        %1299 = vdwg.mxu0
        %v1300 = vpack.c.bf16 %v1264, %v1263
        %v1301 = vpack.c.bf16 %v1266, %v1265
        %v1303 = vperm.slane %v1267, 0
        %1305 = vmatpush.bf16.msra.mxu0 0
        %1306 = vmatpush.bf16.msra.mxu0 0
        %1307 = vmatpush.bf16.msra.mxu0 0
        %1308 = vmatpush.bf16.msra.mxu0 0
        %1309 = vmatpush.bf16.msra.mxu0 0
        %1310 = vmatpush.bf16.msra.mxu0 0
        %1311 = vmatpush.bf16.msra.mxu0 %v1301
        %1312 = vmatpush.bf16.msra.mxu0 %v1300
        %1313 = vmatmul.bf16.gmra.mxu0 %v1285
        %v1314 = vpop.f32.mrf.mxu0
        %v1315 = vadd.f32 %v1303, %v1314
        %v1316 = vpop.f32.mrf.mxu0
        %1317 = vdwg.mxu0
        %v1318 = vpack.c.bf16 %v1269, %v1268
        %v1319 = vpack.c.bf16 %v1271, %v1270
        %v1321 = vperm.slane %v1272, 0
        %1323 = vmatpush.bf16.msra.mxu0 0
        %1324 = vmatpush.bf16.msra.mxu0 0
        %1325 = vmatpush.bf16.msra.mxu0 0
        %1326 = vmatpush.bf16.msra.mxu0 0
        %1327 = vmatpush.bf16.msra.mxu0 0
        %1328 = vmatpush.bf16.msra.mxu0 0
        %1329 = vmatpush.bf16.msra.mxu0 %v1319
        %1330 = vmatpush.bf16.msra.mxu0 %v1318
        %1331 = vmatmul.bf16.gmra.mxu0 %v1285
        %v1332 = vpop.f32.mrf.mxu0
        %v1333 = vadd.f32 %v1321, %v1332
        %v1334 = vpop.f32.mrf.mxu0
        %1335 = vdwg.mxu0
        %vm1336 = vcmp.eq.f32.partialorder %v1257, 0.0
        %v1337 = vpack.c.bf16 %v1273, %v1273
        %v1338 = vpack.c.bf16 %v1274, %v1274
        %v1339 = vpack.c.bf16 %v1275, %v1275
        %v1340 = vpack.c.bf16 %v1276, %v1276
        %v1341 = vpack.c.bf16 %v1297, %v1297
        %v1342 = vpack.c.bf16 %v1315, %v1315
        %vm1343 = vcmask 64512
        %v1345 = vsel %vm1343, %v1341, 0
        %v1348 = vsel %vm1343, %v1342, 0
        %1350 = vmatpush.bf16.xpose.msra.mxu0 0
        %1351 = vmatpush.bf16.xpose.msra.mxu0 0
        %1352 = vmatpush.bf16.xpose.msra.mxu0 0
        %1353 = vmatpush.bf16.xpose.msra.mxu0 0
        %1354 = vmatpush.bf16.xpose.msra.mxu0 0
        %1355 = vmatpush.bf16.xpose.msra.mxu0 0
        %1356 = vmatpush.bf16.xpose.msra.mxu0 0
        %1357 = vmatpush.bf16.xpose.msra.mxu0 %v1348
        %1358 = vmatmul.bf16.gmra.mxu0 %v1345
        %v1359 = vpop.f32.mrf.mxu0
        %v1360 = vadd.f32 0.0, %v1359
        %v1361 = vpop.f32.mrf.mxu0
        %1362 = vdwg.mxu0
        %v1363 = vmul.f32 %v1360, 0.35355338
        %v1364 = vsel %vm1336, -1e+09, %v1363
        %v1365 = vsel %vm1343, %v1364, -inf
        %1366 = vmax.xlane.f32.xlu0 %v1365
        %v1367 = vpop.xlane.xlu0 %1366
        %v1368 = vsub.f32 %v1364, %v1367
        %v1369 = vmul.f32 %v1368, 1.442695
        %v1370 = vpow.pop %v1369
        %v1371 = vsel %vm1343, %v1370, 0.0
        %1372 = vadd.xlane.f32.xlu0 %v1371
        %v1373 = vpop.xlane.xlu0 %1372
        %v1374 = vrcp.pop %v1373
        %v1375 = vmul.f32 %v1370, %v1374
        %v1376 = vpack.c.bf16 %v1375, %v1375
        %v1377 = vpack.c.bf16 %v1333, %v1333
        %v1379 = vsel %vm1343, %v1376, 0
        %vm1381 = vcmask 1043456
        %v1383 = vsel %vm1381, %v1377, 0
        %1385 = vmatpush.bf16.msra.mxu0 0
        %1386 = vmatpush.bf16.msra.mxu0 0
        %1387 = vmatpush.bf16.msra.mxu0 0
        %1388 = vmatpush.bf16.msra.mxu0 0
        %1389 = vmatpush.bf16.msra.mxu0 0
        %1390 = vmatpush.bf16.msra.mxu0 0
        %1391 = vmatpush.bf16.msra.mxu0 0
        %1392 = vmatpush.bf16.msra.mxu0 %v1383
        %1393 = vmatmul.bf16.gmra.mxu0 %v1379
        %v1394 = vpop.f32.mrf.mxu0
        %v1395 = vadd.f32 0.0, %v1394
        %v1396 = vpop.f32.mrf.mxu0
        %1397 = vdwg.mxu0
        %v1398 = vpack.c.bf16 %v1395, %v1395
        %1400 = vrot.lane.b32.xlu0 %v1341, 120
        %v1401 = vpop.permute.xlu0 %1400
        %1403 = vrot.lane.b32.xlu0 %v1342, 120
        %v1404 = vpop.permute.xlu0 %1403
        %v1406 = vsel %vm1343, %v1401, 0
        %v1409 = vsel %vm1343, %v1404, 0
        %1411 = vmatpush.bf16.xpose.msra.mxu0 0
        %1412 = vmatpush.bf16.xpose.msra.mxu0 0
        %1413 = vmatpush.bf16.xpose.msra.mxu0 0
        %1414 = vmatpush.bf16.xpose.msra.mxu0 0
        %1415 = vmatpush.bf16.xpose.msra.mxu0 0
        %1416 = vmatpush.bf16.xpose.msra.mxu0 0
        %1417 = vmatpush.bf16.xpose.msra.mxu0 0
        %1418 = vmatpush.bf16.xpose.msra.mxu0 %v1409
        %1419 = vmatmul.bf16.gmra.mxu0 %v1406
        %v1420 = vpop.f32.mrf.mxu0
        %v1421 = vadd.f32 0.0, %v1420
        %v1422 = vpop.f32.mrf.mxu0
        %1423 = vdwg.mxu0
        %v1424 = vmul.f32 %v1421, 0.35355338
        %v1425 = vsel %vm1336, -1e+09, %v1424
        %v1426 = vsel %vm1343, %v1425, -inf
        %1427 = vmax.xlane.f32.xlu0 %v1426
        %v1428 = vpop.xlane.xlu0 %1427
        %v1429 = vsub.f32 %v1425, %v1428
        %v1430 = vmul.f32 %v1429, 1.442695
        %v1431 = vpow.pop %v1430
        %v1432 = vsel %vm1343, %v1431, 0.0
        %1433 = vadd.xlane.f32.xlu0 %v1432
        %v1434 = vpop.xlane.xlu0 %1433
        %v1435 = vrcp.pop %v1434
        %v1436 = vmul.f32 %v1431, %v1435
        %v1437 = vpack.c.bf16 %v1436, %v1436
        %1439 = vrot.lane.b32.xlu0 %v1377, 120
        %v1440 = vpop.permute.xlu0 %1439
        %v1442 = vsel %vm1343, %v1437, 0
        %v1445 = vsel %vm1381, %v1440, 0
        %1447 = vmatpush.bf16.msra.mxu0 0
        %1448 = vmatpush.bf16.msra.mxu0 0
        %1449 = vmatpush.bf16.msra.mxu0 0
        %1450 = vmatpush.bf16.msra.mxu0 0
        %1451 = vmatpush.bf16.msra.mxu0 0
        %1452 = vmatpush.bf16.msra.mxu0 0
        %1453 = vmatpush.bf16.msra.mxu0 0
        %1454 = vmatpush.bf16.msra.mxu0 %v1445
        %1455 = vmatmul.bf16.gmra.mxu0 %v1442
        %v1456 = vpop.f32.mrf.mxu0
        %v1457 = vadd.f32 0.0, %v1456
        %v1458 = vpop.f32.mrf.mxu0
        %1459 = vdwg.mxu0
        %v1460 = vpack.c.bf16 %v1457, %v1457
        %v1462 = vsel %vm1343, %v1460, 0
        %v1465 = vsel %vm1381, %v1338, 0
        %1467 = vmatpush.bf16.msra.mxu0 0
        %1468 = vmatpush.bf16.msra.mxu0 0
        %1469 = vmatpush.bf16.msra.mxu0 0
        %1470 = vmatpush.bf16.msra.mxu0 0
        %1471 = vmatpush.bf16.msra.mxu0 0
        %1472 = vmatpush.bf16.msra.mxu0 0
        %1473 = vmatpush.bf16.msra.mxu0 0
        %1474 = vmatpush.bf16.msra.mxu0 %v1465
        %1475 = vmatmul.bf16.gmra.mxu0 %v1462
        %v1476 = vpop.f32.mrf.mxu0
        %v1477 = vadd.f32 0.0, %v1476
        %v1478 = vpop.f32.mrf.mxu0
        %1479 = vdwg.mxu0
        %v1481 = vsel %vm1343, %v1398, 0
        %v1484 = vsel %vm1381, %v1337, 0
        %1486 = vmatpush.bf16.msra.mxu0 0
        %1487 = vmatpush.bf16.msra.mxu0 0
        %1488 = vmatpush.bf16.msra.mxu0 0
        %1489 = vmatpush.bf16.msra.mxu0 0
        %1490 = vmatpush.bf16.msra.mxu0 0
        %1491 = vmatpush.bf16.msra.mxu0 0
        %1492 = vmatpush.bf16.msra.mxu0 0
        %1493 = vmatpush.bf16.msra.mxu0 %v1484
        %1494 = vmatmul.bf16.gmra.mxu0 %v1481
        %v1495 = vpop.f32.mrf.mxu0
        %v1496 = vadd.f32 %v1477, %v1495
        %v1497 = vpop.f32.mrf.mxu0
        %1498 = vdwg.mxu0
        %1499 = vrot.lane.b32.xlu0 %v1341, 112
        %v1500 = vpop.permute.xlu0 %1499
        %1501 = vrot.lane.b32.xlu0 %v1342, 112
        %v1502 = vpop.permute.xlu0 %1501
        %v1504 = vsel %vm1343, %v1500, 0
        %v1507 = vsel %vm1343, %v1502, 0
        %1509 = vmatpush.bf16.xpose.msra.mxu0 0
        %1510 = vmatpush.bf16.xpose.msra.mxu0 0
        %1511 = vmatpush.bf16.xpose.msra.mxu0 0
        %1512 = vmatpush.bf16.xpose.msra.mxu0 0
        %1513 = vmatpush.bf16.xpose.msra.mxu0 0
        %1514 = vmatpush.bf16.xpose.msra.mxu0 0
        %1515 = vmatpush.bf16.xpose.msra.mxu0 0
        %1516 = vmatpush.bf16.xpose.msra.mxu0 %v1507
        %1517 = vmatmul.bf16.gmra.mxu0 %v1504
        %v1518 = vpop.f32.mrf.mxu0
        %v1519 = vadd.f32 0.0, %v1518
        %v1520 = vpop.f32.mrf.mxu0
        %1521 = vdwg.mxu0
        %v1522 = vmul.f32 %v1519, 0.35355338
        %v1523 = vsel %vm1336, -1e+09, %v1522
        %v1524 = vsel %vm1343, %v1523, -inf
        %1525 = vmax.xlane.f32.xlu0 %v1524
        %v1526 = vpop.xlane.xlu0 %1525
        %v1527 = vsub.f32 %v1523, %v1526
        %v1528 = vmul.f32 %v1527, 1.442695
        %v1529 = vpow.pop %v1528
        %v1530 = vsel %vm1343, %v1529, 0.0
        %1531 = vadd.xlane.f32.xlu0 %v1530
        %v1532 = vpop.xlane.xlu0 %1531
        %v1533 = vrcp.pop %v1532
        %v1534 = vmul.f32 %v1529, %v1533
        %v1535 = vpack.c.bf16 %v1534, %v1534
        %1536 = vrot.lane.b32.xlu0 %v1377, 112
        %v1537 = vpop.permute.xlu0 %1536
        %v1539 = vsel %vm1343, %v1535, 0
        %v1542 = vsel %vm1381, %v1537, 0
        %1544 = vmatpush.bf16.msra.mxu0 0
        %1545 = vmatpush.bf16.msra.mxu0 0
        %1546 = vmatpush.bf16.msra.mxu0 0
        %1547 = vmatpush.bf16.msra.mxu0 0
        %1548 = vmatpush.bf16.msra.mxu0 0
        %1549 = vmatpush.bf16.msra.mxu0 0
        %1550 = vmatpush.bf16.msra.mxu0 0
        %1551 = vmatpush.bf16.msra.mxu0 %v1542
        %1552 = vmatmul.bf16.gmra.mxu0 %v1539
        %v1553 = vpop.f32.mrf.mxu0
        %v1554 = vadd.f32 0.0, %v1553
        %v1555 = vpop.f32.mrf.mxu0
        %1556 = vdwg.mxu0
        %v1557 = vpack.c.bf16 %v1554, %v1554
        %v1559 = vsel %vm1343, %v1557, 0
        %v1562 = vsel %vm1381, %v1339, 0
        %1564 = vmatpush.bf16.msra.mxu0 0
        %1565 = vmatpush.bf16.msra.mxu0 0
        %1566 = vmatpush.bf16.msra.mxu0 0
        %1567 = vmatpush.bf16.msra.mxu0 0
        %1568 = vmatpush.bf16.msra.mxu0 0
        %1569 = vmatpush.bf16.msra.mxu0 0
        %1570 = vmatpush.bf16.msra.mxu0 0
        %1571 = vmatpush.bf16.msra.mxu0 %v1562
        %1572 = vmatmul.bf16.gmra.mxu0 %v1559
        %v1573 = vpop.f32.mrf.mxu0
        %v1574 = vadd.f32 0.0, %v1573
        %v1575 = vpop.f32.mrf.mxu0
        %1576 = vdwg.mxu0
        %v1577 = vadd.f32 %v1496, %v1574
        %1578 = vrot.lane.b32.xlu0 %v1341, 104
        %v1579 = vpop.permute.xlu0 %1578
        %1580 = vrot.lane.b32.xlu0 %v1342, 104
        %v1581 = vpop.permute.xlu0 %1580
        %v1583 = vsel %vm1343, %v1579, 0
        %v1586 = vsel %vm1343, %v1581, 0
        %1588 = vmatpush.bf16.xpose.msra.mxu0 0
        %1589 = vmatpush.bf16.xpose.msra.mxu0 0
        %1590 = vmatpush.bf16.xpose.msra.mxu0 0
        %1591 = vmatpush.bf16.xpose.msra.mxu0 0
        %1592 = vmatpush.bf16.xpose.msra.mxu0 0
        %1593 = vmatpush.bf16.xpose.msra.mxu0 0
        %1594 = vmatpush.bf16.xpose.msra.mxu0 0
        %1595 = vmatpush.bf16.xpose.msra.mxu0 %v1586
        %1596 = vmatmul.bf16.gmra.mxu0 %v1583
        %v1597 = vpop.f32.mrf.mxu0
        %v1598 = vadd.f32 0.0, %v1597
        %v1599 = vpop.f32.mrf.mxu0
        %1600 = vdwg.mxu0
        %v1601 = vmul.f32 %v1598, 0.35355338
        %v1602 = vsel %vm1336, -1e+09, %v1601
        %v1603 = vsel %vm1343, %v1602, -inf
        %1604 = vmax.xlane.f32.xlu0 %v1603
        %v1605 = vpop.xlane.xlu0 %1604
        %v1606 = vsub.f32 %v1602, %v1605
        %v1607 = vmul.f32 %v1606, 1.442695
        %v1608 = vpow.pop %v1607
        %v1609 = vsel %vm1343, %v1608, 0.0
        %1610 = vadd.xlane.f32.xlu0 %v1609
        %v1611 = vpop.xlane.xlu0 %1610
        %v1612 = vrcp.pop %v1611
        %v1613 = vmul.f32 %v1608, %v1612
        %v1614 = vpack.c.bf16 %v1613, %v1613
        %1615 = vrot.lane.b32.xlu0 %v1377, 104
        %v1616 = vpop.permute.xlu0 %1615
        %v1618 = vsel %vm1343, %v1614, 0
        %v1621 = vsel %vm1381, %v1616, 0
        %1623 = vmatpush.bf16.msra.mxu0 0
        %1624 = vmatpush.bf16.msra.mxu0 0
        %1625 = vmatpush.bf16.msra.mxu0 0
        %1626 = vmatpush.bf16.msra.mxu0 0
        %1627 = vmatpush.bf16.msra.mxu0 0
        %1628 = vmatpush.bf16.msra.mxu0 0
        %1629 = vmatpush.bf16.msra.mxu0 0
        %1630 = vmatpush.bf16.msra.mxu0 %v1621
        %1631 = vmatmul.bf16.gmra.mxu0 %v1618
        %v1632 = vpop.f32.mrf.mxu0
        %v1633 = vadd.f32 0.0, %v1632
        %v1634 = vpop.f32.mrf.mxu0
        %1635 = vdwg.mxu0
        %v1636 = vpack.c.bf16 %v1633, %v1633
        %v1638 = vsel %vm1343, %v1636, 0
        %v1641 = vsel %vm1381, %v1340, 0
        %1643 = vmatpush.bf16.msra.mxu0 0
        %1644 = vmatpush.bf16.msra.mxu0 0
        %1645 = vmatpush.bf16.msra.mxu0 0
        %1646 = vmatpush.bf16.msra.mxu0 0
        %1647 = vmatpush.bf16.msra.mxu0 0
        %1648 = vmatpush.bf16.msra.mxu0 0
        %1649 = vmatpush.bf16.msra.mxu0 0
        %1650 = vmatpush.bf16.msra.mxu0 %v1641
        %1651 = vmatmul.bf16.gmra.mxu0 %v1638
        %v1652 = vpop.f32.mrf.mxu0
        %v1653 = vadd.f32 0.0, %v1652
        %v1654 = vpop.f32.mrf.mxu0
        %1655 = vdwg.mxu0
        %v1656 = vadd.f32 %v1577, %v1653
        %v1658 = vperm.slane %v1277, 0
        %v1660 = vadd.f32 %v1656, %v1658
        %v1661 = vadd.f32 %v1205, %v1660
        %v1662 = vld [vmem:[%s53] sm:$0x1]
        %v1663 = vld [vmem:[%s55] sm:$0x1]
        %v1664 = vsel %vm1209, %v1661, 0.0
        %1665 = vadd.xlane.f32.xlu0 %v1664
        %v1666 = vpop.xlane.xlu0 %1665
        %v1667 = vmul.f32 %v1666, %v1219
        %v1668 = vsub.f32 %v1661, %v1667
        %v1669 = vmul.f32 %v1668, %v1668
        %v1670 = vsel %vm1209, %v1669, 0.0
        %1671 = vadd.xlane.f32.xlu0 %v1670
        %v1672 = vpop.xlane.xlu0 %1671
        %v1673 = vmul.f32 %v1672, %v1232
        %v1674 = vrsqrt.pop %v1673
        %v1675 = vmul.f32 %v1674, %v1673
        %v1676 = vmul.f32 %v1675, %v1674
        %v1677 = vmul.f32 0.5, %v1676
        %v1678 = vsub.f32 1.5, %v1677
        %v1679 = vmul.f32 %v1674, %v1678
        %v1680 = vmul.f32 %v1673, %v1679
        %vm1681 = vcmp.eq.f32.partialorder %v1673, inf
        %v1682 = vsel %vm1681, %v1673, %v1680
        %vm1683 = vcmp.eq.f32.partialorder %v1673, 0.0
        %v1684 = vand.u32 %v1673, 2147483648
        %v1685 = vsel %vm1683, %v1684, %v1682
        %v1686 = vadd.f32 %v1685, 1e-06
        %v1687 = vrcp.pop %v1686
        %v1689 = vperm.slane %v1662, 0
        %v1691 = vmul.f32 %v1689, %v1668
        %v1692 = vmul.f32 %v1691, %v1687
        %v1694 = vperm.slane %v1663, 0
        %v1696 = vadd.f32 %v1692, %v1694
        %v1697 = vld [vmem:[%s1066] sm:$0xff]
        %v1698 = vld [vmem:[#allocation11] sm:$0xff]
        %v1699 = vld [vmem:[#allocation11 + $0x8] sm:$0xff]
        %v1700 = vld [vmem:[#allocation11 + $0x10] sm:$0xff]
        %v1701 = vld [vmem:[#allocation11 + $0x18] sm:$0xff]
        %v1702 = vld [vmem:[%s27] sm:$0x1]
        %v1703 = vld [vmem:[#allocation13] sm:$0xff]
        %v1704 = vld [vmem:[#allocation13 + $0x8] sm:$0xff]
        %v1705 = vld [vmem:[#allocation13 + $0x10] sm:$0xff]
        %v1706 = vld [vmem:[#allocation13 + $0x18] sm:$0xff]
        %v1707 = vld [vmem:[#allocation14] sm:$0x1]
        %v1708 = vld [vmem:[#allocation16] sm:$0xff]
        %v1709 = vld [vmem:[#allocation16 + $0x8] sm:$0xff]
        %v1710 = vld [vmem:[#allocation16 + $0x10] sm:$0xff]
        %v1711 = vld [vmem:[#allocation16 + $0x18] sm:$0xff]
        %v1712 = vld [vmem:[#allocation17] sm:$0x1]
        %v1713 = vld [vmem:[#allocation19] sm:$0xff]
        %v1714 = vld [vmem:[#allocation19 + $0x8] sm:$0xff]
        %v1715 = vld [vmem:[#allocation19 + $0x10] sm:$0xff]
        %v1716 = vld [vmem:[#allocation19 + $0x18] sm:$0xff]
        %v1717 = vld [vmem:[#allocation20] sm:$0x1]
        %v1718 = vpack.c.bf16 %v1696, %v1696
        %v1719 = vpack.c.bf16 %v1699, %v1698
        %v1720 = vpack.c.bf16 %v1701, %v1700
        %v1722 = vperm.slane %v1702, 0
        %v1725 = vsel %vm1209, %v1718, 0
        %1727 = vmatpush.bf16.msra.mxu0 0
        %1728 = vmatpush.bf16.msra.mxu0 0
        %1729 = vmatpush.bf16.msra.mxu0 0
        %1730 = vmatpush.bf16.msra.mxu0 0
        %1731 = vmatpush.bf16.msra.mxu0 0
        %1732 = vmatpush.bf16.msra.mxu0 0
        %1733 = vmatpush.bf16.msra.mxu0 %v1720
        %1734 = vmatpush.bf16.msra.mxu0 %v1719
        %1735 = vmatmul.bf16.gmra.mxu0 %v1725
        %v1736 = vpop.f32.mrf.mxu0
        %v1737 = vadd.f32 %v1722, %v1736
        %v1738 = vpop.f32.mrf.mxu0
        %1739 = vdwg.mxu0
        %v1740 = vpack.c.bf16 %v1206, %v1206
        %v1741 = vpack.c.bf16 %v1704, %v1703
        %v1742 = vpack.c.bf16 %v1706, %v1705
        %v1744 = vperm.slane %v1707, 0
        %v1747 = vsel %vm1209, %v1740, 0
        %1749 = vmatpush.bf16.msra.mxu0 0
        %1750 = vmatpush.bf16.msra.mxu0 0
        %1751 = vmatpush.bf16.msra.mxu0 0
        %1752 = vmatpush.bf16.msra.mxu0 0
        %1753 = vmatpush.bf16.msra.mxu0 0
        %1754 = vmatpush.bf16.msra.mxu0 0
        %1755 = vmatpush.bf16.msra.mxu0 %v1742
        %1756 = vmatpush.bf16.msra.mxu0 %v1741
        %1757 = vmatmul.bf16.gmra.mxu0 %v1747
        %v1758 = vpop.f32.mrf.mxu0
        %v1759 = vadd.f32 %v1744, %v1758
        %v1760 = vpop.f32.mrf.mxu0
        %1761 = vdwg.mxu0
        %v1762 = vpack.c.bf16 %v1709, %v1708
        %v1763 = vpack.c.bf16 %v1711, %v1710
        %v1765 = vperm.slane %v1712, 0
        %1767 = vmatpush.bf16.msra.mxu0 0
        %1768 = vmatpush.bf16.msra.mxu0 0
        %1769 = vmatpush.bf16.msra.mxu0 0
        %1770 = vmatpush.bf16.msra.mxu0 0
        %1771 = vmatpush.bf16.msra.mxu0 0
        %1772 = vmatpush.bf16.msra.mxu0 0
        %1773 = vmatpush.bf16.msra.mxu0 %v1763
        %1774 = vmatpush.bf16.msra.mxu0 %v1762
        %1775 = vmatmul.bf16.gmra.mxu0 %v1747
        %v1776 = vpop.f32.mrf.mxu0
        %v1777 = vadd.f32 %v1765, %v1776
        %v1778 = vpop.f32.mrf.mxu0
        %1779 = vdwg.mxu0
        %vm1780 = vcmp.eq.f32.partialorder %v1697, 0.0
        %v1781 = vpack.c.bf16 %v1713, %v1713
        %v1782 = vpack.c.bf16 %v1714, %v1714
        %v1783 = vpack.c.bf16 %v1715, %v1715
        %v1784 = vpack.c.bf16 %v1716, %v1716
        %v1785 = vpack.c.bf16 %v1737, %v1737
        %v1786 = vpack.c.bf16 %v1759, %v1759
        %v1788 = vsel %vm1343, %v1785, 0
        %v1791 = vsel %vm1343, %v1786, 0
        %1793 = vmatpush.bf16.xpose.msra.mxu0 0
        %1794 = vmatpush.bf16.xpose.msra.mxu0 0
        %1795 = vmatpush.bf16.xpose.msra.mxu0 0
        %1796 = vmatpush.bf16.xpose.msra.mxu0 0
        %1797 = vmatpush.bf16.xpose.msra.mxu0 0
        %1798 = vmatpush.bf16.xpose.msra.mxu0 0
        %1799 = vmatpush.bf16.xpose.msra.mxu0 0
        %1800 = vmatpush.bf16.xpose.msra.mxu0 %v1791
        %1801 = vmatmul.bf16.gmra.mxu0 %v1788
        %v1802 = vpop.f32.mrf.mxu0
        %v1803 = vadd.f32 0.0, %v1802
        %v1804 = vpop.f32.mrf.mxu0
        %1805 = vdwg.mxu0
        %v1806 = vmul.f32 %v1803, 0.35355338
        %v1807 = vsel %vm1780, -1e+09, %v1806
        %v1808 = vsel %vm1343, %v1807, -inf
        %1809 = vmax.xlane.f32.xlu0 %v1808
        %v1810 = vpop.xlane.xlu0 %1809
        %v1811 = vsub.f32 %v1807, %v1810
        %v1812 = vmul.f32 %v1811, 1.442695
        %v1813 = vpow.pop %v1812
        %v1814 = vsel %vm1343, %v1813, 0.0
        %1815 = vadd.xlane.f32.xlu0 %v1814
        %v1816 = vpop.xlane.xlu0 %1815
        %v1817 = vrcp.pop %v1816
        %v1818 = vmul.f32 %v1813, %v1817
        %v1819 = vpack.c.bf16 %v1818, %v1818
        %v1820 = vpack.c.bf16 %v1777, %v1777
        %v1822 = vsel %vm1343, %v1819, 0
        %v1825 = vsel %vm1381, %v1820, 0
        %1827 = vmatpush.bf16.msra.mxu0 0
        %1828 = vmatpush.bf16.msra.mxu0 0
        %1829 = vmatpush.bf16.msra.mxu0 0
        %1830 = vmatpush.bf16.msra.mxu0 0
        %1831 = vmatpush.bf16.msra.mxu0 0
        %1832 = vmatpush.bf16.msra.mxu0 0
        %1833 = vmatpush.bf16.msra.mxu0 0
        %1834 = vmatpush.bf16.msra.mxu0 %v1825
        %1835 = vmatmul.bf16.gmra.mxu0 %v1822
        %v1836 = vpop.f32.mrf.mxu0
        %v1837 = vadd.f32 0.0, %v1836
        %v1838 = vpop.f32.mrf.mxu0
        %1839 = vdwg.mxu0
        %v1840 = vpack.c.bf16 %v1837, %v1837
        %1842 = vrot.lane.b32.xlu0 %v1785, 120
        %v1843 = vpop.permute.xlu0 %1842
        %1845 = vrot.lane.b32.xlu0 %v1786, 120
        %v1846 = vpop.permute.xlu0 %1845
        %v1848 = vsel %vm1343, %v1843, 0
        %v1851 = vsel %vm1343, %v1846, 0
        %1853 = vmatpush.bf16.xpose.msra.mxu0 0
        %1854 = vmatpush.bf16.xpose.msra.mxu0 0
        %1855 = vmatpush.bf16.xpose.msra.mxu0 0
        %1856 = vmatpush.bf16.xpose.msra.mxu0 0
        %1857 = vmatpush.bf16.xpose.msra.mxu0 0
        %1858 = vmatpush.bf16.xpose.msra.mxu0 0
        %1859 = vmatpush.bf16.xpose.msra.mxu0 0
        %1860 = vmatpush.bf16.xpose.msra.mxu0 %v1851
        %1861 = vmatmul.bf16.gmra.mxu0 %v1848
        %v1862 = vpop.f32.mrf.mxu0
        %v1863 = vadd.f32 0.0, %v1862
        %v1864 = vpop.f32.mrf.mxu0
        %1865 = vdwg.mxu0
        %v1866 = vmul.f32 %v1863, 0.35355338
        %v1867 = vsel %vm1780, -1e+09, %v1866
        %v1868 = vsel %vm1343, %v1867, -inf
        %1869 = vmax.xlane.f32.xlu0 %v1868
        %v1870 = vpop.xlane.xlu0 %1869
        %v1871 = vsub.f32 %v1867, %v1870
        %v1872 = vmul.f32 %v1871, 1.442695
        %v1873 = vpow.pop %v1872
        %v1874 = vsel %vm1343, %v1873, 0.0
        %1875 = vadd.xlane.f32.xlu0 %v1874
        %v1876 = vpop.xlane.xlu0 %1875
        %v1877 = vrcp.pop %v1876
        %v1878 = vmul.f32 %v1873, %v1877
        %v1879 = vpack.c.bf16 %v1878, %v1878
        %1881 = vrot.lane.b32.xlu0 %v1820, 120
        %v1882 = vpop.permute.xlu0 %1881
        %v1884 = vsel %vm1343, %v1879, 0
        %v1887 = vsel %vm1381, %v1882, 0
        %1889 = vmatpush.bf16.msra.mxu0 0
        %1890 = vmatpush.bf16.msra.mxu0 0
        %1891 = vmatpush.bf16.msra.mxu0 0
        %1892 = vmatpush.bf16.msra.mxu0 0
        %1893 = vmatpush.bf16.msra.mxu0 0
        %1894 = vmatpush.bf16.msra.mxu0 0
        %1895 = vmatpush.bf16.msra.mxu0 0
        %1896 = vmatpush.bf16.msra.mxu0 %v1887
        %1897 = vmatmul.bf16.gmra.mxu0 %v1884
        %v1898 = vpop.f32.mrf.mxu0
        %v1899 = vadd.f32 0.0, %v1898
        %v1900 = vpop.f32.mrf.mxu0
        %1901 = vdwg.mxu0
        %v1902 = vpack.c.bf16 %v1899, %v1899
        %v1904 = vsel %vm1343, %v1902, 0
        %v1907 = vsel %vm1381, %v1782, 0
        %1909 = vmatpush.bf16.msra.mxu0 0
        %1910 = vmatpush.bf16.msra.mxu0 0
        %1911 = vmatpush.bf16.msra.mxu0 0
        %1912 = vmatpush.bf16.msra.mxu0 0
        %1913 = vmatpush.bf16.msra.mxu0 0
        %1914 = vmatpush.bf16.msra.mxu0 0
        %1915 = vmatpush.bf16.msra.mxu0 0
        %1916 = vmatpush.bf16.msra.mxu0 %v1907
        %1917 = vmatmul.bf16.gmra.mxu0 %v1904
        %v1918 = vpop.f32.mrf.mxu0
        %v1919 = vadd.f32 0.0, %v1918
        %v1920 = vpop.f32.mrf.mxu0
        %1921 = vdwg.mxu0
        %v1923 = vsel %vm1343, %v1840, 0
        %v1926 = vsel %vm1381, %v1781, 0
        %1928 = vmatpush.bf16.msra.mxu0 0
        %1929 = vmatpush.bf16.msra.mxu0 0
        %1930 = vmatpush.bf16.msra.mxu0 0
        %1931 = vmatpush.bf16.msra.mxu0 0
        %1932 = vmatpush.bf16.msra.mxu0 0
        %1933 = vmatpush.bf16.msra.mxu0 0
        %1934 = vmatpush.bf16.msra.mxu0 0
        %1935 = vmatpush.bf16.msra.mxu0 %v1926
        %1936 = vmatmul.bf16.gmra.mxu0 %v1923
        %v1937 = vpop.f32.mrf.mxu0
        %v1938 = vadd.f32 %v1919, %v1937
        %v1939 = vpop.f32.mrf.mxu0
        %1940 = vdwg.mxu0
        %1941 = vrot.lane.b32.xlu0 %v1785, 112
        %v1942 = vpop.permute.xlu0 %1941
        %1943 = vrot.lane.b32.xlu0 %v1786, 112
        %v1944 = vpop.permute.xlu0 %1943
        %v1946 = vsel %vm1343, %v1942, 0
        %v1949 = vsel %vm1343, %v1944, 0
        %1951 = vmatpush.bf16.xpose.msra.mxu0 0
        %1952 = vmatpush.bf16.xpose.msra.mxu0 0
        %1953 = vmatpush.bf16.xpose.msra.mxu0 0
        %1954 = vmatpush.bf16.xpose.msra.mxu0 0
        %1955 = vmatpush.bf16.xpose.msra.mxu0 0
        %1956 = vmatpush.bf16.xpose.msra.mxu0 0
        %1957 = vmatpush.bf16.xpose.msra.mxu0 0
        %1958 = vmatpush.bf16.xpose.msra.mxu0 %v1949
        %1959 = vmatmul.bf16.gmra.mxu0 %v1946
        %v1960 = vpop.f32.mrf.mxu0
        %v1961 = vadd.f32 0.0, %v1960
        %v1962 = vpop.f32.mrf.mxu0
        %1963 = vdwg.mxu0
        %v1964 = vmul.f32 %v1961, 0.35355338
        %v1965 = vsel %vm1780, -1e+09, %v1964
        %v1966 = vsel %vm1343, %v1965, -inf
        %1967 = vmax.xlane.f32.xlu0 %v1966
        %v1968 = vpop.xlane.xlu0 %1967
        %v1969 = vsub.f32 %v1965, %v1968
        %v1970 = vmul.f32 %v1969, 1.442695
        %v1971 = vpow.pop %v1970
        %v1972 = vsel %vm1343, %v1971, 0.0
        %1973 = vadd.xlane.f32.xlu0 %v1972
        %v1974 = vpop.xlane.xlu0 %1973
        %v1975 = vrcp.pop %v1974
        %v1976 = vmul.f32 %v1971, %v1975
        %v1977 = vpack.c.bf16 %v1976, %v1976
        %1978 = vrot.lane.b32.xlu0 %v1820, 112
        %v1979 = vpop.permute.xlu0 %1978
        %v1981 = vsel %vm1343, %v1977, 0
        %v1984 = vsel %vm1381, %v1979, 0
        %1986 = vmatpush.bf16.msra.mxu0 0
        %1987 = vmatpush.bf16.msra.mxu0 0
        %1988 = vmatpush.bf16.msra.mxu0 0
        %1989 = vmatpush.bf16.msra.mxu0 0
        %1990 = vmatpush.bf16.msra.mxu0 0
        %1991 = vmatpush.bf16.msra.mxu0 0
        %1992 = vmatpush.bf16.msra.mxu0 0
        %1993 = vmatpush.bf16.msra.mxu0 %v1984
        %1994 = vmatmul.bf16.gmra.mxu0 %v1981
        %v1995 = vpop.f32.mrf.mxu0
        %v1996 = vadd.f32 0.0, %v1995
        %v1997 = vpop.f32.mrf.mxu0
        %1998 = vdwg.mxu0
        %v1999 = vpack.c.bf16 %v1996, %v1996
        %v2001 = vsel %vm1343, %v1999, 0
        %v2004 = vsel %vm1381, %v1783, 0
        %2006 = vmatpush.bf16.msra.mxu0 0
        %2007 = vmatpush.bf16.msra.mxu0 0
        %2008 = vmatpush.bf16.msra.mxu0 0
        %2009 = vmatpush.bf16.msra.mxu0 0
        %2010 = vmatpush.bf16.msra.mxu0 0
        %2011 = vmatpush.bf16.msra.mxu0 0
        %2012 = vmatpush.bf16.msra.mxu0 0
        %2013 = vmatpush.bf16.msra.mxu0 %v2004
        %2014 = vmatmul.bf16.gmra.mxu0 %v2001
        %v2015 = vpop.f32.mrf.mxu0
        %v2016 = vadd.f32 0.0, %v2015
        %v2017 = vpop.f32.mrf.mxu0
        %2018 = vdwg.mxu0
        %v2019 = vadd.f32 %v1938, %v2016
        %2020 = vrot.lane.b32.xlu0 %v1785, 104
        %v2021 = vpop.permute.xlu0 %2020
        %2022 = vrot.lane.b32.xlu0 %v1786, 104
        %v2023 = vpop.permute.xlu0 %2022
        %v2025 = vsel %vm1343, %v2021, 0
        %v2028 = vsel %vm1343, %v2023, 0
        %2030 = vmatpush.bf16.xpose.msra.mxu0 0
        %2031 = vmatpush.bf16.xpose.msra.mxu0 0
        %2032 = vmatpush.bf16.xpose.msra.mxu0 0
        %2033 = vmatpush.bf16.xpose.msra.mxu0 0
        %2034 = vmatpush.bf16.xpose.msra.mxu0 0
        %2035 = vmatpush.bf16.xpose.msra.mxu0 0
        %2036 = vmatpush.bf16.xpose.msra.mxu0 0
        %2037 = vmatpush.bf16.xpose.msra.mxu0 %v2028
        %2038 = vmatmul.bf16.gmra.mxu0 %v2025
        %v2039 = vpop.f32.mrf.mxu0
        %v2040 = vadd.f32 0.0, %v2039
        %v2041 = vpop.f32.mrf.mxu0
        %2042 = vdwg.mxu0
        %v2043 = vmul.f32 %v2040, 0.35355338
        %v2044 = vsel %vm1780, -1e+09, %v2043
        %v2045 = vsel %vm1343, %v2044, -inf
        %2046 = vmax.xlane.f32.xlu0 %v2045
        %v2047 = vpop.xlane.xlu0 %2046
        %v2048 = vsub.f32 %v2044, %v2047
        %v2049 = vmul.f32 %v2048, 1.442695
        %v2050 = vpow.pop %v2049
        %v2051 = vsel %vm1343, %v2050, 0.0
        %2052 = vadd.xlane.f32.xlu0 %v2051
        %v2053 = vpop.xlane.xlu0 %2052
        %v2054 = vrcp.pop %v2053
        %v2055 = vmul.f32 %v2050, %v2054
        %v2056 = vpack.c.bf16 %v2055, %v2055
        %2057 = vrot.lane.b32.xlu0 %v1820, 104
        %v2058 = vpop.permute.xlu0 %2057
        %v2060 = vsel %vm1343, %v2056, 0
        %v2063 = vsel %vm1381, %v2058, 0
        %2065 = vmatpush.bf16.msra.mxu0 0
        %2066 = vmatpush.bf16.msra.mxu0 0
        %2067 = vmatpush.bf16.msra.mxu0 0
        %2068 = vmatpush.bf16.msra.mxu0 0
        %2069 = vmatpush.bf16.msra.mxu0 0
        %2070 = vmatpush.bf16.msra.mxu0 0
        %2071 = vmatpush.bf16.msra.mxu0 0
        %2072 = vmatpush.bf16.msra.mxu0 %v2063
        %2073 = vmatmul.bf16.gmra.mxu0 %v2060
        %v2074 = vpop.f32.mrf.mxu0
        %v2075 = vadd.f32 0.0, %v2074
        %v2076 = vpop.f32.mrf.mxu0
        %2077 = vdwg.mxu0
        %v2078 = vpack.c.bf16 %v2075, %v2075
        %v2080 = vsel %vm1343, %v2078, 0
        %v2083 = vsel %vm1381, %v1784, 0
        %2085 = vmatpush.bf16.msra.mxu0 0
        %2086 = vmatpush.bf16.msra.mxu0 0
        %2087 = vmatpush.bf16.msra.mxu0 0
        %2088 = vmatpush.bf16.msra.mxu0 0
        %2089 = vmatpush.bf16.msra.mxu0 0
        %2090 = vmatpush.bf16.msra.mxu0 0
        %2091 = vmatpush.bf16.msra.mxu0 0
        %2092 = vmatpush.bf16.msra.mxu0 %v2083
        %2093 = vmatmul.bf16.gmra.mxu0 %v2080
        %v2094 = vpop.f32.mrf.mxu0
        %v2095 = vadd.f32 0.0, %v2094
        %v2096 = vpop.f32.mrf.mxu0
        %2097 = vdwg.mxu0
        %v2098 = vadd.f32 %v2019, %v2095
        %v2100 = vperm.slane %v1717, 0
        %v2102 = vadd.f32 %v2098, %v2100
        %v2103 = vadd.f32 %v1661, %v2102
        %v2104 = vld [vmem:[%s57] sm:$0x1]
        %v2105 = vld [vmem:[%s59] sm:$0x1]
        %v2106 = vsel %vm1209, %v2103, 0.0
        %2107 = vadd.xlane.f32.xlu0 %v2106
        %v2108 = vpop.xlane.xlu0 %2107
        %v2109 = vmul.f32 %v2108, %v1219
        %v2110 = vsub.f32 %v2103, %v2109
        %v2111 = vmul.f32 %v2110, %v2110
        %v2112 = vsel %vm1209, %v2111, 0.0
        %2113 = vadd.xlane.f32.xlu0 %v2112
        %v2114 = vpop.xlane.xlu0 %2113
        %v2115 = vmul.f32 %v2114, %v1232
        %v2116 = vrsqrt.pop %v2115
        %v2117 = vmul.f32 %v2116, %v2115
        %v2118 = vmul.f32 %v2117, %v2116
        %v2119 = vmul.f32 0.5, %v2118
        %v2120 = vsub.f32 1.5, %v2119
        %v2121 = vmul.f32 %v2116, %v2120
        %v2122 = vmul.f32 %v2115, %v2121
        %vm2123 = vcmp.eq.f32.partialorder %v2115, inf
        %v2124 = vsel %vm2123, %v2115, %v2122
        %vm2125 = vcmp.eq.f32.partialorder %v2115, 0.0
        %v2126 = vand.u32 %v2115, 2147483648
        %v2127 = vsel %vm2125, %v2126, %v2124
        %v2128 = vadd.f32 %v2127, 1e-06
        %v2129 = vrcp.pop %v2128
        %v2131 = vperm.slane %v2104, 0
        %v2133 = vmul.f32 %v2131, %v2110
        %v2134 = vmul.f32 %v2133, %v2129
        %v2136 = vperm.slane %v2105, 0
        %v2138 = vadd.f32 %v2134, %v2136
        %v2139 = vld [vmem:[#allocation22] sm:$0xff]
        %v2140 = vld [vmem:[#allocation22 + $0x8] sm:$0xff]
        %v2141 = vld [vmem:[#allocation22 + $0x10] sm:$0xff]
        %v2142 = vld [vmem:[#allocation22 + $0x18] sm:$0xff]
        %v2143 = vld [vmem:[%s43] sm:$0x1]
        %v2144 = vpack.c.bf16 %v2138, %v2138
        %v2145 = vpack.c.bf16 %v2140, %v2139
        %v2146 = vpack.c.bf16 %v2142, %v2141
        %v2148 = vperm.slane %v2143, 0
        %v2151 = vsel %vm1209, %v2144, 0
        %2153 = vmatpush.bf16.msra.mxu0 0
        %2154 = vmatpush.bf16.msra.mxu0 0
        %2155 = vmatpush.bf16.msra.mxu0 0
        %2156 = vmatpush.bf16.msra.mxu0 0
        %2157 = vmatpush.bf16.msra.mxu0 0
        %2158 = vmatpush.bf16.msra.mxu0 0
        %2159 = vmatpush.bf16.msra.mxu0 %v2146
        %2160 = vmatpush.bf16.msra.mxu0 %v2145
        %2161 = vmatmul.bf16.gmra.mxu0 %v2151
        %v2162 = vpop.f32.mrf.mxu0
        %v2163 = vadd.f32 %v2148, %v2162
        %v2164 = vpop.f32.mrf.mxu0
        %2165 = vdwg.mxu0
        %v2166 = vmax.f32 %v2163, 0.0
        %v2167 = vld [vmem:[%s45] sm:$0xff]
        %v2168 = vld [vmem:[%s45 + $0x8] sm:$0xff]
        %v2169 = vld [vmem:[%s45 + $0x10] sm:$0xff]
        %v2170 = vld [vmem:[%s45 + $0x18] sm:$0xff]
        %v2171 = vld [vmem:[%s45 + $0x20] sm:$0xff]
        %v2172 = vld [vmem:[%s45 + $0x28] sm:$0xff]
        %v2173 = vld [vmem:[%s45 + $0x30] sm:$0xff]
        %v2174 = vld [vmem:[%s45 + $0x38] sm:$0xff]
        %v2175 = vld [vmem:[%s47] sm:$0x1]
        %v2176 = vpack.c.bf16 %v2166, %v2166
        %v2177 = vpack.c.bf16 %v2168, %v2167
        %v2178 = vpack.c.bf16 %v2170, %v2169
        %v2179 = vpack.c.bf16 %v2172, %v2171
        %v2180 = vpack.c.bf16 %v2174, %v2173
        %v2182 = vperm.slane %v2175, 0
        %vm2184 = vcmask 523264
        %v2186 = vsel %vm2184, %v2176, 0
        %2188 = vmatpush.bf16.msra.mxu0 0
        %2189 = vmatpush.bf16.msra.mxu0 0
        %2190 = vmatpush.bf16.msra.mxu0 0
        %2191 = vmatpush.bf16.msra.mxu0 0
        %2192 = vmatpush.bf16.msra.mxu0 %v2180
        %2193 = vmatpush.bf16.msra.mxu0 %v2179
        %2194 = vmatpush.bf16.msra.mxu0 %v2178
        %2195 = vmatpush.bf16.msra.mxu0 %v2177
        %2196 = vmatmul.bf16.gmra.mxu0 %v2186
        %v2197 = vpop.f32.mrf.mxu0
        %v2198 = vadd.f32 %v2182, %v2197
        %v2199 = vpop.f32.mrf.mxu0
        %2200 = vdwg.mxu0
        %v2201 = vadd.f32 %v2103, %v2198
        %2202 = vst.msk [vmem:[%s1203] sm:$0xff] %vm1209, %v2201
        %s2203 = sand.u32 %s746, 1
        %s2204 = scalar_lea.sflag [#allocation4], %s2203
        %s2205 = sand.u32 %s746, 1
        %s2206 = smul.addr %s2205, 8
        %s2207 = scalar_lea.vmem [#allocation23], %s2206
        // Predicated region
        $region193: #{decoder_layer.1} parent=139 // pred_check
          %p2208 = pneg %p756
        $region194: #{decoder_layer.1} parent=139 // pred_check_branch
          %2210 = sbr.rel (%p2208) target = $region196
        $region195: #{decoder_layer.1} parent=139 // pred_region
          %2212 = vsyncadd %s2204, 0
          %s2213 = smul.addr %s88, 8
          %s2214 = scalar_lea.hbm %s61, %s2213
          %s2216 = sshll.u32 %s2207, 4
          %s2217 = int_to_ptr.vmem [resolvable:$true] %s2216
          %s2218 = sshll.u32 %s2214, 4
          %s2219 = int_to_ptr.hbm [resolvable:$true] %s2218
          %2221 = dma.vmem_to_hbm [thread:$0]  %s2217, 128, %s2219, %s2204
        $region196: #{decoder_layer.1} parent=139 // pred_fallthru
          _
      $region140: #{decoder_layer.1} parent=5 // pred_fallthru
        _
      %p2222 = scmp.le.s32.totalorder 2, %s83
      // Predicated region
      $region197: #{decoder_layer.1} parent=5 // pred_check
        %p2223 = pneg %p2222
      $region198: #{decoder_layer.1} parent=5 // pred_check_branch
        %2225 = sbr.rel (%p2223) target = $region200
      $region199: #{decoder_layer.1} parent=5 // pred_region
        %s2226 = ssub.s32 %s83, 2
        // Predicated region
        $region201: #{decoder_layer.1} parent=199 // pred_check
          %p2227 = pneg %p762
        $region202: #{decoder_layer.1} parent=199 // pred_check_branch
          %2229 = sbr.rel (%p2227) target = $region204
        $region203: #{decoder_layer.1} parent=199 // pred_region
          %s2230 = sand.u32 %s747, 1
          %s2231 = scalar_lea.sflag [#allocation4], %s2230
          %s2232 = sand.u32 %s747, 1
          %s2233 = smul.addr %s2232, 8
          %s2234 = scalar_lea.vmem [#allocation23], %s2233
          %2236 = dma.done %s2231, 128
        $region204: #{decoder_layer.1} parent=199 // pred_fallthru
          _
      $region200: #{decoder_layer.1} parent=5 // pred_fallthru
        _
    $region6: #{decoder_layer.1} parent=1 // loop_footer
      %s87 = sadd.s32 1, %s83
    $region7: #{decoder_layer.1} parent=1 // loop_footer_branch
      %82 = sbr.rel target = $region3
    $region8: #{decoder_layer.1} parent=1 // loop_exit
      _
    %2237 = vsyncpa [#allocation3], 1
    %s2238 = scalar_lea.sflag [#allocation3], 1
    %2239 = vsyncpa %s2238, 1
    %2240 = vsyncpa [#allocation6], 1
    %s2241 = scalar_lea.sflag [#allocation6], 1
    %2242 = vsyncpa %s2241, 1
    %2243 = vsyncpa [#allocation9], 1
    %s2244 = scalar_lea.sflag [#allocation9], 1
    %2245 = vsyncpa %s2244, 1
    %2246 = vsyncpa [#allocation12], 1
    %2247 = vsyncpa [#allocation15], 1
    %2248 = vsyncpa [#allocation18], 1
    %2249 = vsyncpa [#allocation21], 1
    %2250 = vsyncpa [#allocation4], 1
    %s2251 = scalar_lea.sflag [#allocation4], 1
    %2252 = vsyncpa %s2251, 1

</llo_original>
